<compile_context>
chip_gen: v6e
topology: v6e:2x2x1
jax: 0.10.0
libtpu: 0.0.40
codegen_flags: <defaults>
</compile_context>

<pallas_src>
import functools

import jax
import jax.numpy as jnp
from jax.experimental import pallas as pl
from jax.experimental.pallas import tpu as pltpu


# --------------------------------------------------------------------------
# Fused Pallas kernel: conv1 -> conv3(+skip, ReLU) -> conv4 -> upconv1 -> conv6
# --------------------------------------------------------------------------
def _resdiv_fused_kernel(x_ref,
                         w1_ref, s1_ref, b1_ref,
                         w3_ref, s3_ref, b3_ref,
                         w4_ref, s4_ref, b4_ref,
                         wup_ref, sup_ref, bup_ref,
                         w6_ref, s6_ref, b6_ref,
                         o_ref,
                         pad_s, slab_s, padq, slab_q,
                         *, H, W, cin, cout):
    f32 = jnp.float32

    def conv3x3(w_ref_, scale, bias, relu, residual=None):
        # pad_s holds the zero-padded (H+2, W+2, cin) input (rim already zero).
        # Build the (H, W, 9*cin) im2col slab with 9 contiguous slice copies,
        # then do a single MXU matmul + fused BN affine (+skip) (+ReLU).
        for kh in range(3):
            for kw in range(3):
                c0 = (kh * 3 + kw) * cin
                slab_s[:, :, c0:c0 + cin] = pad_s[kh:kh + H, kw:kw + W, :]
        slab = slab_s[...].reshape(H * W, 9 * cin)
        y = jnp.dot(slab, w_ref_[...], preferred_element_type=f32)
        y = y * scale + bias
        if residual is not None:
            y = y + residual
        if relu:
            y = jnp.maximum(y, 0.0)
        return y                                        # (H*W, cin)

    # Zero the halo rims once per image; interiors are fully overwritten below.
    pad_s[...] = jnp.zeros_like(pad_s)
    padq[...] = jnp.zeros_like(padq)

    x = x_ref[0].astype(f32)                            # (H, W, cin)
    x_flat = x.reshape(H * W, cin)                      # skip-connection value

    # conv1: grouped 3x3 + BN + ReLU
    pad_s[1:H + 1, 1:W + 1, :] = x
    h = conv3x3(w1_ref, s1_ref[...], b1_ref[...], relu=True)

    # conv3: 3x3 + BN, add module input (identity), ReLU
    pad_s[1:H + 1, 1:W + 1, :] = h.reshape(H, W, cin)
    h = conv3x3(w3_ref, s3_ref[...], b3_ref[...], relu=True, residual=x_flat)

    # conv4: grouped 3x3 + BN + ReLU
    pad_s[1:H + 1, 1:W + 1, :] = h.reshape(H, W, cin)
    h = conv3x3(w4_ref, s4_ref[...], b4_ref[...], relu=True)

    # upconv1: ConvTranspose2d(k=2, s=2, groups=2) + BN.  Each sub-pixel tap
    # (a, b) is a 1x1 conv (matmul); results are written directly into the
    # packed-quad padded buffer:
    #     padq[R, Q, (u*2+v)*cin + c] == U_pad[2R+u, 2Q+v, c]
    # where U_pad is the zero-padded (2H+2, 2W+2, cin) upsampled image.  The
    # interleave is therefore expressed with plain contiguous slice stores.
    for a in range(2):
        for b in range(2):
            t = (a * 2 + b) * cin
            y = jnp.dot(h, wup_ref[:, t:t + cin], preferred_element_type=f32)
            y = y * sup_ref[:, t:t + cin] + bup_ref[:, t:t + cin]
            sub = ((1 - a) * 2 + (1 - b)) * cin
            padq[a:a + H, b:b + W, sub:sub + cin] = y.reshape(H, W, cin)

    # conv6 + BN on the (2H, 2W) upsampled image, computed in packed-quad form:
    # one (H*W, 16*cin) @ (16*cin, 4*cout) matmul yields all four output
    # sub-pixels per coarse pixel; output columns are ordered (a', b', cout).
    for p in range(2):
        for q in range(2):
            c0 = (p * 2 + q) * 4 * cin
            slab_q[:, :, c0:c0 + 4 * cin] = padq[p:p + H, q:q + W, :]
    slab = slab_q[...].reshape(H * W, 16 * cin)
    y = jnp.dot(slab, w6_ref[...], preferred_element_type=f32)
    y = y * s6_ref[...] + b6_ref[...]
    o_ref[0] = y.reshape(H, W, 4 * cout).astype(o_ref.dtype)


# --------------------------------------------------------------------------
# Wrapper
# --------------------------------------------------------------------------
def _conv3x3_to_quad(w_hwio):
    """3x3 HWIO conv weight -> (16*cin, 4*cout) 'packed quad' matrix.

    Row index (p, q, u, v, c) addresses the 2x2 window of packed-quad pixels
    around a coarse output pixel; column index (a, b, co) is the output
    sub-pixel class and channel.  Entry = W6[2p+u-a, 2q+v-b, c, co] when the
    tap is inside the 3x3 kernel, else 0 (zero-padding trades a few extra
    MACs for a single large, layout-regular matmul)."""
    cin, cout = w_hwio.shape[2], w_hwio.shape[3]
    wq = jnp.zeros((2, 2, 2, 2, cin, 2, 2, cout), w_hwio.dtype)
    for p in range(2):
        for q in range(2):
            for u in range(2):
                for v in range(2):
                    for a in range(2):
                        for b in range(2):
                            kh = 2 * p + u - a
                            kw = 2 * q + v - b
                            if 0 <= kh <= 2 and 0 <= kw <= 2:
                                wq = wq.at[p, q, u, v, :, a, b, :].set(
                                    w_hwio[kh, kw])
    return wq.reshape(16 * cin, 4 * cout)


@jax.jit
def resdiv_forward(x_nchw, p):
    x = jnp.transpose(x_nchw, (0, 2, 3, 1))             # NCHW -> NHWC
    N, H, W, cin = x.shape
    cout = p["s6"].shape[0]

    # Kernel-form weights (2-D, matching the in-kernel slab column order).
    w1 = p["w1"].reshape(9 * cin, cin)
    w3 = p["w3"].reshape(9 * cin, cin)
    w4 = p["w4"].reshape(9 * cin, cin)
    w6q = _conv3x3_to_quad(p["w6"])                      # (16*cin, 4*cout)
    s6q = jnp.tile(p["s6"], 4).reshape(1, -1)
    b6q = jnp.tile(p["b6"], 4).reshape(1, -1)

    kern = functools.partial(_resdiv_fused_kernel, H=H, W=W, cin=cin, cout=cout)

    def full(shape):
        return pl.BlockSpec(shape, lambda n, _s=len(shape): (0,) * _s)

    out = pl.pallas_call(
        kern,
        out_shape=jax.ShapeDtypeStruct((N, H, W, 4 * cout), x.dtype),
        grid=(N,),
        in_specs=[
            pl.BlockSpec((1, H, W, cin), lambda n: (n, 0, 0, 0)),
            full((9 * cin, cin)), full((1, cin)), full((1, cin)),
            full((9 * cin, cin)), full((1, cin)), full((1, cin)),
            full((9 * cin, cin)), full((1, cin)), full((1, cin)),
            full((cin, 4 * cin)), full((1, 4 * cin)), full((1, 4 * cin)),
            full((16 * cin, 4 * cout)), full((1, 4 * cout)), full((1, 4 * cout)),
        ],
        out_specs=pl.BlockSpec((1, H, W, 4 * cout), lambda n: (n, 0, 0, 0)),
        scratch_shapes=[
            pltpu.VMEM((H + 2, W + 2, cin), jnp.float32),      # padded image
            pltpu.VMEM((H, W, 9 * cin), jnp.float32),          # im2col slab (small)
            pltpu.VMEM((H + 1, W + 1, 4 * cin), jnp.float32),  # packed-quad upsampled
            pltpu.VMEM((H, W, 16 * cin), jnp.float32),         # im2col slab (conv6)
        ],
        compiler_params=pltpu.CompilerParams(dimension_semantics=("parallel",)),
    )(x, w1, p["s1"].reshape(1, -1), p["b1"].reshape(1, -1),
      w3, p["s3"].reshape(1, -1), p["b3"].reshape(1, -1),
      w4, p["s4"].reshape(1, -1), p["b4"].reshape(1, -1),
      p["wup"], p["sup4"].reshape(1, -1), p["bup4"].reshape(1, -1),
      w6q, s6q, b6q)

    # (N, H, W, (a, b, cout)) -> NCHW (N, cout, 2H, 2W): one cheap XLA transpose
    # of the final 32 KB output (outside the kernel).
    out = out.reshape(N, H, W, 2, 2, cout)
    out = jnp.transpose(out, (0, 5, 1, 3, 2, 4)).reshape(N, cout, 2 * H, 2 * W)
    return out


# --------------------------------------------------------------------------
# Deterministic parameter construction (synthetic, no checkpoint)
# --------------------------------------------------------------------------
def _bn_fold(key, c):
    k1, k2, k3, k4 = jax.random.split(key, 4)
    gamma = 1.0 + 0.1 * jax.random.normal(k1, (c,), jnp.float32)
    beta = 0.1 * jax.random.normal(k2, (c,), jnp.float32)
    mean = 0.1 * jax.random.normal(k3, (c,), jnp.float32)
    var = 0.5 + jax.random.uniform(k4, (c,), jnp.float32)
    scale = gamma / jnp.sqrt(var + 1e-5)
    bias = beta - mean * scale
    return scale, bias


def _grouped_conv_to_hwio(w_oihw_g, groups, cin):
    # torch Conv2d weight (Cout, Cin//groups, kh, kw) -> dense block-diagonal HWIO.
    cout, cin_g, kh, kw = w_oihw_g.shape
    w_dense = jnp.zeros((cout, cin, kh, kw), w_oihw_g.dtype)
    cout_g = cout // groups
    for g in range(groups):
        w_dense = w_dense.at[g * cout_g:(g + 1) * cout_g,
                             g * cin_g:(g + 1) * cin_g].set(
            w_oihw_g[g * cout_g:(g + 1) * cout_g])
    return jnp.transpose(w_dense, (2, 3, 1, 0))          # (kh, kw, Cin, Cout)


def _grouped_convT_to_packed(w_iohw_g, groups):
    # torch ConvTranspose2d weight (Cin, Cout//groups, 2, 2) ->
    # dense packed (Cin, 4*Cout), columns ordered (a, b, cout).
    cin, cout_g, kh, kw = w_iohw_g.shape
    cout = cout_g * groups
    cin_g = cin // groups
    w_dense = jnp.zeros((cin, cout, kh, kw), w_iohw_g.dtype)
    for g in range(groups):
        w_dense = w_dense.at[g * cin_g:(g + 1) * cin_g,
                             g * cout_g:(g + 1) * cout_g].set(
            w_iohw_g[g * cin_g:(g + 1) * cin_g])
    return jnp.transpose(w_dense, (0, 2, 3, 1)).reshape(cin, kh * kw * cout)


def make_params(key, c_in, c_out):
    ks = jax.random.split(key, 10)
    w1_g = 0.2 * jax.random.normal(ks[0], (c_in, c_in // 2, 3, 3), jnp.float32)
    w3 = 0.2 * jax.random.normal(ks[1], (c_in, c_in, 3, 3), jnp.float32)
    w4_g = 0.2 * jax.random.normal(ks[2], (c_in, c_in // 2, 3, 3), jnp.float32)
    wup_g = 0.2 * jax.random.normal(ks[3], (c_in, c_in // 2, 2, 2), jnp.float32)
    w6 = 0.2 * jax.random.normal(ks[4], (c_out, c_in, 3, 3), jnp.float32)
    s1, b1 = _bn_fold(ks[5], c_in)
    s3, b3 = _bn_fold(ks[6], c_in)
    s4, b4 = _bn_fold(ks[7], c_in)
    sup, bup = _bn_fold(ks[8], c_in)
    s6, b6 = _bn_fold(ks[9], c_out)
    return {
        "w1": _grouped_conv_to_hwio(w1_g, 2, c_in), "s1": s1, "b1": b1,
        "w3": jnp.transpose(w3, (2, 3, 1, 0)), "s3": s3, "b3": b3,
        "w4": _grouped_conv_to_hwio(w4_g, 2, c_in), "s4": s4, "b4": b4,
        "wup": _grouped_convT_to_packed(wup_g, 2),
        "sup4": jnp.tile(sup, 4), "bup4": jnp.tile(bup, 4),
        "w6": jnp.transpose(w6, (2, 3, 1, 0)), "s6": s6, "b6": b6,
    }


# --------------------------------------------------------------------------
# Pure-JAX reference (same dense weights) for a sanity check
# --------------------------------------------------------------------------
def _ref_conv3x3(x, w_hwio, scale, bias, relu, residual=None):
    y = jax.lax.conv_general_dilated(
        x, w_hwio, window_strides=(1, 1), padding="SAME",
        dimension_numbers=("NHWC", "HWIO", "NHWC"))
    y = y * scale + bias
    if residual is not None:
        y = y + residual
    if relu:
        y = jnp.maximum(y, 0.0)
    return y


def _ref_upconv(x, w_packed, scale4, bias4):
    N, H, W, cin = x.shape
    cout = w_packed.shape[1] // 4
    y = x.reshape(-1, cin) @ w_packed * scale4 + bias4
    y = y.reshape(N, H, W, 2, 2, cout)
    return jnp.transpose(y, (0, 1, 3, 2, 4, 5)).reshape(N, 2 * H, 2 * W, cout)


def resdiv_reference(x_nchw, p):
    x = jnp.transpose(x_nchw, (0, 2, 3, 1))
    identity = x
    h = _ref_conv3x3(x, p["w1"], p["s1"], p["b1"], relu=True)
    h = _ref_conv3x3(h, p["w3"], p["s3"], p["b3"], relu=True, residual=identity)
    h = _ref_conv3x3(h, p["w4"], p["s4"], p["b4"], relu=True)
    h = _ref_upconv(h, p["wup"], p["sup4"], p["bup4"])
    h = _ref_conv3x3(h, p["w6"], p["s6"], p["b6"], relu=False)
    return jnp.transpose(h, (0, 3, 1, 2))


# --------------------------------------------------------------------------
if __name__ == "__main__":
    N, C_IN, C_OUT, H, W = 2, 4, 8, 8, 8
    key = jax.random.PRNGKey(0)
    kx, kp = jax.random.split(key)
    x = jax.random.normal(kx, (N, C_IN, H, W), jnp.float32)   # NCHW, like torch
    params = make_params(kp, C_IN, C_OUT)

    out = jax.block_until_ready(resdiv_forward(x, params))
    ref = jax.block_until_ready(resdiv_reference(x, params))

    assert out.shape == (N, C_OUT, 2 * H, 2 * W), out.shape
    max_err = float(jnp.max(jnp.abs(out - ref)))
    assert max_err < 5e-2, f"mismatch: max abs err {max_err}"
    print("KERNEL_OK")
</pallas_src>

<mosaic_0001>
module attributes {stable_mosaic.version = 11 : i64} {
  func.func @_resdiv_fused_kernel(%arg0: i32, %arg1: memref<1x8x8x4xf32, #tpu.memory_space<vmem>>, %arg2: memref<36x4xf32, #tpu.memory_space<vmem>>, %arg3: memref<1x4xf32, #tpu.memory_space<vmem>>, %arg4: memref<1x4xf32, #tpu.memory_space<vmem>>, %arg5: memref<36x4xf32, #tpu.memory_space<vmem>>, %arg6: memref<1x4xf32, #tpu.memory_space<vmem>>, %arg7: memref<1x4xf32, #tpu.memory_space<vmem>>, %arg8: memref<36x4xf32, #tpu.memory_space<vmem>>, %arg9: memref<1x4xf32, #tpu.memory_space<vmem>>, %arg10: memref<1x4xf32, #tpu.memory_space<vmem>>, %arg11: memref<4x16xf32, #tpu.memory_space<vmem>>, %arg12: memref<1x16xf32, #tpu.memory_space<vmem>>, %arg13: memref<1x16xf32, #tpu.memory_space<vmem>>, %arg14: memref<64x32xf32, #tpu.memory_space<vmem>>, %arg15: memref<1x32xf32, #tpu.memory_space<vmem>>, %arg16: memref<1x32xf32, #tpu.memory_space<vmem>>, %arg17: memref<1x8x8x32xf32, #tpu.memory_space<vmem>>, %arg18: memref<10x10x4xf32, #tpu.memory_space<vmem>>, %arg19: memref<8x8x36xf32, #tpu.memory_space<vmem>>, %arg20: memref<9x9x16xf32, #tpu.memory_space<vmem>>, %arg21: memref<8x8x64xf32, #tpu.memory_space<vmem>>) attributes {dimension_semantics = [#tpu.dimension_semantics<parallel>], iteration_bounds = array<i64: 2>, scalar_prefetch = 0 : i64, scratch_operands = 4 : i64, tpu.core_type = #tpu.core_type<tc>, window_params = [{transform_indices = @transform_0, window_bounds = array<i64: 1, 8, 8, 4>}, {pipeline_mode = #tpu.pipeline_mode<synchronous>, transform_indices = @transform_1, window_bounds = array<i64: 36, 4>}, {pipeline_mode = #tpu.pipeline_mode<synchronous>, transform_indices = @transform_2, window_bounds = array<i64: 1, 4>}, {pipeline_mode = #tpu.pipeline_mode<synchronous>, transform_indices = @transform_3, window_bounds = array<i64: 1, 4>}, {pipeline_mode = #tpu.pipeline_mode<synchronous>, transform_indices = @transform_4, window_bounds = array<i64: 36, 4>}, {pipeline_mode = #tpu.pipeline_mode<synchronous>, transform_indices = @transform_5, window_bounds = array<i64: 1, 4>}, {pipeline_mode = #tpu.pipeline_mode<synchronous>, transform_indices = @transform_6, window_bounds = array<i64: 1, 4>}, {pipeline_mode = #tpu.pipeline_mode<synchronous>, transform_indices = @transform_7, window_bounds = array<i64: 36, 4>}, {pipeline_mode = #tpu.pipeline_mode<synchronous>, transform_indices = @transform_8, window_bounds = array<i64: 1, 4>}, {pipeline_mode = #tpu.pipeline_mode<synchronous>, transform_indices = @transform_9, window_bounds = array<i64: 1, 4>}, {pipeline_mode = #tpu.pipeline_mode<synchronous>, transform_indices = @transform_10, window_bounds = array<i64: 4, 16>}, {pipeline_mode = #tpu.pipeline_mode<synchronous>, transform_indices = @transform_11, window_bounds = array<i64: 1, 16>}, {pipeline_mode = #tpu.pipeline_mode<synchronous>, transform_indices = @transform_12, window_bounds = array<i64: 1, 16>}, {pipeline_mode = #tpu.pipeline_mode<synchronous>, transform_indices = @transform_13, window_bounds = array<i64: 64, 32>}, {pipeline_mode = #tpu.pipeline_mode<synchronous>, transform_indices = @transform_14, window_bounds = array<i64: 1, 32>}, {pipeline_mode = #tpu.pipeline_mode<synchronous>, transform_indices = @transform_15, window_bounds = array<i64: 1, 32>}, {transform_indices = @transform_16, window_bounds = array<i64: 1, 8, 8, 32>}]} {
    %cst = arith.constant 0.000000e+00 : f32
    %0 = vector.broadcast %cst : f32 to vector<10x10x4xf32>
    %c0 = arith.constant 0 : index
    %c0_0 = arith.constant 0 : index
    %c0_1 = arith.constant 0 : index
    %1 = vector.load %arg18[%c0, %c0_0, %c0_1] : memref<10x10x4xf32, #tpu.memory_space<vmem>>, vector<10x10x4xf32>
    tpu.vector_store %arg18[%c0, %c0_0, %c0_1], %0 {strides = array<i32>} : memref<10x10x4xf32, #tpu.memory_space<vmem>>, vector<10x10x4xf32>,
    %cst_2 = arith.constant 0.000000e+00 : f32
    %2 = vector.broadcast %cst_2 : f32 to vector<9x9x16xf32>
    %c0_3 = arith.constant 0 : index
    %c0_4 = arith.constant 0 : index
    %c0_5 = arith.constant 0 : index
    %3 = vector.load %arg20[%c0_3, %c0_4, %c0_5] : memref<9x9x16xf32, #tpu.memory_space<vmem>>, vector<9x9x16xf32>
    tpu.vector_store %arg20[%c0_3, %c0_4, %c0_5], %2 {strides = array<i32>} : memref<9x9x16xf32, #tpu.memory_space<vmem>>, vector<9x9x16xf32>,
    %c0_6 = arith.constant 0 : index
    %c0_7 = arith.constant 0 : index
    %c0_8 = arith.constant 0 : index
    %c0_9 = arith.constant 0 : index
    %4 = vector.load %arg1[%c0_6, %c0_7, %c0_8, %c0_9] : memref<1x8x8x4xf32, #tpu.memory_space<vmem>>, vector<1x8x8x4xf32>
    %5 = vector.shape_cast %4 : vector<1x8x8x4xf32> to vector<8x8x4xf32>
    %6 = vector.shape_cast %5 : vector<8x8x4xf32> to vector<64x4xf32>
    %c1 = arith.constant 1 : index
    %c1_10 = arith.constant 1 : index
    %c0_11 = arith.constant 0 : index
    %7 = vector.load %arg18[%c1, %c1_10, %c0_11] : memref<10x10x4xf32, #tpu.memory_space<vmem>>, vector<8x8x4xf32>
    tpu.vector_store %arg18[%c1, %c1_10, %c0_11], %5 {strides = array<i32>} : memref<10x10x4xf32, #tpu.memory_space<vmem>>, vector<8x8x4xf32>,
    %c0_12 = arith.constant 0 : index
    %c0_13 = arith.constant 0 : index
    %8 = vector.load %arg3[%c0_12, %c0_13] : memref<1x4xf32, #tpu.memory_space<vmem>>, vector<1x4xf32>
    %c0_14 = arith.constant 0 : index
    %c0_15 = arith.constant 0 : index
    %9 = vector.load %arg4[%c0_14, %c0_15] : memref<1x4xf32, #tpu.memory_space<vmem>>, vector<1x4xf32>
    %c0_16 = arith.constant 0 : index
    %c0_17 = arith.constant 0 : index
    %c0_18 = arith.constant 0 : index
    %10 = vector.load %arg18[%c0_16, %c0_17, %c0_18] : memref<10x10x4xf32, #tpu.memory_space<vmem>>, vector<8x8x4xf32>
    %c0_19 = arith.constant 0 : index
    %c0_20 = arith.constant 0 : index
    %c0_21 = arith.constant 0 : index
    %11 = vector.load %arg19[%c0_19, %c0_20, %c0_21] : memref<8x8x36xf32, #tpu.memory_space<vmem>>, vector<8x8x4xf32>
    tpu.vector_store %arg19[%c0_19, %c0_20, %c0_21], %10 {strides = array<i32>} : memref<8x8x36xf32, #tpu.memory_space<vmem>>, vector<8x8x4xf32>,
    %c0_22 = arith.constant 0 : index
    %c1_23 = arith.constant 1 : index
    %c0_24 = arith.constant 0 : index
    %12 = vector.load %arg18[%c0_22, %c1_23, %c0_24] : memref<10x10x4xf32, #tpu.memory_space<vmem>>, vector<8x8x4xf32>
    %c0_25 = arith.constant 0 : index
    %c0_26 = arith.constant 0 : index
    %c4 = arith.constant 4 : index
    %13 = vector.load %arg19[%c0_25, %c0_26, %c4] : memref<8x8x36xf32, #tpu.memory_space<vmem>>, vector<8x8x4xf32>
    tpu.vector_store %arg19[%c0_25, %c0_26, %c4], %12 {strides = array<i32>} : memref<8x8x36xf32, #tpu.memory_space<vmem>>, vector<8x8x4xf32>,
    %c0_27 = arith.constant 0 : index
    %c2 = arith.constant 2 : index
    %c0_28 = arith.constant 0 : index
    %14 = vector.load %arg18[%c0_27, %c2, %c0_28] : memref<10x10x4xf32, #tpu.memory_space<vmem>>, vector<8x8x4xf32>
    %c0_29 = arith.constant 0 : index
    %c0_30 = arith.constant 0 : index
    %c8 = arith.constant 8 : index
    %15 = vector.load %arg19[%c0_29, %c0_30, %c8] : memref<8x8x36xf32, #tpu.memory_space<vmem>>, vector<8x8x4xf32>
    tpu.vector_store %arg19[%c0_29, %c0_30, %c8], %14 {strides = array<i32>} : memref<8x8x36xf32, #tpu.memory_space<vmem>>, vector<8x8x4xf32>,
    %c1_31 = arith.constant 1 : index
    %c0_32 = arith.constant 0 : index
    %c0_33 = arith.constant 0 : index
    %16 = vector.load %arg18[%c1_31, %c0_32, %c0_33] : memref<10x10x4xf32, #tpu.memory_space<vmem>>, vector<8x8x4xf32>
    %c0_34 = arith.constant 0 : index
    %c0_35 = arith.constant 0 : index
    %c12 = arith.constant 12 : index
    %17 = vector.load %arg19[%c0_34, %c0_35, %c12] : memref<8x8x36xf32, #tpu.memory_space<vmem>>, vector<8x8x4xf32>
    tpu.vector_store %arg19[%c0_34, %c0_35, %c12], %16 {strides = array<i32>} : memref<8x8x36xf32, #tpu.memory_space<vmem>>, vector<8x8x4xf32>,
    %c1_36 = arith.constant 1 : index
    %c1_37 = arith.constant 1 : index
    %c0_38 = arith.constant 0 : index
    %18 = vector.load %arg18[%c1_36, %c1_37, %c0_38] : memref<10x10x4xf32, #tpu.memory_space<vmem>>, vector<8x8x4xf32>
    %c0_39 = arith.constant 0 : index
    %c0_40 = arith.constant 0 : index
    %c16 = arith.constant 16 : index
    %19 = vector.load %arg19[%c0_39, %c0_40, %c16] : memref<8x8x36xf32, #tpu.memory_space<vmem>>, vector<8x8x4xf32>
    tpu.vector_store %arg19[%c0_39, %c0_40, %c16], %18 {strides = array<i32>} : memref<8x8x36xf32, #tpu.memory_space<vmem>>, vector<8x8x4xf32>,
    %c1_41 = arith.constant 1 : index
    %c2_42 = arith.constant 2 : index
    %c0_43 = arith.constant 0 : index
    %20 = vector.load %arg18[%c1_41, %c2_42, %c0_43] : memref<10x10x4xf32, #tpu.memory_space<vmem>>, vector<8x8x4xf32>
    %c0_44 = arith.constant 0 : index
    %c0_45 = arith.constant 0 : index
    %c20 = arith.constant 20 : index
    %21 = vector.load %arg19[%c0_44, %c0_45, %c20] : memref<8x8x36xf32, #tpu.memory_space<vmem>>, vector<8x8x4xf32>
    tpu.vector_store %arg19[%c0_44, %c0_45, %c20], %20 {strides = array<i32>} : memref<8x8x36xf32, #tpu.memory_space<vmem>>, vector<8x8x4xf32>,
    %c2_46 = arith.constant 2 : index
    %c0_47 = arith.constant 0 : index
    %c0_48 = arith.constant 0 : index
    %22 = vector.load %arg18[%c2_46, %c0_47, %c0_48] : memref<10x10x4xf32, #tpu.memory_space<vmem>>, vector<8x8x4xf32>
    %c0_49 = arith.constant 0 : index
    %c0_50 = arith.constant 0 : index
    %c24 = arith.constant 24 : index
    %23 = vector.load %arg19[%c0_49, %c0_50, %c24] : memref<8x8x36xf32, #tpu.memory_space<vmem>>, vector<8x8x4xf32>
    tpu.vector_store %arg19[%c0_49, %c0_50, %c24], %22 {strides = array<i32>} : memref<8x8x36xf32, #tpu.memory_space<vmem>>, vector<8x8x4xf32>,
    %c2_51 = arith.constant 2 : index
    %c1_52 = arith.constant 1 : index
    %c0_53 = arith.constant 0 : index
    %24 = vector.load %arg18[%c2_51, %c1_52, %c0_53] : memref<10x10x4xf32, #tpu.memory_space<vmem>>, vector<8x8x4xf32>
    %c0_54 = arith.constant 0 : index
    %c0_55 = arith.constant 0 : index
    %c28 = arith.constant 28 : index
    %25 = vector.load %arg19[%c0_54, %c0_55, %c28] : memref<8x8x36xf32, #tpu.memory_space<vmem>>, vector<8x8x4xf32>
    tpu.vector_store %arg19[%c0_54, %c0_55, %c28], %24 {strides = array<i32>} : memref<8x8x36xf32, #tpu.memory_space<vmem>>, vector<8x8x4xf32>,
    %c2_56 = arith.constant 2 : index
    %c2_57 = arith.constant 2 : index
    %c0_58 = arith.constant 0 : index
    %26 = vector.load %arg18[%c2_56, %c2_57, %c0_58] : memref<10x10x4xf32, #tpu.memory_space<vmem>>, vector<8x8x4xf32>
    %c0_59 = arith.constant 0 : index
    %c0_60 = arith.constant 0 : index
    %c32 = arith.constant 32 : index
    %27 = vector.load %arg19[%c0_59, %c0_60, %c32] : memref<8x8x36xf32, #tpu.memory_space<vmem>>, vector<8x8x4xf32>
    tpu.vector_store %arg19[%c0_59, %c0_60, %c32], %26 {strides = array<i32>} : memref<8x8x36xf32, #tpu.memory_space<vmem>>, vector<8x8x4xf32>,
    %c0_61 = arith.constant 0 : index
    %c0_62 = arith.constant 0 : index
    %c0_63 = arith.constant 0 : index
    %28 = vector.load %arg19[%c0_61, %c0_62, %c0_63] : memref<8x8x36xf32, #tpu.memory_space<vmem>>, vector<8x8x36xf32>
    %29 = vector.shape_cast %28 : vector<8x8x36xf32> to vector<64x36xf32>
    %c0_64 = arith.constant 0 : index
    %c0_65 = arith.constant 0 : index
    %30 = vector.load %arg2[%c0_64, %c0_65] : memref<36x4xf32, #tpu.memory_space<vmem>>, vector<36x4xf32>
    %cst_66 = arith.constant dense<0.000000e+00> : vector<64x4xf32>
    %31 = tpu.matmul %29, %30, %cst_66 {dimension_numbers = #tpu.dot_dimension_numbers<[1], [0], [0], [1], [0, 0, 1, 1], [], []>} : vector<64x36xf32>, vector<36x4xf32>, vector<64x4xf32> -> vector<64x4xf32>
    %32 = vector.broadcast %8 : vector<1x4xf32> to vector<64x4xf32>
    %33 = arith.mulf %31, %32 : vector<64x4xf32>
    %34 = vector.broadcast %9 : vector<1x4xf32> to vector<64x4xf32>
    %35 = arith.addf %33, %34 : vector<64x4xf32>
    %cst_67 = arith.constant 0.000000e+00 : f32
    %36 = vector.broadcast %cst_67 : f32 to vector<64x4xf32>
    %37 = arith.maximumf %35, %36 : vector<64x4xf32>
    %38 = vector.shape_cast %37 : vector<64x4xf32> to vector<8x8x4xf32>
    %c1_68 = arith.constant 1 : index
    %c1_69 = arith.constant 1 : index
    %c0_70 = arith.constant 0 : index
    %39 = vector.load %arg18[%c1_68, %c1_69, %c0_70] : memref<10x10x4xf32, #tpu.memory_space<vmem>>, vector<8x8x4xf32>
    tpu.vector_store %arg18[%c1_68, %c1_69, %c0_70], %38 {strides = array<i32>} : memref<10x10x4xf32, #tpu.memory_space<vmem>>, vector<8x8x4xf32>,
    %c0_71 = arith.constant 0 : index
    %c0_72 = arith.constant 0 : index
    %40 = vector.load %arg6[%c0_71, %c0_72] : memref<1x4xf32, #tpu.memory_space<vmem>>, vector<1x4xf32>
    %c0_73 = arith.constant 0 : index
    %c0_74 = arith.constant 0 : index
    %41 = vector.load %arg7[%c0_73, %c0_74] : memref<1x4xf32, #tpu.memory_space<vmem>>, vector<1x4xf32>
    %c0_75 = arith.constant 0 : index
    %c0_76 = arith.constant 0 : index
    %c0_77 = arith.constant 0 : index
    %42 = vector.load %arg18[%c0_75, %c0_76, %c0_77] : memref<10x10x4xf32, #tpu.memory_space<vmem>>, vector<8x8x4xf32>
    %c0_78 = arith.constant 0 : index
    %c0_79 = arith.constant 0 : index
    %c0_80 = arith.constant 0 : index
    %43 = vector.load %arg19[%c0_78, %c0_79, %c0_80] : memref<8x8x36xf32, #tpu.memory_space<vmem>>, vector<8x8x4xf32>
    tpu.vector_store %arg19[%c0_78, %c0_79, %c0_80], %42 {strides = array<i32>} : memref<8x8x36xf32, #tpu.memory_space<vmem>>, vector<8x8x4xf32>,
    %c0_81 = arith.constant 0 : index
    %c1_82 = arith.constant 1 : index
    %c0_83 = arith.constant 0 : index
    %44 = vector.load %arg18[%c0_81, %c1_82, %c0_83] : memref<10x10x4xf32, #tpu.memory_space<vmem>>, vector<8x8x4xf32>
    %c0_84 = arith.constant 0 : index
    %c0_85 = arith.constant 0 : index
    %c4_86 = arith.constant 4 : index
    %45 = vector.load %arg19[%c0_84, %c0_85, %c4_86] : memref<8x8x36xf32, #tpu.memory_space<vmem>>, vector<8x8x4xf32>
    tpu.vector_store %arg19[%c0_84, %c0_85, %c4_86], %44 {strides = array<i32>} : memref<8x8x36xf32, #tpu.memory_space<vmem>>, vector<8x8x4xf32>,
    %c0_87 = arith.constant 0 : index
    %c2_88 = arith.constant 2 : index
    %c0_89 = arith.constant 0 : index
    %46 = vector.load %arg18[%c0_87, %c2_88, %c0_89] : memref<10x10x4xf32, #tpu.memory_space<vmem>>, vector<8x8x4xf32>
    %c0_90 = arith.constant 0 : index
    %c0_91 = arith.constant 0 : index
    %c8_92 = arith.constant 8 : index
    %47 = vector.load %arg19[%c0_90, %c0_91, %c8_92] : memref<8x8x36xf32, #tpu.memory_space<vmem>>, vector<8x8x4xf32>
    tpu.vector_store %arg19[%c0_90, %c0_91, %c8_92], %46 {strides = array<i32>} : memref<8x8x36xf32, #tpu.memory_space<vmem>>, vector<8x8x4xf32>,
    %c1_93 = arith.constant 1 : index
    %c0_94 = arith.constant 0 : index
    %c0_95 = arith.constant 0 : index
    %48 = vector.load %arg18[%c1_93, %c0_94, %c0_95] : memref<10x10x4xf32, #tpu.memory_space<vmem>>, vector<8x8x4xf32>
    %c0_96 = arith.constant 0 : index
    %c0_97 = arith.constant 0 : index
    %c12_98 = arith.constant 12 : index
    %49 = vector.load %arg19[%c0_96, %c0_97, %c12_98] : memref<8x8x36xf32, #tpu.memory_space<vmem>>, vector<8x8x4xf32>
    tpu.vector_store %arg19[%c0_96, %c0_97, %c12_98], %48 {strides = array<i32>} : memref<8x8x36xf32, #tpu.memory_space<vmem>>, vector<8x8x4xf32>,
    %c1_99 = arith.constant 1 : index
    %c1_100 = arith.constant 1 : index
    %c0_101 = arith.constant 0 : index
    %50 = vector.load %arg18[%c1_99, %c1_100, %c0_101] : memref<10x10x4xf32, #tpu.memory_space<vmem>>, vector<8x8x4xf32>
    %c0_102 = arith.constant 0 : index
    %c0_103 = arith.constant 0 : index
    %c16_104 = arith.constant 16 : index
    %51 = vector.load %arg19[%c0_102, %c0_103, %c16_104] : memref<8x8x36xf32, #tpu.memory_space<vmem>>, vector<8x8x4xf32>
    tpu.vector_store %arg19[%c0_102, %c0_103, %c16_104], %50 {strides = array<i32>} : memref<8x8x36xf32, #tpu.memory_space<vmem>>, vector<8x8x4xf32>,
    %c1_105 = arith.constant 1 : index
    %c2_106 = arith.constant 2 : index
    %c0_107 = arith.constant 0 : index
    %52 = vector.load %arg18[%c1_105, %c2_106, %c0_107] : memref<10x10x4xf32, #tpu.memory_space<vmem>>, vector<8x8x4xf32>
    %c0_108 = arith.constant 0 : index
    %c0_109 = arith.constant 0 : index
    %c20_110 = arith.constant 20 : index
    %53 = vector.load %arg19[%c0_108, %c0_109, %c20_110] : memref<8x8x36xf32, #tpu.memory_space<vmem>>, vector<8x8x4xf32>
    tpu.vector_store %arg19[%c0_108, %c0_109, %c20_110], %52 {strides = array<i32>} : memref<8x8x36xf32, #tpu.memory_space<vmem>>, vector<8x8x4xf32>,
    %c2_111 = arith.constant 2 : index
    %c0_112 = arith.constant 0 : index
    %c0_113 = arith.constant 0 : index
    %54 = vector.load %arg18[%c2_111, %c0_112, %c0_113] : memref<10x10x4xf32, #tpu.memory_space<vmem>>, vector<8x8x4xf32>
    %c0_114 = arith.constant 0 : index
    %c0_115 = arith.constant 0 : index
    %c24_116 = arith.constant 24 : index
    %55 = vector.load %arg19[%c0_114, %c0_115, %c24_116] : memref<8x8x36xf32, #tpu.memory_space<vmem>>, vector<8x8x4xf32>
    tpu.vector_store %arg19[%c0_114, %c0_115, %c24_116], %54 {strides = array<i32>} : memref<8x8x36xf32, #tpu.memory_space<vmem>>, vector<8x8x4xf32>,
    %c2_117 = arith.constant 2 : index
    %c1_118 = arith.constant 1 : index
    %c0_119 = arith.constant 0 : index
    %56 = vector.load %arg18[%c2_117, %c1_118, %c0_119] : memref<10x10x4xf32, #tpu.memory_space<vmem>>, vector<8x8x4xf32>
    %c0_120 = arith.constant 0 : index
    %c0_121 = arith.constant 0 : index
    %c28_122 = arith.constant 28 : index
    %57 = vector.load %arg19[%c0_120, %c0_121, %c28_122] : memref<8x8x36xf32, #tpu.memory_space<vmem>>, vector<8x8x4xf32>
    tpu.vector_store %arg19[%c0_120, %c0_121, %c28_122], %56 {strides = array<i32>} : memref<8x8x36xf32, #tpu.memory_space<vmem>>, vector<8x8x4xf32>,
    %c2_123 = arith.constant 2 : index
    %c2_124 = arith.constant 2 : index
    %c0_125 = arith.constant 0 : index
    %58 = vector.load %arg18[%c2_123, %c2_124, %c0_125] : memref<10x10x4xf32, #tpu.memory_space<vmem>>, vector<8x8x4xf32>
    %c0_126 = arith.constant 0 : index
    %c0_127 = arith.constant 0 : index
    %c32_128 = arith.constant 32 : index
    %59 = vector.load %arg19[%c0_126, %c0_127, %c32_128] : memref<8x8x36xf32, #tpu.memory_space<vmem>>, vector<8x8x4xf32>
    tpu.vector_store %arg19[%c0_126, %c0_127, %c32_128], %58 {strides = array<i32>} : memref<8x8x36xf32, #tpu.memory_space<vmem>>, vector<8x8x4xf32>,
    %c0_129 = arith.constant 0 : index
    %c0_130 = arith.constant 0 : index
    %c0_131 = arith.constant 0 : index
    %60 = vector.load %arg19[%c0_129, %c0_130, %c0_131] : memref<8x8x36xf32, #tpu.memory_space<vmem>>, vector<8x8x36xf32>
    %61 = vector.shape_cast %60 : vector<8x8x36xf32> to vector<64x36xf32>
    %c0_132 = arith.constant 0 : index
    %c0_133 = arith.constant 0 : index
    %62 = vector.load %arg5[%c0_132, %c0_133] : memref<36x4xf32, #tpu.memory_space<vmem>>, vector<36x4xf32>
    %cst_134 = arith.constant dense<0.000000e+00> : vector<64x4xf32>
    %63 = tpu.matmul %61, %62, %cst_134 {dimension_numbers = #tpu.dot_dimension_numbers<[1], [0], [0], [1], [0, 0, 1, 1], [], []>} : vector<64x36xf32>, vector<36x4xf32>, vector<64x4xf32> -> vector<64x4xf32>
    %64 = vector.broadcast %40 : vector<1x4xf32> to vector<64x4xf32>
    %65 = arith.mulf %63, %64 : vector<64x4xf32>
    %66 = vector.broadcast %41 : vector<1x4xf32> to vector<64x4xf32>
    %67 = arith.addf %65, %66 : vector<64x4xf32>
    %68 = arith.addf %67, %6 : vector<64x4xf32>
    %cst_135 = arith.constant 0.000000e+00 : f32
    %69 = vector.broadcast %cst_135 : f32 to vector<64x4xf32>
    %70 = arith.maximumf %68, %69 : vector<64x4xf32>
    %71 = vector.shape_cast %70 : vector<64x4xf32> to vector<8x8x4xf32>
    %c1_136 = arith.constant 1 : index
    %c1_137 = arith.constant 1 : index
    %c0_138 = arith.constant 0 : index
    %72 = vector.load %arg18[%c1_136, %c1_137, %c0_138] : memref<10x10x4xf32, #tpu.memory_space<vmem>>, vector<8x8x4xf32>
    tpu.vector_store %arg18[%c1_136, %c1_137, %c0_138], %71 {strides = array<i32>} : memref<10x10x4xf32, #tpu.memory_space<vmem>>, vector<8x8x4xf32>,
    %c0_139 = arith.constant 0 : index
    %c0_140 = arith.constant 0 : index
    %73 = vector.load %arg9[%c0_139, %c0_140] : memref<1x4xf32, #tpu.memory_space<vmem>>, vector<1x4xf32>
    %c0_141 = arith.constant 0 : index
    %c0_142 = arith.constant 0 : index
    %74 = vector.load %arg10[%c0_141, %c0_142] : memref<1x4xf32, #tpu.memory_space<vmem>>, vector<1x4xf32>
    %c0_143 = arith.constant 0 : index
    %c0_144 = arith.constant 0 : index
    %c0_145 = arith.constant 0 : index
    %75 = vector.load %arg18[%c0_143, %c0_144, %c0_145] : memref<10x10x4xf32, #tpu.memory_space<vmem>>, vector<8x8x4xf32>
    %c0_146 = arith.constant 0 : index
    %c0_147 = arith.constant 0 : index
    %c0_148 = arith.constant 0 : index
    %76 = vector.load %arg19[%c0_146, %c0_147, %c0_148] : memref<8x8x36xf32, #tpu.memory_space<vmem>>, vector<8x8x4xf32>
    tpu.vector_store %arg19[%c0_146, %c0_147, %c0_148], %75 {strides = array<i32>} : memref<8x8x36xf32, #tpu.memory_space<vmem>>, vector<8x8x4xf32>,
    %c0_149 = arith.constant 0 : index
    %c1_150 = arith.constant 1 : index
    %c0_151 = arith.constant 0 : index
    %77 = vector.load %arg18[%c0_149, %c1_150, %c0_151] : memref<10x10x4xf32, #tpu.memory_space<vmem>>, vector<8x8x4xf32>
    %c0_152 = arith.constant 0 : index
    %c0_153 = arith.constant 0 : index
    %c4_154 = arith.constant 4 : index
    %78 = vector.load %arg19[%c0_152, %c0_153, %c4_154] : memref<8x8x36xf32, #tpu.memory_space<vmem>>, vector<8x8x4xf32>
    tpu.vector_store %arg19[%c0_152, %c0_153, %c4_154], %77 {strides = array<i32>} : memref<8x8x36xf32, #tpu.memory_space<vmem>>, vector<8x8x4xf32>,
    %c0_155 = arith.constant 0 : index
    %c2_156 = arith.constant 2 : index
    %c0_157 = arith.constant 0 : index
    %79 = vector.load %arg18[%c0_155, %c2_156, %c0_157] : memref<10x10x4xf32, #tpu.memory_space<vmem>>, vector<8x8x4xf32>
    %c0_158 = arith.constant 0 : index
    %c0_159 = arith.constant 0 : index
    %c8_160 = arith.constant 8 : index
    %80 = vector.load %arg19[%c0_158, %c0_159, %c8_160] : memref<8x8x36xf32, #tpu.memory_space<vmem>>, vector<8x8x4xf32>
    tpu.vector_store %arg19[%c0_158, %c0_159, %c8_160], %79 {strides = array<i32>} : memref<8x8x36xf32, #tpu.memory_space<vmem>>, vector<8x8x4xf32>,
    %c1_161 = arith.constant 1 : index
    %c0_162 = arith.constant 0 : index
    %c0_163 = arith.constant 0 : index
    %81 = vector.load %arg18[%c1_161, %c0_162, %c0_163] : memref<10x10x4xf32, #tpu.memory_space<vmem>>, vector<8x8x4xf32>
    %c0_164 = arith.constant 0 : index
    %c0_165 = arith.constant 0 : index
    %c12_166 = arith.constant 12 : index
    %82 = vector.load %arg19[%c0_164, %c0_165, %c12_166] : memref<8x8x36xf32, #tpu.memory_space<vmem>>, vector<8x8x4xf32>
    tpu.vector_store %arg19[%c0_164, %c0_165, %c12_166], %81 {strides = array<i32>} : memref<8x8x36xf32, #tpu.memory_space<vmem>>, vector<8x8x4xf32>,
    %c1_167 = arith.constant 1 : index
    %c1_168 = arith.constant 1 : index
    %c0_169 = arith.constant 0 : index
    %83 = vector.load %arg18[%c1_167, %c1_168, %c0_169] : memref<10x10x4xf32, #tpu.memory_space<vmem>>, vector<8x8x4xf32>
    %c0_170 = arith.constant 0 : index
    %c0_171 = arith.constant 0 : index
    %c16_172 = arith.constant 16 : index
    %84 = vector.load %arg19[%c0_170, %c0_171, %c16_172] : memref<8x8x36xf32, #tpu.memory_space<vmem>>, vector<8x8x4xf32>
    tpu.vector_store %arg19[%c0_170, %c0_171, %c16_172], %83 {strides = array<i32>} : memref<8x8x36xf32, #tpu.memory_space<vmem>>, vector<8x8x4xf32>,
    %c1_173 = arith.constant 1 : index
    %c2_174 = arith.constant 2 : index
    %c0_175 = arith.constant 0 : index
    %85 = vector.load %arg18[%c1_173, %c2_174, %c0_175] : memref<10x10x4xf32, #tpu.memory_space<vmem>>, vector<8x8x4xf32>
    %c0_176 = arith.constant 0 : index
    %c0_177 = arith.constant 0 : index
    %c20_178 = arith.constant 20 : index
    %86 = vector.load %arg19[%c0_176, %c0_177, %c20_178] : memref<8x8x36xf32, #tpu.memory_space<vmem>>, vector<8x8x4xf32>
    tpu.vector_store %arg19[%c0_176, %c0_177, %c20_178], %85 {strides = array<i32>} : memref<8x8x36xf32, #tpu.memory_space<vmem>>, vector<8x8x4xf32>,
    %c2_179 = arith.constant 2 : index
    %c0_180 = arith.constant 0 : index
    %c0_181 = arith.constant 0 : index
    %87 = vector.load %arg18[%c2_179, %c0_180, %c0_181] : memref<10x10x4xf32, #tpu.memory_space<vmem>>, vector<8x8x4xf32>
    %c0_182 = arith.constant 0 : index
    %c0_183 = arith.constant 0 : index
    %c24_184 = arith.constant 24 : index
    %88 = vector.load %arg19[%c0_182, %c0_183, %c24_184] : memref<8x8x36xf32, #tpu.memory_space<vmem>>, vector<8x8x4xf32>
    tpu.vector_store %arg19[%c0_182, %c0_183, %c24_184], %87 {strides = array<i32>} : memref<8x8x36xf32, #tpu.memory_space<vmem>>, vector<8x8x4xf32>,
    %c2_185 = arith.constant 2 : index
    %c1_186 = arith.constant 1 : index
    %c0_187 = arith.constant 0 : index
    %89 = vector.load %arg18[%c2_185, %c1_186, %c0_187] : memref<10x10x4xf32, #tpu.memory_space<vmem>>, vector<8x8x4xf32>
    %c0_188 = arith.constant 0 : index
    %c0_189 = arith.constant 0 : index
    %c28_190 = arith.constant 28 : index
    %90 = vector.load %arg19[%c0_188, %c0_189, %c28_190] : memref<8x8x36xf32, #tpu.memory_space<vmem>>, vector<8x8x4xf32>
    tpu.vector_store %arg19[%c0_188, %c0_189, %c28_190], %89 {strides = array<i32>} : memref<8x8x36xf32, #tpu.memory_space<vmem>>, vector<8x8x4xf32>,
    %c2_191 = arith.constant 2 : index
    %c2_192 = arith.constant 2 : index
    %c0_193 = arith.constant 0 : index
    %91 = vector.load %arg18[%c2_191, %c2_192, %c0_193] : memref<10x10x4xf32, #tpu.memory_space<vmem>>, vector<8x8x4xf32>
    %c0_194 = arith.constant 0 : index
    %c0_195 = arith.constant 0 : index
    %c32_196 = arith.constant 32 : index
    %92 = vector.load %arg19[%c0_194, %c0_195, %c32_196] : memref<8x8x36xf32, #tpu.memory_space<vmem>>, vector<8x8x4xf32>
    tpu.vector_store %arg19[%c0_194, %c0_195, %c32_196], %91 {strides = array<i32>} : memref<8x8x36xf32, #tpu.memory_space<vmem>>, vector<8x8x4xf32>,
    %c0_197 = arith.constant 0 : index
    %c0_198 = arith.constant 0 : index
    %c0_199 = arith.constant 0 : index
    %93 = vector.load %arg19[%c0_197, %c0_198, %c0_199] : memref<8x8x36xf32, #tpu.memory_space<vmem>>, vector<8x8x36xf32>
    %94 = vector.shape_cast %93 : vector<8x8x36xf32> to vector<64x36xf32>
    %c0_200 = arith.constant 0 : index
    %c0_201 = arith.constant 0 : index
    %95 = vector.load %arg8[%c0_200, %c0_201] : memref<36x4xf32, #tpu.memory_space<vmem>>, vector<36x4xf32>
    %cst_202 = arith.constant dense<0.000000e+00> : vector<64x4xf32>
    %96 = tpu.matmul %94, %95, %cst_202 {dimension_numbers = #tpu.dot_dimension_numbers<[1], [0], [0], [1], [0, 0, 1, 1], [], []>} : vector<64x36xf32>, vector<36x4xf32>, vector<64x4xf32> -> vector<64x4xf32>
    %97 = vector.broadcast %73 : vector<1x4xf32> to vector<64x4xf32>
    %98 = arith.mulf %96, %97 : vector<64x4xf32>
    %99 = vector.broadcast %74 : vector<1x4xf32> to vector<64x4xf32>
    %100 = arith.addf %98, %99 : vector<64x4xf32>
    %cst_203 = arith.constant 0.000000e+00 : f32
    %101 = vector.broadcast %cst_203 : f32 to vector<64x4xf32>
    %102 = arith.maximumf %100, %101 : vector<64x4xf32>
    %c0_204 = arith.constant 0 : index
    %c0_205 = arith.constant 0 : index
    %103 = vector.load %arg11[%c0_204, %c0_205] : memref<4x16xf32, #tpu.memory_space<vmem>>, vector<4x4xf32>
    %cst_206 = arith.constant dense<0.000000e+00> : vector<64x4xf32>
    %104 = tpu.matmul %102, %103, %cst_206 {dimension_numbers = #tpu.dot_dimension_numbers<[1], [0], [0], [1], [0, 0, 1, 1], [], []>} : vector<64x4xf32>, vector<4x4xf32>, vector<64x4xf32> -> vector<64x4xf32>
    %c0_207 = arith.constant 0 : index
    %c0_208 = arith.constant 0 : index
    %105 = vector.load %arg12[%c0_207, %c0_208] : memref<1x16xf32, #tpu.memory_space<vmem>>, vector<1x4xf32>
    %106 = vector.broadcast %105 : vector<1x4xf32> to vector<64x4xf32>
    %107 = arith.mulf %104, %106 : vector<64x4xf32>
    %c0_209 = arith.constant 0 : index
    %c0_210 = arith.constant 0 : index
    %108 = vector.load %arg13[%c0_209, %c0_210] : memref<1x16xf32, #tpu.memory_space<vmem>>, vector<1x4xf32>
    %109 = vector.broadcast %108 : vector<1x4xf32> to vector<64x4xf32>
    %110 = arith.addf %107, %109 : vector<64x4xf32>
    %111 = vector.shape_cast %110 : vector<64x4xf32> to vector<8x8x4xf32>
    %c0_211 = arith.constant 0 : index
    %c0_212 = arith.constant 0 : index
    %c12_213 = arith.constant 12 : index
    %112 = vector.load %arg20[%c0_211, %c0_212, %c12_213] : memref<9x9x16xf32, #tpu.memory_space<vmem>>, vector<8x8x4xf32>
    tpu.vector_store %arg20[%c0_211, %c0_212, %c12_213], %111 {strides = array<i32>} : memref<9x9x16xf32, #tpu.memory_space<vmem>>, vector<8x8x4xf32>,
    %c0_214 = arith.constant 0 : index
    %c4_215 = arith.constant 4 : index
    %113 = vector.load %arg11[%c0_214, %c4_215] : memref<4x16xf32, #tpu.memory_space<vmem>>, vector<4x4xf32>
    %cst_216 = arith.constant dense<0.000000e+00> : vector<64x4xf32>
    %114 = tpu.matmul %102, %113, %cst_216 {dimension_numbers = #tpu.dot_dimension_numbers<[1], [0], [0], [1], [0, 0, 1, 1], [], []>} : vector<64x4xf32>, vector<4x4xf32>, vector<64x4xf32> -> vector<64x4xf32>
    %c0_217 = arith.constant 0 : index
    %c4_218 = arith.constant 4 : index
    %115 = vector.load %arg12[%c0_217, %c4_218] : memref<1x16xf32, #tpu.memory_space<vmem>>, vector<1x4xf32>
    %116 = vector.broadcast %115 : vector<1x4xf32> to vector<64x4xf32>
    %117 = arith.mulf %114, %116 : vector<64x4xf32>
    %c0_219 = arith.constant 0 : index
    %c4_220 = arith.constant 4 : index
    %118 = vector.load %arg13[%c0_219, %c4_220] : memref<1x16xf32, #tpu.memory_space<vmem>>, vector<1x4xf32>
    %119 = vector.broadcast %118 : vector<1x4xf32> to vector<64x4xf32>
    %120 = arith.addf %117, %119 : vector<64x4xf32>
    %121 = vector.shape_cast %120 : vector<64x4xf32> to vector<8x8x4xf32>
    %c0_221 = arith.constant 0 : index
    %c1_222 = arith.constant 1 : index
    %c8_223 = arith.constant 8 : index
    %122 = vector.load %arg20[%c0_221, %c1_222, %c8_223] : memref<9x9x16xf32, #tpu.memory_space<vmem>>, vector<8x8x4xf32>
    tpu.vector_store %arg20[%c0_221, %c1_222, %c8_223], %121 {strides = array<i32>} : memref<9x9x16xf32, #tpu.memory_space<vmem>>, vector<8x8x4xf32>,
    %c0_224 = arith.constant 0 : index
    %c8_225 = arith.constant 8 : index
    %123 = vector.load %arg11[%c0_224, %c8_225] : memref<4x16xf32, #tpu.memory_space<vmem>>, vector<4x4xf32>
    %cst_226 = arith.constant dense<0.000000e+00> : vector<64x4xf32>
    %124 = tpu.matmul %102, %123, %cst_226 {dimension_numbers = #tpu.dot_dimension_numbers<[1], [0], [0], [1], [0, 0, 1, 1], [], []>} : vector<64x4xf32>, vector<4x4xf32>, vector<64x4xf32> -> vector<64x4xf32>
    %c0_227 = arith.constant 0 : index
    %c8_228 = arith.constant 8 : index
    %125 = vector.load %arg12[%c0_227, %c8_228] : memref<1x16xf32, #tpu.memory_space<vmem>>, vector<1x4xf32>
    %126 = vector.broadcast %125 : vector<1x4xf32> to vector<64x4xf32>
    %127 = arith.mulf %124, %126 : vector<64x4xf32>
    %c0_229 = arith.constant 0 : index
    %c8_230 = arith.constant 8 : index
    %128 = vector.load %arg13[%c0_229, %c8_230] : memref<1x16xf32, #tpu.memory_space<vmem>>, vector<1x4xf32>
    %129 = vector.broadcast %128 : vector<1x4xf32> to vector<64x4xf32>
    %130 = arith.addf %127, %129 : vector<64x4xf32>
    %131 = vector.shape_cast %130 : vector<64x4xf32> to vector<8x8x4xf32>
    %c1_231 = arith.constant 1 : index
    %c0_232 = arith.constant 0 : index
    %c4_233 = arith.constant 4 : index
    %132 = vector.load %arg20[%c1_231, %c0_232, %c4_233] : memref<9x9x16xf32, #tpu.memory_space<vmem>>, vector<8x8x4xf32>
    tpu.vector_store %arg20[%c1_231, %c0_232, %c4_233], %131 {strides = array<i32>} : memref<9x9x16xf32, #tpu.memory_space<vmem>>, vector<8x8x4xf32>,
    %c0_234 = arith.constant 0 : index
    %c12_235 = arith.constant 12 : index
    %133 = vector.load %arg11[%c0_234, %c12_235] : memref<4x16xf32, #tpu.memory_space<vmem>>, vector<4x4xf32>
    %cst_236 = arith.constant dense<0.000000e+00> : vector<64x4xf32>
    %134 = tpu.matmul %102, %133, %cst_236 {dimension_numbers = #tpu.dot_dimension_numbers<[1], [0], [0], [1], [0, 0, 1, 1], [], []>} : vector<64x4xf32>, vector<4x4xf32>, vector<64x4xf32> -> vector<64x4xf32>
    %c0_237 = arith.constant 0 : index
    %c12_238 = arith.constant 12 : index
    %135 = vector.load %arg12[%c0_237, %c12_238] : memref<1x16xf32, #tpu.memory_space<vmem>>, vector<1x4xf32>
    %136 = vector.broadcast %135 : vector<1x4xf32> to vector<64x4xf32>
    %137 = arith.mulf %134, %136 : vector<64x4xf32>
    %c0_239 = arith.constant 0 : index
    %c12_240 = arith.constant 12 : index
    %138 = vector.load %arg13[%c0_239, %c12_240] : memref<1x16xf32, #tpu.memory_space<vmem>>, vector<1x4xf32>
    %139 = vector.broadcast %138 : vector<1x4xf32> to vector<64x4xf32>
    %140 = arith.addf %137, %139 : vector<64x4xf32>
    %141 = vector.shape_cast %140 : vector<64x4xf32> to vector<8x8x4xf32>
    %c1_241 = arith.constant 1 : index
    %c1_242 = arith.constant 1 : index
    %c0_243 = arith.constant 0 : index
    %142 = vector.load %arg20[%c1_241, %c1_242, %c0_243] : memref<9x9x16xf32, #tpu.memory_space<vmem>>, vector<8x8x4xf32>
    tpu.vector_store %arg20[%c1_241, %c1_242, %c0_243], %141 {strides = array<i32>} : memref<9x9x16xf32, #tpu.memory_space<vmem>>, vector<8x8x4xf32>,
    %c0_244 = arith.constant 0 : index
    %c0_245 = arith.constant 0 : index
    %c0_246 = arith.constant 0 : index
    %143 = vector.load %arg20[%c0_244, %c0_245, %c0_246] : memref<9x9x16xf32, #tpu.memory_space<vmem>>, vector<8x8x16xf32>
    %c0_247 = arith.constant 0 : index
    %c0_248 = arith.constant 0 : index
    %c0_249 = arith.constant 0 : index
    %144 = vector.load %arg21[%c0_247, %c0_248, %c0_249] : memref<8x8x64xf32, #tpu.memory_space<vmem>>, vector<8x8x16xf32>
    tpu.vector_store %arg21[%c0_247, %c0_248, %c0_249], %143 {strides = array<i32>} : memref<8x8x64xf32, #tpu.memory_space<vmem>>, vector<8x8x16xf32>,
    %c0_250 = arith.constant 0 : index
    %c1_251 = arith.constant 1 : index
    %c0_252 = arith.constant 0 : index
    %145 = vector.load %arg20[%c0_250, %c1_251, %c0_252] : memref<9x9x16xf32, #tpu.memory_space<vmem>>, vector<8x8x16xf32>
    %c0_253 = arith.constant 0 : index
    %c0_254 = arith.constant 0 : index
    %c16_255 = arith.constant 16 : index
    %146 = vector.load %arg21[%c0_253, %c0_254, %c16_255] : memref<8x8x64xf32, #tpu.memory_space<vmem>>, vector<8x8x16xf32>
    tpu.vector_store %arg21[%c0_253, %c0_254, %c16_255], %145 {strides = array<i32>} : memref<8x8x64xf32, #tpu.memory_space<vmem>>, vector<8x8x16xf32>,
    %c1_256 = arith.constant 1 : index
    %c0_257 = arith.constant 0 : index
    %c0_258 = arith.constant 0 : index
    %147 = vector.load %arg20[%c1_256, %c0_257, %c0_258] : memref<9x9x16xf32, #tpu.memory_space<vmem>>, vector<8x8x16xf32>
    %c0_259 = arith.constant 0 : index
    %c0_260 = arith.constant 0 : index
    %c32_261 = arith.constant 32 : index
    %148 = vector.load %arg21[%c0_259, %c0_260, %c32_261] : memref<8x8x64xf32, #tpu.memory_space<vmem>>, vector<8x8x16xf32>
    tpu.vector_store %arg21[%c0_259, %c0_260, %c32_261], %147 {strides = array<i32>} : memref<8x8x64xf32, #tpu.memory_space<vmem>>, vector<8x8x16xf32>,
    %c1_262 = arith.constant 1 : index
    %c1_263 = arith.constant 1 : index
    %c0_264 = arith.constant 0 : index
    %149 = vector.load %arg20[%c1_262, %c1_263, %c0_264] : memref<9x9x16xf32, #tpu.memory_space<vmem>>, vector<8x8x16xf32>
    %c0_265 = arith.constant 0 : index
    %c0_266 = arith.constant 0 : index
    %c48 = arith.constant 48 : index
    %150 = vector.load %arg21[%c0_265, %c0_266, %c48] : memref<8x8x64xf32, #tpu.memory_space<vmem>>, vector<8x8x16xf32>
    tpu.vector_store %arg21[%c0_265, %c0_266, %c48], %149 {strides = array<i32>} : memref<8x8x64xf32, #tpu.memory_space<vmem>>, vector<8x8x16xf32>,
    %c0_267 = arith.constant 0 : index
    %c0_268 = arith.constant 0 : index
    %c0_269 = arith.constant 0 : index
    %151 = vector.load %arg21[%c0_267, %c0_268, %c0_269] : memref<8x8x64xf32, #tpu.memory_space<vmem>>, vector<8x8x64xf32>
    %152 = vector.shape_cast %151 : vector<8x8x64xf32> to vector<64x64xf32>
    %c0_270 = arith.constant 0 : index
    %c0_271 = arith.constant 0 : index
    %153 = vector.load %arg14[%c0_270, %c0_271] : memref<64x32xf32, #tpu.memory_space<vmem>>, vector<64x32xf32>
    %cst_272 = arith.constant dense<0.000000e+00> : vector<64x32xf32>
    %154 = tpu.matmul %152, %153, %cst_272 {dimension_numbers = #tpu.dot_dimension_numbers<[1], [0], [0], [1], [0, 0, 1, 1], [], []>} : vector<64x64xf32>, vector<64x32xf32>, vector<64x32xf32> -> vector<64x32xf32>
    %c0_273 = arith.constant 0 : index
    %c0_274 = arith.constant 0 : index
    %155 = vector.load %arg15[%c0_273, %c0_274] : memref<1x32xf32, #tpu.memory_space<vmem>>, vector<1x32xf32>
    %156 = vector.broadcast %155 : vector<1x32xf32> to vector<64x32xf32>
    %157 = arith.mulf %154, %156 : vector<64x32xf32>
    %c0_275 = arith.constant 0 : index
    %c0_276 = arith.constant 0 : index
    %158 = vector.load %arg16[%c0_275, %c0_276] : memref<1x32xf32, #tpu.memory_space<vmem>>, vector<1x32xf32>
    %159 = vector.broadcast %158 : vector<1x32xf32> to vector<64x32xf32>
    %160 = arith.addf %157, %159 : vector<64x32xf32>
    %161 = vector.shape_cast %160 : vector<64x32xf32> to vector<8x8x32xf32>
    %c0_277 = arith.constant 0 : index
    %c0_278 = arith.constant 0 : index
    %c0_279 = arith.constant 0 : index
    %c0_280 = arith.constant 0 : index
    %162 = vector.load %arg17[%c0_277, %c0_278, %c0_279, %c0_280] : memref<1x8x8x32xf32, #tpu.memory_space<vmem>>, vector<1x8x8x32xf32>
    %163 = vector.shape_cast %162 : vector<1x8x8x32xf32> to vector<8x8x32xf32>
    %164 = vector.shape_cast %161 : vector<8x8x32xf32> to vector<1x8x8x32xf32>
    tpu.vector_store %arg17[%c0_277, %c0_278, %c0_279, %c0_280], %164 {strides = array<i32>} : memref<1x8x8x32xf32, #tpu.memory_space<vmem>>, vector<1x8x8x32xf32>,
    return
  }
  func.func @transform_0(%arg0: i32) -> (i32, i32, i32, i32) {
    %c0_i32 = arith.constant 0 : i32
    %c0_i32_0 = arith.constant 0 : i32
    %c0_i32_1 = arith.constant 0 : i32
    %c0_i32_2 = arith.constant 0 : i32
    return %arg0, %c0_i32, %c0_i32_0, %c0_i32_1 : i32, i32, i32, i32
  }
  func.func @transform_1(%arg0: i32) -> (i32, i32) {
    %c0_i32 = arith.constant 0 : i32
    %c0_i32_0 = arith.constant 0 : i32
    %c0_i32_1 = arith.constant 0 : i32
    return %c0_i32, %c0_i32_0 : i32, i32
  }
  func.func @transform_2(%arg0: i32) -> (i32, i32) {
    %c0_i32 = arith.constant 0 : i32
    %c0_i32_0 = arith.constant 0 : i32
    %c0_i32_1 = arith.constant 0 : i32
    return %c0_i32, %c0_i32_0 : i32, i32
  }
  func.func @transform_3(%arg0: i32) -> (i32, i32) {
    %c0_i32 = arith.constant 0 : i32
    %c0_i32_0 = arith.constant 0 : i32
    %c0_i32_1 = arith.constant 0 : i32
    return %c0_i32, %c0_i32_0 : i32, i32
  }
  func.func @transform_4(%arg0: i32) -> (i32, i32) {
    %c0_i32 = arith.constant 0 : i32
    %c0_i32_0 = arith.constant 0 : i32
    %c0_i32_1 = arith.constant 0 : i32
    return %c0_i32, %c0_i32_0 : i32, i32
  }
  func.func @transform_5(%arg0: i32) -> (i32, i32) {
    %c0_i32 = arith.constant 0 : i32
    %c0_i32_0 = arith.constant 0 : i32
    %c0_i32_1 = arith.constant 0 : i32
    return %c0_i32, %c0_i32_0 : i32, i32
  }
  func.func @transform_6(%arg0: i32) -> (i32, i32) {
    %c0_i32 = arith.constant 0 : i32
    %c0_i32_0 = arith.constant 0 : i32
    %c0_i32_1 = arith.constant 0 : i32
    return %c0_i32, %c0_i32_0 : i32, i32
  }
  func.func @transform_7(%arg0: i32) -> (i32, i32) {
    %c0_i32 = arith.constant 0 : i32
    %c0_i32_0 = arith.constant 0 : i32
    %c0_i32_1 = arith.constant 0 : i32
    return %c0_i32, %c0_i32_0 : i32, i32
  }
  func.func @transform_8(%arg0: i32) -> (i32, i32) {
    %c0_i32 = arith.constant 0 : i32
    %c0_i32_0 = arith.constant 0 : i32
    %c0_i32_1 = arith.constant 0 : i32
    return %c0_i32, %c0_i32_0 : i32, i32
  }
  func.func @transform_9(%arg0: i32) -> (i32, i32) {
    %c0_i32 = arith.constant 0 : i32
    %c0_i32_0 = arith.constant 0 : i32
    %c0_i32_1 = arith.constant 0 : i32
    return %c0_i32, %c0_i32_0 : i32, i32
  }
  func.func @transform_10(%arg0: i32) -> (i32, i32) {
    %c0_i32 = arith.constant 0 : i32
    %c0_i32_0 = arith.constant 0 : i32
    %c0_i32_1 = arith.constant 0 : i32
    return %c0_i32, %c0_i32_0 : i32, i32
  }
  func.func @transform_11(%arg0: i32) -> (i32, i32) {
    %c0_i32 = arith.constant 0 : i32
    %c0_i32_0 = arith.constant 0 : i32
    %c0_i32_1 = arith.constant 0 : i32
    return %c0_i32, %c0_i32_0 : i32, i32
  }
  func.func @transform_12(%arg0: i32) -> (i32, i32) {
    %c0_i32 = arith.constant 0 : i32
    %c0_i32_0 = arith.constant 0 : i32
    %c0_i32_1 = arith.constant 0 : i32
    return %c0_i32, %c0_i32_0 : i32, i32
  }
  func.func @transform_13(%arg0: i32) -> (i32, i32) {
    %c0_i32 = arith.constant 0 : i32
    %c0_i32_0 = arith.constant 0 : i32
    %c0_i32_1 = arith.constant 0 : i32
    return %c0_i32, %c0_i32_0 : i32, i32
  }
  func.func @transform_14(%arg0: i32) -> (i32, i32) {
    %c0_i32 = arith.constant 0 : i32
    %c0_i32_0 = arith.constant 0 : i32
    %c0_i32_1 = arith.constant 0 : i32
    return %c0_i32, %c0_i32_0 : i32, i32
  }
  func.func @transform_15(%arg0: i32) -> (i32, i32) {
    %c0_i32 = arith.constant 0 : i32
    %c0_i32_0 = arith.constant 0 : i32
    %c0_i32_1 = arith.constant 0 : i32
    return %c0_i32, %c0_i32_0 : i32, i32
  }
  func.func @transform_16(%arg0: i32) -> (i32, i32, i32, i32) {
    %c0_i32 = arith.constant 0 : i32
    %c0_i32_0 = arith.constant 0 : i32
    %c0_i32_1 = arith.constant 0 : i32
    %c0_i32_2 = arith.constant 0 : i32
    return %arg0, %c0_i32, %c0_i32_0, %c0_i32_1 : i32, i32, i32, i32
  }
}

</mosaic_0001>

<llo_original>
// kernel: tile.18
$region0: #{tile.18}
  #allocation0 [shape = 's32[1]{0}', space=sflag, size = 0x4, scoped, tag = 'scoped memory for tile.18']
  %s0 = inlined_call_operand.vmem [shape: f32[8], index: 0, kind: input, shape index: {}]
  %s1 = inlined_call_operand.vmem [shape: f32[4,8], index: 1, kind: output, shape index: {}]
  // Predicated region
  $region2: #{tile.18} parent=0 // pred_check
    _
  $region3: #{tile.18} parent=0 // pred_check_branch
    %3 = sbr.rel (0) target = $region5
  $region4: #{tile.18} parent=0 // pred_region
    _
  $region5: #{tile.18} parent=0 // pred_fallthru
    _
  %v4 = vld [vmem:[%s0] ss:$0 sm:$0xff]
  %5 = vst [vmem:[%s1] sm:$0xf] %v4

// kernel: tile.19
$region0: #{tile.19}
  %s0 = inlined_call_operand.vmem [shape: f32[4,8], index: 0, kind: input, shape index: {}]
  %s1 = inlined_call_operand.vmem [shape: f32[1,32], index: 1, kind: output, shape index: {}]
  $region1: #{tile.19} parent=0
    #allocation0 [shape = 'u8[4096]{0}', space=vmem, size = 0x1000, scoped, tag = 'scoped mem for output reshape']
    #allocation1 [shape = 'u8[4096]{0}', space=vmem, size = 0x1000, scoped, tag = 'scoped mem for input reshape']
    %s3 = sshll.u32 1, 4
    %s4 = ssub.s32 %s3, 1
    %v5 = vld [vmem:[%s0] sm:%s4]
    %6 = vst [vmem:[#allocation1] sm:%s4] %v5
    %v7 = vld [vmem:[#allocation1] sm:$0x1]
    %vm8 = vcmask 64512
    %9 = vst.msk [vmem:[#allocation0] sm:$0x1] %vm8, %v7
    %s10 = scalar_lea.vmem [#allocation1], 3
    %v11 = vld [vmem:[%s10] sm:$0x1]
    %12 = vrot.lane.b32.xlu0 %v11, 24
    %v13 = vpop.permute.xlu0 %12
    %vm14 = vcmask 261312
    %15 = vst.msk [vmem:[#allocation0] sm:$0x1] %vm14, %v13
    %s16 = scalar_lea.vmem [#allocation1], 2
    %v17 = vld [vmem:[%s16] sm:$0x1]
    %18 = vrot.lane.b32.xlu0 %v17, 16
    %v19 = vpop.permute.xlu0 %18
    %vm20 = vcmask 195712
    %21 = vst.msk [vmem:[#allocation0] sm:$0x1] %vm20, %v19
    %s22 = scalar_lea.vmem [#allocation1], 1
    %v23 = vld [vmem:[%s22] sm:$0x1]
    %24 = vrot.lane.b32.xlu0 %v23, 8
    %v25 = vpop.permute.xlu0 %24
    %vm26 = vcmask 130112
    %27 = vst.msk [vmem:[#allocation0] sm:$0x1] %vm26, %v25
    %s29 = sshll.u32 1, 1
    %s30 = ssub.s32 %s29, 1
    %v32 = vld [vmem:[#allocation0] sm:%s30]
    %s33 = sshll.u32 1, 1
    %s34 = ssub.s32 %s33, 1
    %35 = vst [vmem:[%s1] sm:%s34] %v32

// kernel: resdiv_forward.1
$region0: #{resdiv_forward.1}
  #allocation0 [shape = 'u32[]', space=smem, size = 0x4, offset = 0x4, fixed_abs, tag = 'smem constant byte address 0x4 - core index']
  #allocation1 [shape = 'u32[144,128]{1,0:T(1,128)}', space=vmem, size = 0x12000, scoped, tag = 'internal scratch']
  #allocation2 [shape = 'f32[10,10,4]{2,1,0:T(8,128)}', space=vmem, size = 0x14000, scoped, tag = 'scratch operand']
  #allocation3 [shape = 'f32[8,8,36]{2,1,0:T(8,128)}', space=vmem, size = 0x8000, scoped, tag = 'scratch operand']
  #allocation4 [shape = 'f32[9,9,16]{2,1,0:T(8,128)}', space=vmem, size = 0x12000, scoped, tag = 'scratch operand']
  #allocation5 [shape = 'f32[8,8,64]{2,1,0:T(8,128)}', space=vmem, size = 0x8000, scoped, tag = 'scratch operand']
  %s0 = inlined_call_operand.vmem [shape: f32[2,8,8,4], index: 0, kind: input, shape index: {}]
  %s1 = inlined_call_operand.vmem [shape: f32[36,4], index: 1, kind: input, shape index: {}]
  %s2 = inlined_call_operand.vmem [shape: f32[1,4], index: 2, kind: input, shape index: {}]
  %s3 = inlined_call_operand.vmem [shape: f32[1,4], index: 3, kind: input, shape index: {}]
  %s4 = inlined_call_operand.vmem [shape: f32[36,4], index: 4, kind: input, shape index: {}]
  %s5 = inlined_call_operand.vmem [shape: f32[1,4], index: 5, kind: input, shape index: {}]
  %s6 = inlined_call_operand.vmem [shape: f32[1,4], index: 6, kind: input, shape index: {}]
  %s7 = inlined_call_operand.vmem [shape: f32[36,4], index: 7, kind: input, shape index: {}]
  %s8 = inlined_call_operand.vmem [shape: f32[1,4], index: 8, kind: input, shape index: {}]
  %s9 = inlined_call_operand.vmem [shape: f32[1,4], index: 9, kind: input, shape index: {}]
  %s10 = inlined_call_operand.vmem [shape: f32[4,16], index: 10, kind: input, shape index: {}]
  %s11 = inlined_call_operand.vmem [shape: f32[1,16], index: 11, kind: input, shape index: {}]
  %s12 = inlined_call_operand.vmem [shape: f32[1,16], index: 12, kind: input, shape index: {}]
  %s13 = inlined_call_operand.vmem [shape: f32[64,32], index: 13, kind: input, shape index: {}]
  %s14 = inlined_call_operand.vmem [shape: f32[1,32], index: 14, kind: input, shape index: {}]
  %s15 = inlined_call_operand.vmem [shape: f32[1,32], index: 15, kind: input, shape index: {}]
  %s16 = inlined_call_operand.vmem [shape: f32[2,8,8,32], index: 16, kind: output, shape index: {}]
  %s17 = sld [smem:[#allocation0]]
  $region97: #{resdiv_forward.1} parent=0
    _
  %s19 = ssub.s32 1, %s17
  %s20 = scalar_select 0, %s19, %s17
  loop: start=0, step=1, limit=4
  $region2: #{resdiv_forward.1} parent=0 // loop_pre_header
    _
  $region3: #{resdiv_forward.1} parent=0 // loop_header
    %s22 = sphi 0, %s26
    %p23 = scmp.ge.s32.totalorder %s22, 4
    %s32 = sphi 0, %s34
    %s35 = sphi 0, %s32
    %s36 = sphi 0, %s35
    %s52 = sphi 0, %s36
    %s56 = sphi 0, %s56
    %s58 = sphi 0, %s56
    %s59 = sphi 0, %s58
    %s73 = sphi 0, %s59
    %s77 = sphi 0, %s77
    %s79 = sphi 0, %s77
    %s80 = sphi 0, %s79
    %s94 = sphi 0, %s80
    %s98 = sphi 0, %s98
    %s100 = sphi 0, %s98
    %s101 = sphi 0, %s100
    %s115 = sphi 0, %s101
    %s119 = sphi 0, %s119
    %s121 = sphi 0, %s119
    %s122 = sphi 0, %s121
    %s136 = sphi 0, %s122
    %s140 = sphi 0, %s140
    %s142 = sphi 0, %s140
    %s143 = sphi 0, %s142
    %s157 = sphi 0, %s143
    %s161 = sphi 0, %s161
    %s163 = sphi 0, %s161
    %s164 = sphi 0, %s163
    %s178 = sphi 0, %s164
    %s182 = sphi 0, %s182
    %s184 = sphi 0, %s182
    %s185 = sphi 0, %s184
    %s199 = sphi 0, %s185
    %s203 = sphi 0, %s203
    %s205 = sphi 0, %s203
    %s206 = sphi 0, %s205
    %s220 = sphi 0, %s206
    %s224 = sphi 0, %s224
    %s226 = sphi 0, %s224
    %s227 = sphi 0, %s226
    %s241 = sphi 0, %s227
    %s245 = sphi 0, %s245
    %s247 = sphi 0, %s245
    %s248 = sphi 0, %s247
    %s262 = sphi 0, %s248
    %s266 = sphi 0, %s266
    %s268 = sphi 0, %s266
    %s269 = sphi 0, %s268
    %s283 = sphi 0, %s269
    %s287 = sphi 0, %s287
    %s289 = sphi 0, %s287
    %s290 = sphi 0, %s289
    %s304 = sphi 0, %s290
    %s308 = sphi 0, %s308
    %s310 = sphi 0, %s308
    %s311 = sphi 0, %s310
    %s325 = sphi 0, %s311
    %s329 = sphi 0, %s329
    %s331 = sphi 0, %s329
    %s332 = sphi 0, %s331
    %s346 = sphi 0, %s332
    %s350 = sphi 0, %s350
    %s352 = sphi 0, %s350
    %s353 = sphi 0, %s352
    %s367 = sphi 0, %s353
    %s373 = sphi 0, %s375
    %s376 = sphi 0, %s373
    %s377 = sphi 0, %s376
    %s393 = sphi 0, %s377
  $region4: #{resdiv_forward.1} parent=0 // loop_header_branch
    %25 = sbr.rel (%p23) target = $region8
  $region5: #{resdiv_forward.1} parent=0 // loop_body
    %s27 = ssub.s32 %s22, 1
    %s28 = ssub.s32 %s22, 2
    %s29 = sadd.s32 %s22, 1
    %s30 = ssub.s32 %s22, %s29
    %p31 = scmp.eq.s32.totalorder %s30, 0
    %s33 = sadd.s32 %s32, 1
    %s34 = scalar_select %p31, %s32, %s33
    %p37 = pneg %p31
    %p38 = scmp.eq.s32.totalorder %s22, 1
    %p39 = por %p37, %p38
    %p40 = scmp.ne.s32.totalorder %s32, %s35
    %p41 = scmp.eq.s32.totalorder %s22, 0
    %p42 = por %p40, %p41
    %p43 = scmp.ne.s32.totalorder %s32, %s35
    %p44 = scmp.eq.s32.totalorder %s27, 1
    %p45 = por %p43, %p44
    %p46 = scmp.ne.s32.totalorder %s35, %s36
    %p47 = scmp.eq.s32.totalorder %s27, 0
    %p48 = por %p46, %p47
    %p49 = scmp.ne.s32.totalorder %s35, %s36
    %p50 = scmp.eq.s32.totalorder %s28, 1
    %p51 = por %p49, %p50
    %p53 = scmp.ne.s32.totalorder %s36, %s52
    %p54 = scmp.eq.s32.totalorder %s28, 0
    %p55 = por %p53, %p54
    %s57 = sadd.s32 %s56, 1
    %p60 = scmp.eq.s32.totalorder %s22, 1
    %p61 = scmp.ne.s32.totalorder %s56, %s58
    %p62 = scmp.eq.s32.totalorder %s22, 0
    %p63 = por %p61, %p62
    %p64 = scmp.ne.s32.totalorder %s56, %s58
    %p65 = scmp.eq.s32.totalorder %s27, 1
    %p66 = por %p64, %p65
    %p67 = scmp.ne.s32.totalorder %s58, %s59
    %p68 = scmp.eq.s32.totalorder %s27, 0
    %p69 = por %p67, %p68
    %p70 = scmp.ne.s32.totalorder %s58, %s59
    %p71 = scmp.eq.s32.totalorder %s28, 1
    %p72 = por %p70, %p71
    %p74 = scmp.ne.s32.totalorder %s59, %s73
    %p75 = scmp.eq.s32.totalorder %s28, 0
    %p76 = por %p74, %p75
    %s78 = sadd.s32 %s77, 1
    %p81 = scmp.eq.s32.totalorder %s22, 1
    %p82 = scmp.ne.s32.totalorder %s77, %s79
    %p83 = scmp.eq.s32.totalorder %s22, 0
    %p84 = por %p82, %p83
    %p85 = scmp.ne.s32.totalorder %s77, %s79
    %p86 = scmp.eq.s32.totalorder %s27, 1
    %p87 = por %p85, %p86
    %p88 = scmp.ne.s32.totalorder %s79, %s80
    %p89 = scmp.eq.s32.totalorder %s27, 0
    %p90 = por %p88, %p89
    %p91 = scmp.ne.s32.totalorder %s79, %s80
    %p92 = scmp.eq.s32.totalorder %s28, 1
    %p93 = por %p91, %p92
    %p95 = scmp.ne.s32.totalorder %s80, %s94
    %p96 = scmp.eq.s32.totalorder %s28, 0
    %p97 = por %p95, %p96
    %s99 = sadd.s32 %s98, 1
    %p102 = scmp.eq.s32.totalorder %s22, 1
    %p103 = scmp.ne.s32.totalorder %s98, %s100
    %p104 = scmp.eq.s32.totalorder %s22, 0
    %p105 = por %p103, %p104
    %p106 = scmp.ne.s32.totalorder %s98, %s100
    %p107 = scmp.eq.s32.totalorder %s27, 1
    %p108 = por %p106, %p107
    %p109 = scmp.ne.s32.totalorder %s100, %s101
    %p110 = scmp.eq.s32.totalorder %s27, 0
    %p111 = por %p109, %p110
    %p112 = scmp.ne.s32.totalorder %s100, %s101
    %p113 = scmp.eq.s32.totalorder %s28, 1
    %p114 = por %p112, %p113
    %p116 = scmp.ne.s32.totalorder %s101, %s115
    %p117 = scmp.eq.s32.totalorder %s28, 0
    %p118 = por %p116, %p117
    %s120 = sadd.s32 %s119, 1
    %p123 = scmp.eq.s32.totalorder %s22, 1
    %p124 = scmp.ne.s32.totalorder %s119, %s121
    %p125 = scmp.eq.s32.totalorder %s22, 0
    %p126 = por %p124, %p125
    %p127 = scmp.ne.s32.totalorder %s119, %s121
    %p128 = scmp.eq.s32.totalorder %s27, 1
    %p129 = por %p127, %p128
    %p130 = scmp.ne.s32.totalorder %s121, %s122
    %p131 = scmp.eq.s32.totalorder %s27, 0
    %p132 = por %p130, %p131
    %p133 = scmp.ne.s32.totalorder %s121, %s122
    %p134 = scmp.eq.s32.totalorder %s28, 1
    %p135 = por %p133, %p134
    %p137 = scmp.ne.s32.totalorder %s122, %s136
    %p138 = scmp.eq.s32.totalorder %s28, 0
    %p139 = por %p137, %p138
    %s141 = sadd.s32 %s140, 1
    %p144 = scmp.eq.s32.totalorder %s22, 1
    %p145 = scmp.ne.s32.totalorder %s140, %s142
    %p146 = scmp.eq.s32.totalorder %s22, 0
    %p147 = por %p145, %p146
    %p148 = scmp.ne.s32.totalorder %s140, %s142
    %p149 = scmp.eq.s32.totalorder %s27, 1
    %p150 = por %p148, %p149
    %p151 = scmp.ne.s32.totalorder %s142, %s143
    %p152 = scmp.eq.s32.totalorder %s27, 0
    %p153 = por %p151, %p152
    %p154 = scmp.ne.s32.totalorder %s142, %s143
    %p155 = scmp.eq.s32.totalorder %s28, 1
    %p156 = por %p154, %p155
    %p158 = scmp.ne.s32.totalorder %s143, %s157
    %p159 = scmp.eq.s32.totalorder %s28, 0
    %p160 = por %p158, %p159
    %s162 = sadd.s32 %s161, 1
    %p165 = scmp.eq.s32.totalorder %s22, 1
    %p166 = scmp.ne.s32.totalorder %s161, %s163
    %p167 = scmp.eq.s32.totalorder %s22, 0
    %p168 = por %p166, %p167
    %p169 = scmp.ne.s32.totalorder %s161, %s163
    %p170 = scmp.eq.s32.totalorder %s27, 1
    %p171 = por %p169, %p170
    %p172 = scmp.ne.s32.totalorder %s163, %s164
    %p173 = scmp.eq.s32.totalorder %s27, 0
    %p174 = por %p172, %p173
    %p175 = scmp.ne.s32.totalorder %s163, %s164
    %p176 = scmp.eq.s32.totalorder %s28, 1
    %p177 = por %p175, %p176
    %p179 = scmp.ne.s32.totalorder %s164, %s178
    %p180 = scmp.eq.s32.totalorder %s28, 0
    %p181 = por %p179, %p180
    %s183 = sadd.s32 %s182, 1
    %p186 = scmp.eq.s32.totalorder %s22, 1
    %p187 = scmp.ne.s32.totalorder %s182, %s184
    %p188 = scmp.eq.s32.totalorder %s22, 0
    %p189 = por %p187, %p188
    %p190 = scmp.ne.s32.totalorder %s182, %s184
    %p191 = scmp.eq.s32.totalorder %s27, 1
    %p192 = por %p190, %p191
    %p193 = scmp.ne.s32.totalorder %s184, %s185
    %p194 = scmp.eq.s32.totalorder %s27, 0
    %p195 = por %p193, %p194
    %p196 = scmp.ne.s32.totalorder %s184, %s185
    %p197 = scmp.eq.s32.totalorder %s28, 1
    %p198 = por %p196, %p197
    %p200 = scmp.ne.s32.totalorder %s185, %s199
    %p201 = scmp.eq.s32.totalorder %s28, 0
    %p202 = por %p200, %p201
    %s204 = sadd.s32 %s203, 1
    %p207 = scmp.eq.s32.totalorder %s22, 1
    %p208 = scmp.ne.s32.totalorder %s203, %s205
    %p209 = scmp.eq.s32.totalorder %s22, 0
    %p210 = por %p208, %p209
    %p211 = scmp.ne.s32.totalorder %s203, %s205
    %p212 = scmp.eq.s32.totalorder %s27, 1
    %p213 = por %p211, %p212
    %p214 = scmp.ne.s32.totalorder %s205, %s206
    %p215 = scmp.eq.s32.totalorder %s27, 0
    %p216 = por %p214, %p215
    %p217 = scmp.ne.s32.totalorder %s205, %s206
    %p218 = scmp.eq.s32.totalorder %s28, 1
    %p219 = por %p217, %p218
    %p221 = scmp.ne.s32.totalorder %s206, %s220
    %p222 = scmp.eq.s32.totalorder %s28, 0
    %p223 = por %p221, %p222
    %s225 = sadd.s32 %s224, 1
    %p228 = scmp.eq.s32.totalorder %s22, 1
    %p229 = scmp.ne.s32.totalorder %s224, %s226
    %p230 = scmp.eq.s32.totalorder %s22, 0
    %p231 = por %p229, %p230
    %p232 = scmp.ne.s32.totalorder %s224, %s226
    %p233 = scmp.eq.s32.totalorder %s27, 1
    %p234 = por %p232, %p233
    %p235 = scmp.ne.s32.totalorder %s226, %s227
    %p236 = scmp.eq.s32.totalorder %s27, 0
    %p237 = por %p235, %p236
    %p238 = scmp.ne.s32.totalorder %s226, %s227
    %p239 = scmp.eq.s32.totalorder %s28, 1
    %p240 = por %p238, %p239
    %p242 = scmp.ne.s32.totalorder %s227, %s241
    %p243 = scmp.eq.s32.totalorder %s28, 0
    %p244 = por %p242, %p243
    %s246 = sadd.s32 %s245, 1
    %p249 = scmp.eq.s32.totalorder %s22, 1
    %p250 = scmp.ne.s32.totalorder %s245, %s247
    %p251 = scmp.eq.s32.totalorder %s22, 0
    %p252 = por %p250, %p251
    %p253 = scmp.ne.s32.totalorder %s245, %s247
    %p254 = scmp.eq.s32.totalorder %s27, 1
    %p255 = por %p253, %p254
    %p256 = scmp.ne.s32.totalorder %s247, %s248
    %p257 = scmp.eq.s32.totalorder %s27, 0
    %p258 = por %p256, %p257
    %p259 = scmp.ne.s32.totalorder %s247, %s248
    %p260 = scmp.eq.s32.totalorder %s28, 1
    %p261 = por %p259, %p260
    %p263 = scmp.ne.s32.totalorder %s248, %s262
    %p264 = scmp.eq.s32.totalorder %s28, 0
    %p265 = por %p263, %p264
    %s267 = sadd.s32 %s266, 1
    %p270 = scmp.eq.s32.totalorder %s22, 1
    %p271 = scmp.ne.s32.totalorder %s266, %s268
    %p272 = scmp.eq.s32.totalorder %s22, 0
    %p273 = por %p271, %p272
    %p274 = scmp.ne.s32.totalorder %s266, %s268
    %p275 = scmp.eq.s32.totalorder %s27, 1
    %p276 = por %p274, %p275
    %p277 = scmp.ne.s32.totalorder %s268, %s269
    %p278 = scmp.eq.s32.totalorder %s27, 0
    %p279 = por %p277, %p278
    %p280 = scmp.ne.s32.totalorder %s268, %s269
    %p281 = scmp.eq.s32.totalorder %s28, 1
    %p282 = por %p280, %p281
    %p284 = scmp.ne.s32.totalorder %s269, %s283
    %p285 = scmp.eq.s32.totalorder %s28, 0
    %p286 = por %p284, %p285
    %s288 = sadd.s32 %s287, 1
    %p291 = scmp.eq.s32.totalorder %s22, 1
    %p292 = scmp.ne.s32.totalorder %s287, %s289
    %p293 = scmp.eq.s32.totalorder %s22, 0
    %p294 = por %p292, %p293
    %p295 = scmp.ne.s32.totalorder %s287, %s289
    %p296 = scmp.eq.s32.totalorder %s27, 1
    %p297 = por %p295, %p296
    %p298 = scmp.ne.s32.totalorder %s289, %s290
    %p299 = scmp.eq.s32.totalorder %s27, 0
    %p300 = por %p298, %p299
    %p301 = scmp.ne.s32.totalorder %s289, %s290
    %p302 = scmp.eq.s32.totalorder %s28, 1
    %p303 = por %p301, %p302
    %p305 = scmp.ne.s32.totalorder %s290, %s304
    %p306 = scmp.eq.s32.totalorder %s28, 0
    %p307 = por %p305, %p306
    %s309 = sadd.s32 %s308, 1
    %p312 = scmp.eq.s32.totalorder %s22, 1
    %p313 = scmp.ne.s32.totalorder %s308, %s310
    %p314 = scmp.eq.s32.totalorder %s22, 0
    %p315 = por %p313, %p314
    %p316 = scmp.ne.s32.totalorder %s308, %s310
    %p317 = scmp.eq.s32.totalorder %s27, 1
    %p318 = por %p316, %p317
    %p319 = scmp.ne.s32.totalorder %s310, %s311
    %p320 = scmp.eq.s32.totalorder %s27, 0
    %p321 = por %p319, %p320
    %p322 = scmp.ne.s32.totalorder %s310, %s311
    %p323 = scmp.eq.s32.totalorder %s28, 1
    %p324 = por %p322, %p323
    %p326 = scmp.ne.s32.totalorder %s311, %s325
    %p327 = scmp.eq.s32.totalorder %s28, 0
    %p328 = por %p326, %p327
    %s330 = sadd.s32 %s329, 1
    %p333 = scmp.eq.s32.totalorder %s22, 1
    %p334 = scmp.ne.s32.totalorder %s329, %s331
    %p335 = scmp.eq.s32.totalorder %s22, 0
    %p336 = por %p334, %p335
    %p337 = scmp.ne.s32.totalorder %s329, %s331
    %p338 = scmp.eq.s32.totalorder %s27, 1
    %p339 = por %p337, %p338
    %p340 = scmp.ne.s32.totalorder %s331, %s332
    %p341 = scmp.eq.s32.totalorder %s27, 0
    %p342 = por %p340, %p341
    %p343 = scmp.ne.s32.totalorder %s331, %s332
    %p344 = scmp.eq.s32.totalorder %s28, 1
    %p345 = por %p343, %p344
    %p347 = scmp.ne.s32.totalorder %s332, %s346
    %p348 = scmp.eq.s32.totalorder %s28, 0
    %p349 = por %p347, %p348
    %s351 = sadd.s32 %s350, 1
    %p354 = scmp.eq.s32.totalorder %s22, 1
    %p355 = scmp.ne.s32.totalorder %s350, %s352
    %p356 = scmp.eq.s32.totalorder %s22, 0
    %p357 = por %p355, %p356
    %p358 = scmp.ne.s32.totalorder %s350, %s352
    %p359 = scmp.eq.s32.totalorder %s27, 1
    %p360 = por %p358, %p359
    %p361 = scmp.ne.s32.totalorder %s352, %s353
    %p362 = scmp.eq.s32.totalorder %s27, 0
    %p363 = por %p361, %p362
    %p364 = scmp.ne.s32.totalorder %s352, %s353
    %p365 = scmp.eq.s32.totalorder %s28, 1
    %p366 = por %p364, %p365
    %p368 = scmp.ne.s32.totalorder %s353, %s367
    %p369 = scmp.eq.s32.totalorder %s28, 0
    %p370 = por %p368, %p369
    %s371 = ssub.s32 %s22, %s29
    %p372 = scmp.eq.s32.totalorder %s371, 0
    %s374 = sadd.s32 %s373, 1
    %s375 = scalar_select %p372, %s373, %s374
    %p378 = pneg %p372
    %p379 = scmp.eq.s32.totalorder %s22, 1
    %p380 = por %p378, %p379
    %p381 = scmp.ne.s32.totalorder %s373, %s376
    %p382 = scmp.eq.s32.totalorder %s22, 0
    %p383 = por %p381, %p382
    %p384 = scmp.ne.s32.totalorder %s373, %s376
    %p385 = scmp.eq.s32.totalorder %s27, 1
    %p386 = por %p384, %p385
    %p387 = scmp.ne.s32.totalorder %s376, %s377
    %p388 = scmp.eq.s32.totalorder %s27, 0
    %p389 = por %p387, %p388
    %p390 = scmp.ne.s32.totalorder %s376, %s377
    %p391 = scmp.eq.s32.totalorder %s28, 1
    %p392 = por %p390, %p391
    %p394 = scmp.ne.s32.totalorder %s377, %s393
    %p395 = scmp.eq.s32.totalorder %s28, 0
    %p396 = por %p394, %p395
    %p397 = scmp.le.s32.totalorder 1, %s22
    %p398 = scmp.lt.s32.totalorder %s22, 3
    %p399 = pnand %p397, %p398
    %p400 = pneg %p399
    // Predicated region
    $region9: #{resdiv_forward.1} parent=5 // pred_check
      _
    $region10: #{resdiv_forward.1} parent=5 // pred_check_branch
      %402 = sbr.rel (%p399) target = $region12
    $region11: #{resdiv_forward.1} parent=5 // pred_region
      %s403 = ssub.s32 %s22, 1
      // Predicated region
      $region13: #{resdiv_forward.1} parent=11 // pred_check
        %p404 = pneg %p69
      $region14: #{resdiv_forward.1} parent=11 // pred_check_branch
        %406 = sbr.rel (%p404) target = $region16
      $region15: #{resdiv_forward.1} parent=11 // pred_region
        _
      $region16: #{resdiv_forward.1} parent=11 // pred_fallthru
        _
      // Predicated region
      $region17: #{resdiv_forward.1} parent=11 // pred_check
        %p407 = pneg %p90
      $region18: #{resdiv_forward.1} parent=11 // pred_check_branch
        %409 = sbr.rel (%p407) target = $region20
      $region19: #{resdiv_forward.1} parent=11 // pred_region
        _
      $region20: #{resdiv_forward.1} parent=11 // pred_fallthru
        _
      // Predicated region
      $region21: #{resdiv_forward.1} parent=11 // pred_check
        %p410 = pneg %p111
      $region22: #{resdiv_forward.1} parent=11 // pred_check_branch
        %412 = sbr.rel (%p410) target = $region24
      $region23: #{resdiv_forward.1} parent=11 // pred_region
        _
      $region24: #{resdiv_forward.1} parent=11 // pred_fallthru
        _
      // Predicated region
      $region25: #{resdiv_forward.1} parent=11 // pred_check
        %p413 = pneg %p132
      $region26: #{resdiv_forward.1} parent=11 // pred_check_branch
        %415 = sbr.rel (%p413) target = $region28
      $region27: #{resdiv_forward.1} parent=11 // pred_region
        _
      $region28: #{resdiv_forward.1} parent=11 // pred_fallthru
        _
      // Predicated region
      $region29: #{resdiv_forward.1} parent=11 // pred_check
        %p416 = pneg %p153
      $region30: #{resdiv_forward.1} parent=11 // pred_check_branch
        %418 = sbr.rel (%p416) target = $region32
      $region31: #{resdiv_forward.1} parent=11 // pred_region
        _
      $region32: #{resdiv_forward.1} parent=11 // pred_fallthru
        _
      // Predicated region
      $region33: #{resdiv_forward.1} parent=11 // pred_check
        %p419 = pneg %p174
      $region34: #{resdiv_forward.1} parent=11 // pred_check_branch
        %421 = sbr.rel (%p419) target = $region36
      $region35: #{resdiv_forward.1} parent=11 // pred_region
        _
      $region36: #{resdiv_forward.1} parent=11 // pred_fallthru
        _
      // Predicated region
      $region37: #{resdiv_forward.1} parent=11 // pred_check
        %p422 = pneg %p195
      $region38: #{resdiv_forward.1} parent=11 // pred_check_branch
        %424 = sbr.rel (%p422) target = $region40
      $region39: #{resdiv_forward.1} parent=11 // pred_region
        _
      $region40: #{resdiv_forward.1} parent=11 // pred_fallthru
        _
      // Predicated region
      $region41: #{resdiv_forward.1} parent=11 // pred_check
        %p425 = pneg %p216
      $region42: #{resdiv_forward.1} parent=11 // pred_check_branch
        %427 = sbr.rel (%p425) target = $region44
      $region43: #{resdiv_forward.1} parent=11 // pred_region
        _
      $region44: #{resdiv_forward.1} parent=11 // pred_fallthru
        _
      // Predicated region
      $region45: #{resdiv_forward.1} parent=11 // pred_check
        %p428 = pneg %p237
      $region46: #{resdiv_forward.1} parent=11 // pred_check_branch
        %430 = sbr.rel (%p428) target = $region48
      $region47: #{resdiv_forward.1} parent=11 // pred_region
        _
      $region48: #{resdiv_forward.1} parent=11 // pred_fallthru
        _
      // Predicated region
      $region49: #{resdiv_forward.1} parent=11 // pred_check
        %p431 = pneg %p258
      $region50: #{resdiv_forward.1} parent=11 // pred_check_branch
        %433 = sbr.rel (%p431) target = $region52
      $region51: #{resdiv_forward.1} parent=11 // pred_region
        _
      $region52: #{resdiv_forward.1} parent=11 // pred_fallthru
        _
      // Predicated region
      $region53: #{resdiv_forward.1} parent=11 // pred_check
        %p434 = pneg %p279
      $region54: #{resdiv_forward.1} parent=11 // pred_check_branch
        %436 = sbr.rel (%p434) target = $region56
      $region55: #{resdiv_forward.1} parent=11 // pred_region
        _
      $region56: #{resdiv_forward.1} parent=11 // pred_fallthru
        _
      // Predicated region
      $region57: #{resdiv_forward.1} parent=11 // pred_check
        %p437 = pneg %p300
      $region58: #{resdiv_forward.1} parent=11 // pred_check_branch
        %439 = sbr.rel (%p437) target = $region60
      $region59: #{resdiv_forward.1} parent=11 // pred_region
        _
      $region60: #{resdiv_forward.1} parent=11 // pred_fallthru
        _
      // Predicated region
      $region61: #{resdiv_forward.1} parent=11 // pred_check
        %p440 = pneg %p321
      $region62: #{resdiv_forward.1} parent=11 // pred_check_branch
        %442 = sbr.rel (%p440) target = $region64
      $region63: #{resdiv_forward.1} parent=11 // pred_region
        _
      $region64: #{resdiv_forward.1} parent=11 // pred_fallthru
        _
      // Predicated region
      $region65: #{resdiv_forward.1} parent=11 // pred_check
        %p443 = pneg %p342
      $region66: #{resdiv_forward.1} parent=11 // pred_check_branch
        %445 = sbr.rel (%p443) target = $region68
      $region67: #{resdiv_forward.1} parent=11 // pred_region
        _
      $region68: #{resdiv_forward.1} parent=11 // pred_fallthru
        _
      // Predicated region
      $region69: #{resdiv_forward.1} parent=11 // pred_check
        %p446 = pneg %p363
      $region70: #{resdiv_forward.1} parent=11 // pred_check_branch
        %448 = sbr.rel (%p446) target = $region72
      $region71: #{resdiv_forward.1} parent=11 // pred_region
        _
      $region72: #{resdiv_forward.1} parent=11 // pred_fallthru
        _
    $region12: #{resdiv_forward.1} parent=5 // pred_fallthru
      _
    %p449 = scmp.lt.s32.totalorder %s22, 2
    // Predicated region
    $region73: #{resdiv_forward.1} parent=5 // pred_check
      %p450 = pneg %p449
    $region74: #{resdiv_forward.1} parent=5 // pred_check_branch
      %452 = sbr.rel (%p450) target = $region76
    $region75: #{resdiv_forward.1} parent=5 // pred_region
      // Predicated region
      $region77: #{resdiv_forward.1} parent=75 // pred_check
        %p453 = pneg %p42
      $region78: #{resdiv_forward.1} parent=75 // pred_check_branch
        %455 = sbr.rel (%p453) target = $region80
      $region79: #{resdiv_forward.1} parent=75 // pred_region
        %p456 = scmp.lt.s32.totalorder %s22, 1
        %s457 = scalar_select %p456, %s22, 1
        %s458 = smul.addr %s457, 8
        %s459 = smul.addr %s458, 8
        %s460 = scalar_lea.vmem %s0, %s459
      $region80: #{resdiv_forward.1} parent=75 // pred_fallthru
        _
    $region76: #{resdiv_forward.1} parent=5 // pred_fallthru
      _
    %p461 = scmp.le.s32.totalorder 1, %s22
    %p462 = scmp.lt.s32.totalorder %s22, 3
    %p463 = pnand %p461, %p462
    %p464 = pneg %p463
    // Predicated region
    $region81: #{resdiv_forward.1} parent=5 // pred_check
      _
    $region82: #{resdiv_forward.1} parent=5 // pred_check_branch
      %466 = sbr.rel (%p463) target = $region84
    $region83: #{resdiv_forward.1} parent=5 // pred_region
      %s467 = ssub.s32 %s22, 1
      %p468 = scmp.lt.s32.totalorder %s27, 1
      %s469 = scalar_select %p468, %s27, 1
      %s470 = smul.addr %s469, 8
      %s471 = smul.addr %s470, 8
      %s472 = scalar_lea.vmem %s0, %s471
      %p473 = pneg %p48
      %p474 = pneg %p45
      %p475 = pneg %p69
      %p476 = pneg %p66
      %p477 = pneg %p90
      %p478 = pneg %p87
      %p479 = pneg %p111
      %p480 = pneg %p108
      %p481 = pneg %p132
      %p482 = pneg %p129
      %p483 = pneg %p153
      %p484 = pneg %p150
      %p485 = pneg %p174
      %p486 = pneg %p171
      %p487 = pneg %p195
      %p488 = pneg %p192
      %p489 = pneg %p216
      %p490 = pneg %p213
      %p491 = pneg %p237
      %p492 = pneg %p234
      %p493 = pneg %p258
      %p494 = pneg %p255
      %p495 = pneg %p279
      %p496 = pneg %p276
      %p497 = pneg %p300
      %p498 = pneg %p297
      %p499 = pneg %p321
      %p500 = pneg %p318
      %p501 = pneg %p342
      %p502 = pneg %p339
      %p503 = pneg %p363
      %p504 = pneg %p360
      %p505 = pneg %p389
      %p506 = pneg %p386
      %p507 = scmp.lt.s32.totalorder %s27, 1
      %s508 = scalar_select %p507, %s27, 1
      %s509 = smul.addr %s508, 8
      %s510 = smul.addr %s509, 8
      %s511 = scalar_lea.vmem %s16, %s510
      %p512 = scmp.lt.s32.totalorder %s27, 1
      %s513 = scalar_select %p512, %s27, 1
      %s514 = smul.addr %s513, 8
      %s515 = smul.addr %s514, 8
      %s516 = scalar_lea.vmem %s0, %s515
      %p517 = scmp.lt.s32.totalorder %s27, 1
      %s518 = scalar_select %p517, %s27, 1
      %s519 = smul.addr %s518, 8
      %s520 = smul.addr %s519, 8
      %s521 = scalar_lea.vmem %s16, %s520
      %vm522 = vcmask 31744
      %523 = vst.msk [vmem:[#allocation2] sm:$0xff] %vm522, 0.0
      %vm524 = vcmask 25600
      %525 = vst.msk [vmem:[#allocation2 + $0x8] sm:$0x3] %vm524, 0.0
      %526 = vst.msk [vmem:[#allocation2 + $0x10] sm:$0xff] %vm522, 0.0
      %527 = vst.msk [vmem:[#allocation2 + $0x18] sm:$0x3] %vm524, 0.0
      %528 = vst.msk [vmem:[#allocation2 + $0x20] sm:$0xff] %vm522, 0.0
      %529 = vst.msk [vmem:[#allocation2 + $0x28] sm:$0x3] %vm524, 0.0
      %530 = vst.msk [vmem:[#allocation2 + $0x30] sm:$0xff] %vm522, 0.0
      %531 = vst.msk [vmem:[#allocation2 + $0x38] sm:$0x3] %vm524, 0.0
      %532 = vst.msk [vmem:[#allocation2 + $0x40] sm:$0xff] %vm522, 0.0
      %533 = vst.msk [vmem:[#allocation2 + $0x48] sm:$0x3] %vm524, 0.0
      %534 = vst.msk [vmem:[#allocation2 + $0x50] sm:$0xff] %vm522, 0.0
      %535 = vst.msk [vmem:[#allocation2 + $0x58] sm:$0x3] %vm524, 0.0
      %536 = vst.msk [vmem:[#allocation2 + $0x60] sm:$0xff] %vm522, 0.0
      %537 = vst.msk [vmem:[#allocation2 + $0x68] sm:$0x3] %vm524, 0.0
      %538 = vst.msk [vmem:[#allocation2 + $0x70] sm:$0xff] %vm522, 0.0
      %539 = vst.msk [vmem:[#allocation2 + $0x78] sm:$0x3] %vm524, 0.0
      %540 = vst.msk [vmem:[#allocation2 + $0x80] sm:$0xff] %vm522, 0.0
      %541 = vst.msk [vmem:[#allocation2 + $0x88] sm:$0x3] %vm524, 0.0
      %542 = vst.msk [vmem:[#allocation2 + $0x90] sm:$0xff] %vm522, 0.0
      %543 = vst.msk [vmem:[#allocation2 + $0x98] sm:$0x3] %vm524, 0.0
      %vm544 = vcmask 130048
      %545 = vst.msk [vmem:[#allocation4] sm:$0xff] %vm544, 0.0
      %vm546 = vcmask 122880
      %547 = vst.msk [vmem:[#allocation4 + $0x8] sm:$0x1] %vm546, 0.0
      %548 = vst.msk [vmem:[#allocation4 + $0x10] sm:$0xff] %vm544, 0.0
      %549 = vst.msk [vmem:[#allocation4 + $0x18] sm:$0x1] %vm546, 0.0
      %550 = vst.msk [vmem:[#allocation4 + $0x20] sm:$0xff] %vm544, 0.0
      %551 = vst.msk [vmem:[#allocation4 + $0x28] sm:$0x1] %vm546, 0.0
      %552 = vst.msk [vmem:[#allocation4 + $0x30] sm:$0xff] %vm544, 0.0
      %553 = vst.msk [vmem:[#allocation4 + $0x38] sm:$0x1] %vm546, 0.0
      %554 = vst.msk [vmem:[#allocation4 + $0x40] sm:$0xff] %vm544, 0.0
      %555 = vst.msk [vmem:[#allocation4 + $0x48] sm:$0x1] %vm546, 0.0
      %556 = vst.msk [vmem:[#allocation4 + $0x50] sm:$0xff] %vm544, 0.0
      %557 = vst.msk [vmem:[#allocation4 + $0x58] sm:$0x1] %vm546, 0.0
      %558 = vst.msk [vmem:[#allocation4 + $0x60] sm:$0xff] %vm544, 0.0
      %559 = vst.msk [vmem:[#allocation4 + $0x68] sm:$0x1] %vm546, 0.0
      %560 = vst.msk [vmem:[#allocation4 + $0x70] sm:$0xff] %vm544, 0.0
      %561 = vst.msk [vmem:[#allocation4 + $0x78] sm:$0x1] %vm546, 0.0
      %562 = vst.msk [vmem:[#allocation4 + $0x80] sm:$0xff] %vm544, 0.0
      %563 = vst.msk [vmem:[#allocation4 + $0x88] sm:$0x1] %vm546, 0.0
      %v564 = vld [vmem:[%s516] sm:$0xff]
      %v565 = vld [vmem:[%s516 + $0x8] sm:$0xff]
      %v566 = vld [vmem:[%s516 + $0x10] sm:$0xff]
      %v567 = vld [vmem:[%s516 + $0x18] sm:$0xff]
      %v568 = vld [vmem:[%s516 + $0x20] sm:$0xff]
      %v569 = vld [vmem:[%s516 + $0x28] sm:$0xff]
      %v570 = vld [vmem:[%s516 + $0x30] sm:$0xff]
      %v571 = vld [vmem:[%s516 + $0x38] sm:$0xff]
      %s572 = scalar_lea.vmem [#allocation2], 16
      %573 = vst.msk [vmem:[%s572 + $0x1] sm:$0xff] %vm522, %v564
      %574 = vst.msk [vmem:[%s572 + $0x11] sm:$0xff] %vm522, %v565
      %575 = vst.msk [vmem:[%s572 + $0x21] sm:$0xff] %vm522, %v566
      %576 = vst.msk [vmem:[%s572 + $0x31] sm:$0xff] %vm522, %v567
      %577 = vst.msk [vmem:[%s572 + $0x41] sm:$0xff] %vm522, %v568
      %578 = vst.msk [vmem:[%s572 + $0x51] sm:$0xff] %vm522, %v569
      %579 = vst.msk [vmem:[%s572 + $0x61] sm:$0xff] %vm522, %v570
      %580 = vst.msk [vmem:[%s572 + $0x71] sm:$0xff] %vm522, %v571
      %v581 = vld [vmem:[%s2] sm:$0x1]
      %v582 = vld [vmem:[%s3] sm:$0x1]
      %v583 = vld [vmem:[#allocation2] sm:$0xff]
      %v584 = vld [vmem:[#allocation2 + $0x10] sm:$0xff]
      %v585 = vld [vmem:[#allocation2 + $0x20] sm:$0xff]
      %v586 = vld [vmem:[#allocation2 + $0x30] sm:$0xff]
      %v587 = vld [vmem:[#allocation2 + $0x40] sm:$0xff]
      %v588 = vld [vmem:[#allocation2 + $0x50] sm:$0xff]
      %v589 = vld [vmem:[#allocation2 + $0x60] sm:$0xff]
      %v590 = vld [vmem:[#allocation2 + $0x70] sm:$0xff]
      %591 = vst.msk [vmem:[#allocation3] sm:$0xff] %vm522, %v583
      %592 = vst.msk [vmem:[#allocation3 + $0x8] sm:$0xff] %vm522, %v584
      %593 = vst.msk [vmem:[#allocation3 + $0x10] sm:$0xff] %vm522, %v585
      %594 = vst.msk [vmem:[#allocation3 + $0x18] sm:$0xff] %vm522, %v586
      %595 = vst.msk [vmem:[#allocation3 + $0x20] sm:$0xff] %vm522, %v587
      %596 = vst.msk [vmem:[#allocation3 + $0x28] sm:$0xff] %vm522, %v588
      %597 = vst.msk [vmem:[#allocation3 + $0x30] sm:$0xff] %vm522, %v589
      %598 = vst.msk [vmem:[#allocation3 + $0x38] sm:$0xff] %vm522, %v590
      %v599 = vld [vmem:[#allocation2 + $0x1] sm:$0xff]
      %v600 = vld [vmem:[#allocation2 + $0x11] sm:$0xff]
      %v601 = vld [vmem:[#allocation2 + $0x21] sm:$0xff]
      %v602 = vld [vmem:[#allocation2 + $0x31] sm:$0xff]
      %v603 = vld [vmem:[#allocation2 + $0x41] sm:$0xff]
      %v604 = vld [vmem:[#allocation2 + $0x51] sm:$0xff]
      %v605 = vld [vmem:[#allocation2 + $0x61] sm:$0xff]
      %v606 = vld [vmem:[#allocation2 + $0x71] sm:$0xff]
      %615 = vrot.lane.b32.xlu0 %v599, 4
      %v616 = vpop.permute.xlu0 %615
      %617 = vrot.lane.b32.xlu0 %v600, 4
      %v618 = vpop.permute.xlu0 %617
      %619 = vrot.lane.b32.xlu0 %v601, 4
      %v620 = vpop.permute.xlu0 %619
      %621 = vrot.lane.b32.xlu0 %v602, 4
      %v622 = vpop.permute.xlu0 %621
      %623 = vrot.lane.b32.xlu0 %v603, 4
      %v624 = vpop.permute.xlu0 %623
      %625 = vrot.lane.b32.xlu0 %v604, 4
      %v626 = vpop.permute.xlu0 %625
      %627 = vrot.lane.b32.xlu0 %v605, 4
      %v628 = vpop.permute.xlu0 %627
      %629 = vrot.lane.b32.xlu0 %v606, 4
      %v630 = vpop.permute.xlu0 %629
      %vm639 = vcmask 64544
      %640 = vst.msk [vmem:[#allocation3] sm:$0xff] %vm639, %v616
      %641 = vst.msk [vmem:[#allocation3 + $0x8] sm:$0xff] %vm639, %v618
      %642 = vst.msk [vmem:[#allocation3 + $0x10] sm:$0xff] %vm639, %v620
      %643 = vst.msk [vmem:[#allocation3 + $0x18] sm:$0xff] %vm639, %v622
      %644 = vst.msk [vmem:[#allocation3 + $0x20] sm:$0xff] %vm639, %v624
      %645 = vst.msk [vmem:[#allocation3 + $0x28] sm:$0xff] %vm639, %v626
      %646 = vst.msk [vmem:[#allocation3 + $0x30] sm:$0xff] %vm639, %v628
      %647 = vst.msk [vmem:[#allocation3 + $0x38] sm:$0xff] %vm639, %v630
      %v648 = vld [vmem:[#allocation2 + $0x2] sm:$0xff]
      %v649 = vld [vmem:[#allocation2 + $0x12] sm:$0xff]
      %v650 = vld [vmem:[#allocation2 + $0x22] sm:$0xff]
      %v651 = vld [vmem:[#allocation2 + $0x32] sm:$0xff]
      %v652 = vld [vmem:[#allocation2 + $0x42] sm:$0xff]
      %v653 = vld [vmem:[#allocation2 + $0x52] sm:$0xff]
      %v654 = vld [vmem:[#allocation2 + $0x62] sm:$0xff]
      %v655 = vld [vmem:[#allocation2 + $0x72] sm:$0xff]
      %664 = vrot.lane.b32.xlu0 %v648, 8
      %v665 = vpop.permute.xlu0 %664
      %666 = vrot.lane.b32.xlu0 %v649, 8
      %v667 = vpop.permute.xlu0 %666
      %668 = vrot.lane.b32.xlu0 %v650, 8
      %v669 = vpop.permute.xlu0 %668
      %670 = vrot.lane.b32.xlu0 %v651, 8
      %v671 = vpop.permute.xlu0 %670
      %672 = vrot.lane.b32.xlu0 %v652, 8
      %v673 = vpop.permute.xlu0 %672
      %674 = vrot.lane.b32.xlu0 %v653, 8
      %v675 = vpop.permute.xlu0 %674
      %676 = vrot.lane.b32.xlu0 %v654, 8
      %v677 = vpop.permute.xlu0 %676
      %678 = vrot.lane.b32.xlu0 %v655, 8
      %v679 = vpop.permute.xlu0 %678
      %vm688 = vcmask 97344
      %689 = vst.msk [vmem:[#allocation3] sm:$0xff] %vm688, %v665
      %690 = vst.msk [vmem:[#allocation3 + $0x8] sm:$0xff] %vm688, %v667
      %691 = vst.msk [vmem:[#allocation3 + $0x10] sm:$0xff] %vm688, %v669
      %692 = vst.msk [vmem:[#allocation3 + $0x18] sm:$0xff] %vm688, %v671
      %693 = vst.msk [vmem:[#allocation3 + $0x20] sm:$0xff] %vm688, %v673
      %694 = vst.msk [vmem:[#allocation3 + $0x28] sm:$0xff] %vm688, %v675
      %695 = vst.msk [vmem:[#allocation3 + $0x30] sm:$0xff] %vm688, %v677
      %696 = vst.msk [vmem:[#allocation3 + $0x38] sm:$0xff] %vm688, %v679
      %v697 = vld [vmem:[%s572] sm:$0xff]
      %v698 = vld [vmem:[%s572 + $0x10] sm:$0xff]
      %v699 = vld [vmem:[%s572 + $0x20] sm:$0xff]
      %v700 = vld [vmem:[%s572 + $0x30] sm:$0xff]
      %v701 = vld [vmem:[%s572 + $0x40] sm:$0xff]
      %v702 = vld [vmem:[%s572 + $0x50] sm:$0xff]
      %v703 = vld [vmem:[%s572 + $0x60] sm:$0xff]
      %v704 = vld [vmem:[%s572 + $0x70] sm:$0xff]
      %713 = vrot.lane.b32.xlu0 %v697, 12
      %v714 = vpop.permute.xlu0 %713
      %715 = vrot.lane.b32.xlu0 %v698, 12
      %v716 = vpop.permute.xlu0 %715
      %717 = vrot.lane.b32.xlu0 %v699, 12
      %v718 = vpop.permute.xlu0 %717
      %719 = vrot.lane.b32.xlu0 %v700, 12
      %v720 = vpop.permute.xlu0 %719
      %721 = vrot.lane.b32.xlu0 %v701, 12
      %v722 = vpop.permute.xlu0 %721
      %723 = vrot.lane.b32.xlu0 %v702, 12
      %v724 = vpop.permute.xlu0 %723
      %725 = vrot.lane.b32.xlu0 %v703, 12
      %v726 = vpop.permute.xlu0 %725
      %727 = vrot.lane.b32.xlu0 %v704, 12
      %v728 = vpop.permute.xlu0 %727
      %vm737 = vcmask 130144
      %738 = vst.msk [vmem:[#allocation3] sm:$0xff] %vm737, %v714
      %739 = vst.msk [vmem:[#allocation3 + $0x8] sm:$0xff] %vm737, %v716
      %740 = vst.msk [vmem:[#allocation3 + $0x10] sm:$0xff] %vm737, %v718
      %741 = vst.msk [vmem:[#allocation3 + $0x18] sm:$0xff] %vm737, %v720
      %742 = vst.msk [vmem:[#allocation3 + $0x20] sm:$0xff] %vm737, %v722
      %743 = vst.msk [vmem:[#allocation3 + $0x28] sm:$0xff] %vm737, %v724
      %744 = vst.msk [vmem:[#allocation3 + $0x30] sm:$0xff] %vm737, %v726
      %745 = vst.msk [vmem:[#allocation3 + $0x38] sm:$0xff] %vm737, %v728
      %v746 = vld [vmem:[%s572 + $0x1] sm:$0xff]
      %v747 = vld [vmem:[%s572 + $0x11] sm:$0xff]
      %v748 = vld [vmem:[%s572 + $0x21] sm:$0xff]
      %v749 = vld [vmem:[%s572 + $0x31] sm:$0xff]
      %v750 = vld [vmem:[%s572 + $0x41] sm:$0xff]
      %v751 = vld [vmem:[%s572 + $0x51] sm:$0xff]
      %v752 = vld [vmem:[%s572 + $0x61] sm:$0xff]
      %v753 = vld [vmem:[%s572 + $0x71] sm:$0xff]
      %762 = vrot.lane.b32.xlu0 %v746, 16
      %v763 = vpop.permute.xlu0 %762
      %764 = vrot.lane.b32.xlu0 %v747, 16
      %v765 = vpop.permute.xlu0 %764
      %766 = vrot.lane.b32.xlu0 %v748, 16
      %v767 = vpop.permute.xlu0 %766
      %768 = vrot.lane.b32.xlu0 %v749, 16
      %v769 = vpop.permute.xlu0 %768
      %770 = vrot.lane.b32.xlu0 %v750, 16
      %v771 = vpop.permute.xlu0 %770
      %772 = vrot.lane.b32.xlu0 %v751, 16
      %v773 = vpop.permute.xlu0 %772
      %774 = vrot.lane.b32.xlu0 %v752, 16
      %v775 = vpop.permute.xlu0 %774
      %776 = vrot.lane.b32.xlu0 %v753, 16
      %v777 = vpop.permute.xlu0 %776
      %vm786 = vcmask 162944
      %787 = vst.msk [vmem:[#allocation3] sm:$0xff] %vm786, %v763
      %788 = vst.msk [vmem:[#allocation3 + $0x8] sm:$0xff] %vm786, %v765
      %789 = vst.msk [vmem:[#allocation3 + $0x10] sm:$0xff] %vm786, %v767
      %790 = vst.msk [vmem:[#allocation3 + $0x18] sm:$0xff] %vm786, %v769
      %791 = vst.msk [vmem:[#allocation3 + $0x20] sm:$0xff] %vm786, %v771
      %792 = vst.msk [vmem:[#allocation3 + $0x28] sm:$0xff] %vm786, %v773
      %793 = vst.msk [vmem:[#allocation3 + $0x30] sm:$0xff] %vm786, %v775
      %794 = vst.msk [vmem:[#allocation3 + $0x38] sm:$0xff] %vm786, %v777
      %v795 = vld [vmem:[%s572 + $0x2] sm:$0xff]
      %v796 = vld [vmem:[%s572 + $0x12] sm:$0xff]
      %v797 = vld [vmem:[%s572 + $0x22] sm:$0xff]
      %v798 = vld [vmem:[%s572 + $0x32] sm:$0xff]
      %v799 = vld [vmem:[%s572 + $0x42] sm:$0xff]
      %v800 = vld [vmem:[%s572 + $0x52] sm:$0xff]
      %v801 = vld [vmem:[%s572 + $0x62] sm:$0xff]
      %v802 = vld [vmem:[%s572 + $0x72] sm:$0xff]
      %811 = vrot.lane.b32.xlu0 %v795, 20
      %v812 = vpop.permute.xlu0 %811
      %813 = vrot.lane.b32.xlu0 %v796, 20
      %v814 = vpop.permute.xlu0 %813
      %815 = vrot.lane.b32.xlu0 %v797, 20
      %v816 = vpop.permute.xlu0 %815
      %817 = vrot.lane.b32.xlu0 %v798, 20
      %v818 = vpop.permute.xlu0 %817
      %819 = vrot.lane.b32.xlu0 %v799, 20
      %v820 = vpop.permute.xlu0 %819
      %821 = vrot.lane.b32.xlu0 %v800, 20
      %v822 = vpop.permute.xlu0 %821
      %823 = vrot.lane.b32.xlu0 %v801, 20
      %v824 = vpop.permute.xlu0 %823
      %825 = vrot.lane.b32.xlu0 %v802, 20
      %v826 = vpop.permute.xlu0 %825
      %vm835 = vcmask 195744
      %836 = vst.msk [vmem:[#allocation3] sm:$0xff] %vm835, %v812
      %837 = vst.msk [vmem:[#allocation3 + $0x8] sm:$0xff] %vm835, %v814
      %838 = vst.msk [vmem:[#allocation3 + $0x10] sm:$0xff] %vm835, %v816
      %839 = vst.msk [vmem:[#allocation3 + $0x18] sm:$0xff] %vm835, %v818
      %840 = vst.msk [vmem:[#allocation3 + $0x20] sm:$0xff] %vm835, %v820
      %841 = vst.msk [vmem:[#allocation3 + $0x28] sm:$0xff] %vm835, %v822
      %842 = vst.msk [vmem:[#allocation3 + $0x30] sm:$0xff] %vm835, %v824
      %843 = vst.msk [vmem:[#allocation3 + $0x38] sm:$0xff] %vm835, %v826
      %s844 = scalar_lea.vmem [#allocation2], 32
      %v845 = vld [vmem:[%s844] sm:$0xff]
      %v846 = vld [vmem:[%s844 + $0x10] sm:$0xff]
      %v847 = vld [vmem:[%s844 + $0x20] sm:$0xff]
      %v848 = vld [vmem:[%s844 + $0x30] sm:$0xff]
      %v849 = vld [vmem:[%s844 + $0x40] sm:$0xff]
      %v850 = vld [vmem:[%s844 + $0x50] sm:$0xff]
      %v851 = vld [vmem:[%s844 + $0x60] sm:$0xff]
      %v852 = vld [vmem:[%s844 + $0x70] sm:$0xff]
      %861 = vrot.lane.b32.xlu0 %v845, 24
      %v862 = vpop.permute.xlu0 %861
      %863 = vrot.lane.b32.xlu0 %v846, 24
      %v864 = vpop.permute.xlu0 %863
      %865 = vrot.lane.b32.xlu0 %v847, 24
      %v866 = vpop.permute.xlu0 %865
      %867 = vrot.lane.b32.xlu0 %v848, 24
      %v868 = vpop.permute.xlu0 %867
      %869 = vrot.lane.b32.xlu0 %v849, 24
      %v870 = vpop.permute.xlu0 %869
      %871 = vrot.lane.b32.xlu0 %v850, 24
      %v872 = vpop.permute.xlu0 %871
      %873 = vrot.lane.b32.xlu0 %v851, 24
      %v874 = vpop.permute.xlu0 %873
      %875 = vrot.lane.b32.xlu0 %v852, 24
      %v876 = vpop.permute.xlu0 %875
      %vm885 = vcmask 228544
      %886 = vst.msk [vmem:[#allocation3] sm:$0xff] %vm885, %v862
      %887 = vst.msk [vmem:[#allocation3 + $0x8] sm:$0xff] %vm885, %v864
      %888 = vst.msk [vmem:[#allocation3 + $0x10] sm:$0xff] %vm885, %v866
      %889 = vst.msk [vmem:[#allocation3 + $0x18] sm:$0xff] %vm885, %v868
      %890 = vst.msk [vmem:[#allocation3 + $0x20] sm:$0xff] %vm885, %v870
      %891 = vst.msk [vmem:[#allocation3 + $0x28] sm:$0xff] %vm885, %v872
      %892 = vst.msk [vmem:[#allocation3 + $0x30] sm:$0xff] %vm885, %v874
      %893 = vst.msk [vmem:[#allocation3 + $0x38] sm:$0xff] %vm885, %v876
      %v894 = vld [vmem:[%s844 + $0x1] sm:$0xff]
      %v895 = vld [vmem:[%s844 + $0x11] sm:$0xff]
      %v896 = vld [vmem:[%s844 + $0x21] sm:$0xff]
      %v897 = vld [vmem:[%s844 + $0x31] sm:$0xff]
      %v898 = vld [vmem:[%s844 + $0x41] sm:$0xff]
      %v899 = vld [vmem:[%s844 + $0x51] sm:$0xff]
      %v900 = vld [vmem:[%s844 + $0x61] sm:$0xff]
      %v901 = vld [vmem:[%s844 + $0x71] sm:$0xff]
      %910 = vrot.lane.b32.xlu0 %v894, 28
      %v911 = vpop.permute.xlu0 %910
      %912 = vrot.lane.b32.xlu0 %v895, 28
      %v913 = vpop.permute.xlu0 %912
      %914 = vrot.lane.b32.xlu0 %v896, 28
      %v915 = vpop.permute.xlu0 %914
      %916 = vrot.lane.b32.xlu0 %v897, 28
      %v917 = vpop.permute.xlu0 %916
      %918 = vrot.lane.b32.xlu0 %v898, 28
      %v919 = vpop.permute.xlu0 %918
      %920 = vrot.lane.b32.xlu0 %v899, 28
      %v921 = vpop.permute.xlu0 %920
      %922 = vrot.lane.b32.xlu0 %v900, 28
      %v923 = vpop.permute.xlu0 %922
      %924 = vrot.lane.b32.xlu0 %v901, 28
      %v925 = vpop.permute.xlu0 %924
      %vm934 = vcmask 261344
      %935 = vst.msk [vmem:[#allocation3] sm:$0xff] %vm934, %v911
      %936 = vst.msk [vmem:[#allocation3 + $0x8] sm:$0xff] %vm934, %v913
      %937 = vst.msk [vmem:[#allocation3 + $0x10] sm:$0xff] %vm934, %v915
      %938 = vst.msk [vmem:[#allocation3 + $0x18] sm:$0xff] %vm934, %v917
      %939 = vst.msk [vmem:[#allocation3 + $0x20] sm:$0xff] %vm934, %v919
      %940 = vst.msk [vmem:[#allocation3 + $0x28] sm:$0xff] %vm934, %v921
      %941 = vst.msk [vmem:[#allocation3 + $0x30] sm:$0xff] %vm934, %v923
      %942 = vst.msk [vmem:[#allocation3 + $0x38] sm:$0xff] %vm934, %v925
      %v943 = vld [vmem:[%s844 + $0x2] sm:$0xff]
      %v944 = vld [vmem:[%s844 + $0x12] sm:$0xff]
      %v945 = vld [vmem:[%s844 + $0x22] sm:$0xff]
      %v946 = vld [vmem:[%s844 + $0x32] sm:$0xff]
      %v947 = vld [vmem:[%s844 + $0x42] sm:$0xff]
      %v948 = vld [vmem:[%s844 + $0x52] sm:$0xff]
      %v949 = vld [vmem:[%s844 + $0x62] sm:$0xff]
      %v950 = vld [vmem:[%s844 + $0x72] sm:$0xff]
      %959 = vrot.lane.b32.xlu0 %v943, 32
      %v960 = vpop.permute.xlu0 %959
      %961 = vrot.lane.b32.xlu0 %v944, 32
      %v962 = vpop.permute.xlu0 %961
      %963 = vrot.lane.b32.xlu0 %v945, 32
      %v964 = vpop.permute.xlu0 %963
      %965 = vrot.lane.b32.xlu0 %v946, 32
      %v966 = vpop.permute.xlu0 %965
      %967 = vrot.lane.b32.xlu0 %v947, 32
      %v968 = vpop.permute.xlu0 %967
      %969 = vrot.lane.b32.xlu0 %v948, 32
      %v970 = vpop.permute.xlu0 %969
      %971 = vrot.lane.b32.xlu0 %v949, 32
      %v972 = vpop.permute.xlu0 %971
      %973 = vrot.lane.b32.xlu0 %v950, 32
      %v974 = vpop.permute.xlu0 %973
      %vm983 = vcmask 294144
      %984 = vst.msk [vmem:[#allocation3] sm:$0xff] %vm983, %v960
      %985 = vst.msk [vmem:[#allocation3 + $0x8] sm:$0xff] %vm983, %v962
      %986 = vst.msk [vmem:[#allocation3 + $0x10] sm:$0xff] %vm983, %v964
      %987 = vst.msk [vmem:[#allocation3 + $0x18] sm:$0xff] %vm983, %v966
      %988 = vst.msk [vmem:[#allocation3 + $0x20] sm:$0xff] %vm983, %v968
      %989 = vst.msk [vmem:[#allocation3 + $0x28] sm:$0xff] %vm983, %v970
      %990 = vst.msk [vmem:[#allocation3 + $0x30] sm:$0xff] %vm983, %v972
      %991 = vst.msk [vmem:[#allocation3 + $0x38] sm:$0xff] %vm983, %v974
      %v992 = vld [vmem:[#allocation3] sm:$0xff]
      %v993 = vld [vmem:[#allocation3 + $0x8] sm:$0xff]
      %v994 = vld [vmem:[#allocation3 + $0x10] sm:$0xff]
      %v995 = vld [vmem:[#allocation3 + $0x18] sm:$0xff]
      %v996 = vld [vmem:[#allocation3 + $0x20] sm:$0xff]
      %v997 = vld [vmem:[#allocation3 + $0x28] sm:$0xff]
      %v998 = vld [vmem:[#allocation3 + $0x30] sm:$0xff]
      %v999 = vld [vmem:[#allocation3 + $0x38] sm:$0xff]
      %v1000 = vld [vmem:[%s1] sm:$0xff]
      %v1001 = vld [vmem:[%s1 + $0x8] sm:$0xff]
      %v1002 = vld [vmem:[%s1 + $0x10] sm:$0xff]
      %v1003 = vld [vmem:[%s1 + $0x18] sm:$0xff]
      %v1004 = vld [vmem:[%s1 + $0x20] sm:$0xf]
      %vm1005 = vcmask 293888
      %v1007 = vsel %vm1005, %v992, 0
      %v1010 = vsel %vm1005, %v993, 0
      %v1013 = vsel %vm1005, %v994, 0
      %v1016 = vsel %vm1005, %v995, 0
      %v1019 = vsel %vm1005, %v996, 0
      %v1022 = vsel %vm1005, %v997, 0
      %v1025 = vsel %vm1005, %v998, 0
      %v1028 = vsel %vm1005, %v999, 0
      %vm1030 = vcmask 1043456
      %v1032 = vsel %vm1030, %v1004, 0
      %1034 = vmatprep.subr.mxu0 0.0
      %1035 = vmatpush1.msra.mxu0 0.0
      %1036 = vmatprep.subr.mxu0 0.0
      %1037 = vmatpush1.msra.mxu0 0.0
      %1038 = vmatprep.subr.mxu0 0.0
      %1039 = vmatpush1.msra.mxu0 0.0
      %1040 = vmatprep.subr.mxu0 0.0
      %1041 = vmatpush1.msra.mxu0 0.0
      %1042 = vmatprep.subr.mxu0 0.0
      %1043 = vmatpush1.msra.mxu0 0.0
      %1044 = vmatprep.subr.mxu0 0.0
      %1045 = vmatpush1.msra.mxu0 0.0
      %1046 = vmatprep.subr.mxu0 0.0
      %1047 = vmatpush1.msra.mxu0 0.0
      %1048 = vmatprep.subr.mxu0 0.0
      %1049 = vmatpush1.msra.mxu0 0.0
      %1050 = vmatprep.subr.mxu0 0.0
      %1051 = vmatpush1.msra.mxu0 0.0
      %1052 = vmatprep.subr.mxu0 0.0
      %1053 = vmatpush1.msra.mxu0 0.0
      %1054 = vmatprep.subr.mxu0 0.0
      %1055 = vmatpush1.msra.mxu0 0.0
      %1056 = vmatprep.subr.mxu0 0.0
      %1057 = vmatpush1.msra.mxu0 %v1032
      %1058 = vmatprep.subr.mxu0 0.0
      %1059 = vmatpush1.msra.mxu0 %v1003
      %1060 = vmatprep.subr.mxu0 0.0
      %1061 = vmatpush1.msra.mxu0 %v1002
      %1062 = vmatprep.subr.mxu0 0.0
      %1063 = vmatpush1.msra.mxu0 %v1001
      %1064 = vmatprep.subr.mxu0 0.0
      %1065 = vmatpush1.msra.mxu0 %v1000
      %1066 = vmatprep.subr.mxu0 0.0
      %1067 = vmatpush2.msra.mxu0 0.0
      %1068 = vmatprep.subr.mxu0 0.0
      %1069 = vmatpush2.msra.mxu0 0.0
      %1070 = vmatprep.subr.mxu0 0.0
      %1071 = vmatpush2.msra.mxu0 0.0
      %1072 = vmatprep.subr.mxu0 0.0
      %1073 = vmatpush2.msra.mxu0 0.0
      %1074 = vmatprep.subr.mxu0 0.0
      %1075 = vmatpush2.msra.mxu0 0.0
      %1076 = vmatprep.subr.mxu0 0.0
      %1077 = vmatpush2.msra.mxu0 0.0
      %1078 = vmatprep.subr.mxu0 0.0
      %1079 = vmatpush2.msra.mxu0 0.0
      %1080 = vmatprep.subr.mxu0 0.0
      %1081 = vmatpush2.msra.mxu0 0.0
      %1082 = vmatprep.subr.mxu0 0.0
      %1083 = vmatpush2.msra.mxu0 0.0
      %1084 = vmatprep.subr.mxu0 0.0
      %1085 = vmatpush2.msra.mxu0 0.0
      %1086 = vmatprep.subr.mxu0 0.0
      %1087 = vmatpush2.msra.mxu0 0.0
      %1088 = vmatprep.subr.mxu0 0.0
      %1089 = vmatpush2.msra.mxu0 0.0
      %1090 = vmatprep.subr.mxu0 0.0
      %1091 = vmatpush2.msra.mxu0 0.0
      %1092 = vmatprep.subr.mxu0 0.0
      %1093 = vmatpush2.msra.mxu0 0.0
      %1094 = vmatprep.subr.mxu0 0.0
      %1095 = vmatpush2.msra.mxu0 0.0
      %1096 = vmatprep.subr.mxu0 0.0
      %1097 = vmatpush2.msra.mxu0 0.0
      %1098 = vmatprep.mubr.f32.mxu0 0.0
      %1099 = vmatmul.mubr.f32.gmra.mxu0 %v1007
      %v1100 = vpop.f32.mrf.mxu0
      %v1101 = vadd.f32 0.0, %v1100
      %v1102 = vpop.f32.mrf.mxu0
      %1103 = vmatprep.mubr.f32.mxu0 0.0
      %1104 = vmatmul.mubr.f32.gmra.mxu0 %v1010
      %v1105 = vpop.f32.mrf.mxu0
      %v1106 = vadd.f32 0.0, %v1105
      %v1107 = vpop.f32.mrf.mxu0
      %1108 = vmatprep.mubr.f32.mxu0 0.0
      %1109 = vmatmul.mubr.f32.gmra.mxu0 %v1013
      %v1110 = vpop.f32.mrf.mxu0
      %v1111 = vadd.f32 0.0, %v1110
      %v1112 = vpop.f32.mrf.mxu0
      %1113 = vmatprep.mubr.f32.mxu0 0.0
      %1114 = vmatmul.mubr.f32.gmra.mxu0 %v1016
      %v1115 = vpop.f32.mrf.mxu0
      %v1116 = vadd.f32 0.0, %v1115
      %v1117 = vpop.f32.mrf.mxu0
      %1118 = vmatprep.mubr.f32.mxu0 0.0
      %1119 = vmatmul.mubr.f32.gmra.mxu0 %v1019
      %v1120 = vpop.f32.mrf.mxu0
      %v1121 = vadd.f32 0.0, %v1120
      %v1122 = vpop.f32.mrf.mxu0
      %1123 = vmatprep.mubr.f32.mxu0 0.0
      %1124 = vmatmul.mubr.f32.gmra.mxu0 %v1022
      %v1125 = vpop.f32.mrf.mxu0
      %v1126 = vadd.f32 0.0, %v1125
      %v1127 = vpop.f32.mrf.mxu0
      %1128 = vmatprep.mubr.f32.mxu0 0.0
      %1129 = vmatmul.mubr.f32.gmra.mxu0 %v1025
      %v1130 = vpop.f32.mrf.mxu0
      %v1131 = vadd.f32 0.0, %v1130
      %v1132 = vpop.f32.mrf.mxu0
      %1133 = vmatprep.mubr.f32.mxu0 0.0
      %1134 = vmatmul.mubr.f32.gmra.mxu0 %v1028
      %v1135 = vpop.f32.mrf.mxu0
      %v1136 = vadd.f32 0.0, %v1135
      %v1137 = vpop.f32.mrf.mxu0
      %1138 = vdwg.mxu0
      %v1140 = vlaneseq
      %v1141 = vshrl.u32 %v1140, 7
      %v1142 = vsub.s32 0, %v1141
      %v1143 = vrot.slane %v581, %v1142
      %v1145 = vmul.f32 %v1101, %v1143
      %v1146 = vmul.f32 %v1106, %v1143
      %v1147 = vmul.f32 %v1111, %v1143
      %v1148 = vmul.f32 %v1116, %v1143
      %v1149 = vmul.f32 %v1121, %v1143
      %v1150 = vmul.f32 %v1126, %v1143
      %v1151 = vmul.f32 %v1131, %v1143
      %v1152 = vmul.f32 %v1136, %v1143
      %v1154 = vlaneseq
      %v1155 = vshrl.u32 %v1154, 7
      %v1156 = vsub.s32 0, %v1155
      %v1157 = vrot.slane %v582, %v1156
      %v1159 = vadd.f32 %v1145, %v1157
      %v1160 = vadd.f32 %v1146, %v1157
      %v1161 = vadd.f32 %v1147, %v1157
      %v1162 = vadd.f32 %v1148, %v1157
      %v1163 = vadd.f32 %v1149, %v1157
      %v1164 = vadd.f32 %v1150, %v1157
      %v1165 = vadd.f32 %v1151, %v1157
      %v1166 = vadd.f32 %v1152, %v1157
      %v1167 = vmax.f32 %v1159, 0.0
      %v1168 = vmax.f32 %v1160, 0.0
      %v1169 = vmax.f32 %v1161, 0.0
      %v1170 = vmax.f32 %v1162, 0.0
      %v1171 = vmax.f32 %v1163, 0.0
      %v1172 = vmax.f32 %v1164, 0.0
      %v1173 = vmax.f32 %v1165, 0.0
      %v1174 = vmax.f32 %v1166, 0.0
      %1175 = vst.msk [vmem:[%s572 + $0x1] sm:$0xff] %vm522, %v1167
      %1176 = vst.msk [vmem:[%s572 + $0x11] sm:$0xff] %vm522, %v1168
      %1177 = vst.msk [vmem:[%s572 + $0x21] sm:$0xff] %vm522, %v1169
      %1178 = vst.msk [vmem:[%s572 + $0x31] sm:$0xff] %vm522, %v1170
      %1179 = vst.msk [vmem:[%s572 + $0x41] sm:$0xff] %vm522, %v1171
      %1180 = vst.msk [vmem:[%s572 + $0x51] sm:$0xff] %vm522, %v1172
      %1181 = vst.msk [vmem:[%s572 + $0x61] sm:$0xff] %vm522, %v1173
      %1182 = vst.msk [vmem:[%s572 + $0x71] sm:$0xff] %vm522, %v1174
      %v1183 = vld [vmem:[%s5] sm:$0x1]
      %v1184 = vld [vmem:[%s6] sm:$0x1]
      %v1185 = vld [vmem:[#allocation2] sm:$0xff]
      %v1186 = vld [vmem:[#allocation2 + $0x10] sm:$0xff]
      %v1187 = vld [vmem:[#allocation2 + $0x20] sm:$0xff]
      %v1188 = vld [vmem:[#allocation2 + $0x30] sm:$0xff]
      %v1189 = vld [vmem:[#allocation2 + $0x40] sm:$0xff]
      %v1190 = vld [vmem:[#allocation2 + $0x50] sm:$0xff]
      %v1191 = vld [vmem:[#allocation2 + $0x60] sm:$0xff]
      %v1192 = vld [vmem:[#allocation2 + $0x70] sm:$0xff]
      %1193 = vst.msk [vmem:[#allocation3] sm:$0xff] %vm522, %v1185
      %1194 = vst.msk [vmem:[#allocation3 + $0x8] sm:$0xff] %vm522, %v1186
      %1195 = vst.msk [vmem:[#allocation3 + $0x10] sm:$0xff] %vm522, %v1187
      %1196 = vst.msk [vmem:[#allocation3 + $0x18] sm:$0xff] %vm522, %v1188
      %1197 = vst.msk [vmem:[#allocation3 + $0x20] sm:$0xff] %vm522, %v1189
      %1198 = vst.msk [vmem:[#allocation3 + $0x28] sm:$0xff] %vm522, %v1190
      %1199 = vst.msk [vmem:[#allocation3 + $0x30] sm:$0xff] %vm522, %v1191
      %1200 = vst.msk [vmem:[#allocation3 + $0x38] sm:$0xff] %vm522, %v1192
      %v1201 = vld [vmem:[#allocation2 + $0x1] sm:$0xff]
      %v1202 = vld [vmem:[#allocation2 + $0x11] sm:$0xff]
      %v1203 = vld [vmem:[#allocation2 + $0x21] sm:$0xff]
      %v1204 = vld [vmem:[#allocation2 + $0x31] sm:$0xff]
      %v1205 = vld [vmem:[#allocation2 + $0x41] sm:$0xff]
      %v1206 = vld [vmem:[#allocation2 + $0x51] sm:$0xff]
      %v1207 = vld [vmem:[#allocation2 + $0x61] sm:$0xff]
      %v1208 = vld [vmem:[#allocation2 + $0x71] sm:$0xff]
      %1217 = vrot.lane.b32.xlu0 %v1201, 4
      %v1218 = vpop.permute.xlu0 %1217
      %1219 = vrot.lane.b32.xlu0 %v1202, 4
      %v1220 = vpop.permute.xlu0 %1219
      %1221 = vrot.lane.b32.xlu0 %v1203, 4
      %v1222 = vpop.permute.xlu0 %1221
      %1223 = vrot.lane.b32.xlu0 %v1204, 4
      %v1224 = vpop.permute.xlu0 %1223
      %1225 = vrot.lane.b32.xlu0 %v1205, 4
      %v1226 = vpop.permute.xlu0 %1225
      %1227 = vrot.lane.b32.xlu0 %v1206, 4
      %v1228 = vpop.permute.xlu0 %1227
      %1229 = vrot.lane.b32.xlu0 %v1207, 4
      %v1230 = vpop.permute.xlu0 %1229
      %1231 = vrot.lane.b32.xlu0 %v1208, 4
      %v1232 = vpop.permute.xlu0 %1231
      %1241 = vst.msk [vmem:[#allocation3] sm:$0xff] %vm639, %v1218
      %1242 = vst.msk [vmem:[#allocation3 + $0x8] sm:$0xff] %vm639, %v1220
      %1243 = vst.msk [vmem:[#allocation3 + $0x10] sm:$0xff] %vm639, %v1222
      %1244 = vst.msk [vmem:[#allocation3 + $0x18] sm:$0xff] %vm639, %v1224
      %1245 = vst.msk [vmem:[#allocation3 + $0x20] sm:$0xff] %vm639, %v1226
      %1246 = vst.msk [vmem:[#allocation3 + $0x28] sm:$0xff] %vm639, %v1228
      %1247 = vst.msk [vmem:[#allocation3 + $0x30] sm:$0xff] %vm639, %v1230
      %1248 = vst.msk [vmem:[#allocation3 + $0x38] sm:$0xff] %vm639, %v1232
      %v1249 = vld [vmem:[#allocation2 + $0x2] sm:$0xff]
      %v1250 = vld [vmem:[#allocation2 + $0x12] sm:$0xff]
      %v1251 = vld [vmem:[#allocation2 + $0x22] sm:$0xff]
      %v1252 = vld [vmem:[#allocation2 + $0x32] sm:$0xff]
      %v1253 = vld [vmem:[#allocation2 + $0x42] sm:$0xff]
      %v1254 = vld [vmem:[#allocation2 + $0x52] sm:$0xff]
      %v1255 = vld [vmem:[#allocation2 + $0x62] sm:$0xff]
      %v1256 = vld [vmem:[#allocation2 + $0x72] sm:$0xff]
      %1265 = vrot.lane.b32.xlu0 %v1249, 8
      %v1266 = vpop.permute.xlu0 %1265
      %1267 = vrot.lane.b32.xlu0 %v1250, 8
      %v1268 = vpop.permute.xlu0 %1267
      %1269 = vrot.lane.b32.xlu0 %v1251, 8
      %v1270 = vpop.permute.xlu0 %1269
      %1271 = vrot.lane.b32.xlu0 %v1252, 8
      %v1272 = vpop.permute.xlu0 %1271
      %1273 = vrot.lane.b32.xlu0 %v1253, 8
      %v1274 = vpop.permute.xlu0 %1273
      %1275 = vrot.lane.b32.xlu0 %v1254, 8
      %v1276 = vpop.permute.xlu0 %1275
      %1277 = vrot.lane.b32.xlu0 %v1255, 8
      %v1278 = vpop.permute.xlu0 %1277
      %1279 = vrot.lane.b32.xlu0 %v1256, 8
      %v1280 = vpop.permute.xlu0 %1279
      %1289 = vst.msk [vmem:[#allocation3] sm:$0xff] %vm688, %v1266
      %1290 = vst.msk [vmem:[#allocation3 + $0x8] sm:$0xff] %vm688, %v1268
      %1291 = vst.msk [vmem:[#allocation3 + $0x10] sm:$0xff] %vm688, %v1270
      %1292 = vst.msk [vmem:[#allocation3 + $0x18] sm:$0xff] %vm688, %v1272
      %1293 = vst.msk [vmem:[#allocation3 + $0x20] sm:$0xff] %vm688, %v1274
      %1294 = vst.msk [vmem:[#allocation3 + $0x28] sm:$0xff] %vm688, %v1276
      %1295 = vst.msk [vmem:[#allocation3 + $0x30] sm:$0xff] %vm688, %v1278
      %1296 = vst.msk [vmem:[#allocation3 + $0x38] sm:$0xff] %vm688, %v1280
      %v1297 = vld [vmem:[%s572] sm:$0xff]
      %v1298 = vld [vmem:[%s572 + $0x10] sm:$0xff]
      %v1299 = vld [vmem:[%s572 + $0x20] sm:$0xff]
      %v1300 = vld [vmem:[%s572 + $0x30] sm:$0xff]
      %v1301 = vld [vmem:[%s572 + $0x40] sm:$0xff]
      %v1302 = vld [vmem:[%s572 + $0x50] sm:$0xff]
      %v1303 = vld [vmem:[%s572 + $0x60] sm:$0xff]
      %v1304 = vld [vmem:[%s572 + $0x70] sm:$0xff]
      %1313 = vrot.lane.b32.xlu0 %v1297, 12
      %v1314 = vpop.permute.xlu0 %1313
      %1315 = vrot.lane.b32.xlu0 %v1298, 12
      %v1316 = vpop.permute.xlu0 %1315
      %1317 = vrot.lane.b32.xlu0 %v1299, 12
      %v1318 = vpop.permute.xlu0 %1317
      %1319 = vrot.lane.b32.xlu0 %v1300, 12
      %v1320 = vpop.permute.xlu0 %1319
      %1321 = vrot.lane.b32.xlu0 %v1301, 12
      %v1322 = vpop.permute.xlu0 %1321
      %1323 = vrot.lane.b32.xlu0 %v1302, 12
      %v1324 = vpop.permute.xlu0 %1323
      %1325 = vrot.lane.b32.xlu0 %v1303, 12
      %v1326 = vpop.permute.xlu0 %1325
      %1327 = vrot.lane.b32.xlu0 %v1304, 12
      %v1328 = vpop.permute.xlu0 %1327
      %1337 = vst.msk [vmem:[#allocation3] sm:$0xff] %vm737, %v1314
      %1338 = vst.msk [vmem:[#allocation3 + $0x8] sm:$0xff] %vm737, %v1316
      %1339 = vst.msk [vmem:[#allocation3 + $0x10] sm:$0xff] %vm737, %v1318
      %1340 = vst.msk [vmem:[#allocation3 + $0x18] sm:$0xff] %vm737, %v1320
      %1341 = vst.msk [vmem:[#allocation3 + $0x20] sm:$0xff] %vm737, %v1322
      %1342 = vst.msk [vmem:[#allocation3 + $0x28] sm:$0xff] %vm737, %v1324
      %1343 = vst.msk [vmem:[#allocation3 + $0x30] sm:$0xff] %vm737, %v1326
      %1344 = vst.msk [vmem:[#allocation3 + $0x38] sm:$0xff] %vm737, %v1328
      %v1345 = vld [vmem:[%s572 + $0x1] sm:$0xff]
      %v1346 = vld [vmem:[%s572 + $0x11] sm:$0xff]
      %v1347 = vld [vmem:[%s572 + $0x21] sm:$0xff]
      %v1348 = vld [vmem:[%s572 + $0x31] sm:$0xff]
      %v1349 = vld [vmem:[%s572 + $0x41] sm:$0xff]
      %v1350 = vld [vmem:[%s572 + $0x51] sm:$0xff]
      %v1351 = vld [vmem:[%s572 + $0x61] sm:$0xff]
      %v1352 = vld [vmem:[%s572 + $0x71] sm:$0xff]
      %1361 = vrot.lane.b32.xlu0 %v1345, 16
      %v1362 = vpop.permute.xlu0 %1361
      %1363 = vrot.lane.b32.xlu0 %v1346, 16
      %v1364 = vpop.permute.xlu0 %1363
      %1365 = vrot.lane.b32.xlu0 %v1347, 16
      %v1366 = vpop.permute.xlu0 %1365
      %1367 = vrot.lane.b32.xlu0 %v1348, 16
      %v1368 = vpop.permute.xlu0 %1367
      %1369 = vrot.lane.b32.xlu0 %v1349, 16
      %v1370 = vpop.permute.xlu0 %1369
      %1371 = vrot.lane.b32.xlu0 %v1350, 16
      %v1372 = vpop.permute.xlu0 %1371
      %1373 = vrot.lane.b32.xlu0 %v1351, 16
      %v1374 = vpop.permute.xlu0 %1373
      %1375 = vrot.lane.b32.xlu0 %v1352, 16
      %v1376 = vpop.permute.xlu0 %1375
      %1385 = vst.msk [vmem:[#allocation3] sm:$0xff] %vm786, %v1362
      %1386 = vst.msk [vmem:[#allocation3 + $0x8] sm:$0xff] %vm786, %v1364
      %1387 = vst.msk [vmem:[#allocation3 + $0x10] sm:$0xff] %vm786, %v1366
      %1388 = vst.msk [vmem:[#allocation3 + $0x18] sm:$0xff] %vm786, %v1368
      %1389 = vst.msk [vmem:[#allocation3 + $0x20] sm:$0xff] %vm786, %v1370
      %1390 = vst.msk [vmem:[#allocation3 + $0x28] sm:$0xff] %vm786, %v1372
      %1391 = vst.msk [vmem:[#allocation3 + $0x30] sm:$0xff] %vm786, %v1374
      %1392 = vst.msk [vmem:[#allocation3 + $0x38] sm:$0xff] %vm786, %v1376
      %v1393 = vld [vmem:[%s572 + $0x2] sm:$0xff]
      %v1394 = vld [vmem:[%s572 + $0x12] sm:$0xff]
      %v1395 = vld [vmem:[%s572 + $0x22] sm:$0xff]
      %v1396 = vld [vmem:[%s572 + $0x32] sm:$0xff]
      %v1397 = vld [vmem:[%s572 + $0x42] sm:$0xff]
      %v1398 = vld [vmem:[%s572 + $0x52] sm:$0xff]
      %v1399 = vld [vmem:[%s572 + $0x62] sm:$0xff]
      %v1400 = vld [vmem:[%s572 + $0x72] sm:$0xff]
      %1409 = vrot.lane.b32.xlu0 %v1393, 20
      %v1410 = vpop.permute.xlu0 %1409
      %1411 = vrot.lane.b32.xlu0 %v1394, 20
      %v1412 = vpop.permute.xlu0 %1411
      %1413 = vrot.lane.b32.xlu0 %v1395, 20
      %v1414 = vpop.permute.xlu0 %1413
      %1415 = vrot.lane.b32.xlu0 %v1396, 20
      %v1416 = vpop.permute.xlu0 %1415
      %1417 = vrot.lane.b32.xlu0 %v1397, 20
      %v1418 = vpop.permute.xlu0 %1417
      %1419 = vrot.lane.b32.xlu0 %v1398, 20
      %v1420 = vpop.permute.xlu0 %1419
      %1421 = vrot.lane.b32.xlu0 %v1399, 20
      %v1422 = vpop.permute.xlu0 %1421
      %1423 = vrot.lane.b32.xlu0 %v1400, 20
      %v1424 = vpop.permute.xlu0 %1423
      %1433 = vst.msk [vmem:[#allocation3] sm:$0xff] %vm835, %v1410
      %1434 = vst.msk [vmem:[#allocation3 + $0x8] sm:$0xff] %vm835, %v1412
      %1435 = vst.msk [vmem:[#allocation3 + $0x10] sm:$0xff] %vm835, %v1414
      %1436 = vst.msk [vmem:[#allocation3 + $0x18] sm:$0xff] %vm835, %v1416
      %1437 = vst.msk [vmem:[#allocation3 + $0x20] sm:$0xff] %vm835, %v1418
      %1438 = vst.msk [vmem:[#allocation3 + $0x28] sm:$0xff] %vm835, %v1420
      %1439 = vst.msk [vmem:[#allocation3 + $0x30] sm:$0xff] %vm835, %v1422
      %1440 = vst.msk [vmem:[#allocation3 + $0x38] sm:$0xff] %vm835, %v1424
      %v1441 = vld [vmem:[%s844] sm:$0xff]
      %v1442 = vld [vmem:[%s844 + $0x10] sm:$0xff]
      %v1443 = vld [vmem:[%s844 + $0x20] sm:$0xff]
      %v1444 = vld [vmem:[%s844 + $0x30] sm:$0xff]
      %v1445 = vld [vmem:[%s844 + $0x40] sm:$0xff]
      %v1446 = vld [vmem:[%s844 + $0x50] sm:$0xff]
      %v1447 = vld [vmem:[%s844 + $0x60] sm:$0xff]
      %v1448 = vld [vmem:[%s844 + $0x70] sm:$0xff]
      %1457 = vrot.lane.b32.xlu0 %v1441, 24
      %v1458 = vpop.permute.xlu0 %1457
      %1459 = vrot.lane.b32.xlu0 %v1442, 24
      %v1460 = vpop.permute.xlu0 %1459
      %1461 = vrot.lane.b32.xlu0 %v1443, 24
      %v1462 = vpop.permute.xlu0 %1461
      %1463 = vrot.lane.b32.xlu0 %v1444, 24
      %v1464 = vpop.permute.xlu0 %1463
      %1465 = vrot.lane.b32.xlu0 %v1445, 24
      %v1466 = vpop.permute.xlu0 %1465
      %1467 = vrot.lane.b32.xlu0 %v1446, 24
      %v1468 = vpop.permute.xlu0 %1467
      %1469 = vrot.lane.b32.xlu0 %v1447, 24
      %v1470 = vpop.permute.xlu0 %1469
      %1471 = vrot.lane.b32.xlu0 %v1448, 24
      %v1472 = vpop.permute.xlu0 %1471
      %1481 = vst.msk [vmem:[#allocation3] sm:$0xff] %vm885, %v1458
      %1482 = vst.msk [vmem:[#allocation3 + $0x8] sm:$0xff] %vm885, %v1460
      %1483 = vst.msk [vmem:[#allocation3 + $0x10] sm:$0xff] %vm885, %v1462
      %1484 = vst.msk [vmem:[#allocation3 + $0x18] sm:$0xff] %vm885, %v1464
      %1485 = vst.msk [vmem:[#allocation3 + $0x20] sm:$0xff] %vm885, %v1466
      %1486 = vst.msk [vmem:[#allocation3 + $0x28] sm:$0xff] %vm885, %v1468
      %1487 = vst.msk [vmem:[#allocation3 + $0x30] sm:$0xff] %vm885, %v1470
      %1488 = vst.msk [vmem:[#allocation3 + $0x38] sm:$0xff] %vm885, %v1472
      %v1489 = vld [vmem:[%s844 + $0x1] sm:$0xff]
      %v1490 = vld [vmem:[%s844 + $0x11] sm:$0xff]
      %v1491 = vld [vmem:[%s844 + $0x21] sm:$0xff]
      %v1492 = vld [vmem:[%s844 + $0x31] sm:$0xff]
      %v1493 = vld [vmem:[%s844 + $0x41] sm:$0xff]
      %v1494 = vld [vmem:[%s844 + $0x51] sm:$0xff]
      %v1495 = vld [vmem:[%s844 + $0x61] sm:$0xff]
      %v1496 = vld [vmem:[%s844 + $0x71] sm:$0xff]
      %1505 = vrot.lane.b32.xlu0 %v1489, 28
      %v1506 = vpop.permute.xlu0 %1505
      %1507 = vrot.lane.b32.xlu0 %v1490, 28
      %v1508 = vpop.permute.xlu0 %1507
      %1509 = vrot.lane.b32.xlu0 %v1491, 28
      %v1510 = vpop.permute.xlu0 %1509
      %1511 = vrot.lane.b32.xlu0 %v1492, 28
      %v1512 = vpop.permute.xlu0 %1511
      %1513 = vrot.lane.b32.xlu0 %v1493, 28
      %v1514 = vpop.permute.xlu0 %1513
      %1515 = vrot.lane.b32.xlu0 %v1494, 28
      %v1516 = vpop.permute.xlu0 %1515
      %1517 = vrot.lane.b32.xlu0 %v1495, 28
      %v1518 = vpop.permute.xlu0 %1517
      %1519 = vrot.lane.b32.xlu0 %v1496, 28
      %v1520 = vpop.permute.xlu0 %1519
      %1529 = vst.msk [vmem:[#allocation3] sm:$0xff] %vm934, %v1506
      %1530 = vst.msk [vmem:[#allocation3 + $0x8] sm:$0xff] %vm934, %v1508
      %1531 = vst.msk [vmem:[#allocation3 + $0x10] sm:$0xff] %vm934, %v1510
      %1532 = vst.msk [vmem:[#allocation3 + $0x18] sm:$0xff] %vm934, %v1512
      %1533 = vst.msk [vmem:[#allocation3 + $0x20] sm:$0xff] %vm934, %v1514
      %1534 = vst.msk [vmem:[#allocation3 + $0x28] sm:$0xff] %vm934, %v1516
      %1535 = vst.msk [vmem:[#allocation3 + $0x30] sm:$0xff] %vm934, %v1518
      %1536 = vst.msk [vmem:[#allocation3 + $0x38] sm:$0xff] %vm934, %v1520
      %v1537 = vld [vmem:[%s844 + $0x2] sm:$0xff]
      %v1538 = vld [vmem:[%s844 + $0x12] sm:$0xff]
      %v1539 = vld [vmem:[%s844 + $0x22] sm:$0xff]
      %v1540 = vld [vmem:[%s844 + $0x32] sm:$0xff]
      %v1541 = vld [vmem:[%s844 + $0x42] sm:$0xff]
      %v1542 = vld [vmem:[%s844 + $0x52] sm:$0xff]
      %v1543 = vld [vmem:[%s844 + $0x62] sm:$0xff]
      %v1544 = vld [vmem:[%s844 + $0x72] sm:$0xff]
      %1553 = vrot.lane.b32.xlu0 %v1537, 32
      %v1554 = vpop.permute.xlu0 %1553
      %1555 = vrot.lane.b32.xlu0 %v1538, 32
      %v1556 = vpop.permute.xlu0 %1555
      %1557 = vrot.lane.b32.xlu0 %v1539, 32
      %v1558 = vpop.permute.xlu0 %1557
      %1559 = vrot.lane.b32.xlu0 %v1540, 32
      %v1560 = vpop.permute.xlu0 %1559
      %1561 = vrot.lane.b32.xlu0 %v1541, 32
      %v1562 = vpop.permute.xlu0 %1561
      %1563 = vrot.lane.b32.xlu0 %v1542, 32
      %v1564 = vpop.permute.xlu0 %1563
      %1565 = vrot.lane.b32.xlu0 %v1543, 32
      %v1566 = vpop.permute.xlu0 %1565
      %1567 = vrot.lane.b32.xlu0 %v1544, 32
      %v1568 = vpop.permute.xlu0 %1567
      %1577 = vst.msk [vmem:[#allocation3] sm:$0xff] %vm983, %v1554
      %1578 = vst.msk [vmem:[#allocation3 + $0x8] sm:$0xff] %vm983, %v1556
      %1579 = vst.msk [vmem:[#allocation3 + $0x10] sm:$0xff] %vm983, %v1558
      %1580 = vst.msk [vmem:[#allocation3 + $0x18] sm:$0xff] %vm983, %v1560
      %1581 = vst.msk [vmem:[#allocation3 + $0x20] sm:$0xff] %vm983, %v1562
      %1582 = vst.msk [vmem:[#allocation3 + $0x28] sm:$0xff] %vm983, %v1564
      %1583 = vst.msk [vmem:[#allocation3 + $0x30] sm:$0xff] %vm983, %v1566
      %1584 = vst.msk [vmem:[#allocation3 + $0x38] sm:$0xff] %vm983, %v1568
      %v1585 = vld [vmem:[#allocation3] sm:$0xff]
      %v1586 = vld [vmem:[#allocation3 + $0x8] sm:$0xff]
      %v1587 = vld [vmem:[#allocation3 + $0x10] sm:$0xff]
      %v1588 = vld [vmem:[#allocation3 + $0x18] sm:$0xff]
      %v1589 = vld [vmem:[#allocation3 + $0x20] sm:$0xff]
      %v1590 = vld [vmem:[#allocation3 + $0x28] sm:$0xff]
      %v1591 = vld [vmem:[#allocation3 + $0x30] sm:$0xff]
      %v1592 = vld [vmem:[#allocation3 + $0x38] sm:$0xff]
      %v1593 = vld [vmem:[%s4] sm:$0xff]
      %v1594 = vld [vmem:[%s4 + $0x8] sm:$0xff]
      %v1595 = vld [vmem:[%s4 + $0x10] sm:$0xff]
      %v1596 = vld [vmem:[%s4 + $0x18] sm:$0xff]
      %v1597 = vld [vmem:[%s4 + $0x20] sm:$0xf]
      %v1599 = vsel %vm1005, %v1585, 0
      %v1602 = vsel %vm1005, %v1586, 0
      %v1605 = vsel %vm1005, %v1587, 0
      %v1608 = vsel %vm1005, %v1588, 0
      %v1611 = vsel %vm1005, %v1589, 0
      %v1614 = vsel %vm1005, %v1590, 0
      %v1617 = vsel %vm1005, %v1591, 0
      %v1620 = vsel %vm1005, %v1592, 0
      %v1623 = vsel %vm1030, %v1597, 0
      %1625 = vmatprep.subr.mxu0 0.0
      %1626 = vmatpush1.msra.mxu0 0.0
      %1627 = vmatprep.subr.mxu0 0.0
      %1628 = vmatpush1.msra.mxu0 0.0
      %1629 = vmatprep.subr.mxu0 0.0
      %1630 = vmatpush1.msra.mxu0 0.0
      %1631 = vmatprep.subr.mxu0 0.0
      %1632 = vmatpush1.msra.mxu0 0.0
      %1633 = vmatprep.subr.mxu0 0.0
      %1634 = vmatpush1.msra.mxu0 0.0
      %1635 = vmatprep.subr.mxu0 0.0
      %1636 = vmatpush1.msra.mxu0 0.0
      %1637 = vmatprep.subr.mxu0 0.0
      %1638 = vmatpush1.msra.mxu0 0.0
      %1639 = vmatprep.subr.mxu0 0.0
      %1640 = vmatpush1.msra.mxu0 0.0
      %1641 = vmatprep.subr.mxu0 0.0
      %1642 = vmatpush1.msra.mxu0 0.0
      %1643 = vmatprep.subr.mxu0 0.0
      %1644 = vmatpush1.msra.mxu0 0.0
      %1645 = vmatprep.subr.mxu0 0.0
      %1646 = vmatpush1.msra.mxu0 0.0
      %1647 = vmatprep.subr.mxu0 0.0
      %1648 = vmatpush1.msra.mxu0 %v1623
      %1649 = vmatprep.subr.mxu0 0.0
      %1650 = vmatpush1.msra.mxu0 %v1596
      %1651 = vmatprep.subr.mxu0 0.0
      %1652 = vmatpush1.msra.mxu0 %v1595
      %1653 = vmatprep.subr.mxu0 0.0
      %1654 = vmatpush1.msra.mxu0 %v1594
      %1655 = vmatprep.subr.mxu0 0.0
      %1656 = vmatpush1.msra.mxu0 %v1593
      %1657 = vmatprep.subr.mxu0 0.0
      %1658 = vmatpush2.msra.mxu0 0.0
      %1659 = vmatprep.subr.mxu0 0.0
      %1660 = vmatpush2.msra.mxu0 0.0
      %1661 = vmatprep.subr.mxu0 0.0
      %1662 = vmatpush2.msra.mxu0 0.0
      %1663 = vmatprep.subr.mxu0 0.0
      %1664 = vmatpush2.msra.mxu0 0.0
      %1665 = vmatprep.subr.mxu0 0.0
      %1666 = vmatpush2.msra.mxu0 0.0
      %1667 = vmatprep.subr.mxu0 0.0
      %1668 = vmatpush2.msra.mxu0 0.0
      %1669 = vmatprep.subr.mxu0 0.0
      %1670 = vmatpush2.msra.mxu0 0.0
      %1671 = vmatprep.subr.mxu0 0.0
      %1672 = vmatpush2.msra.mxu0 0.0
      %1673 = vmatprep.subr.mxu0 0.0
      %1674 = vmatpush2.msra.mxu0 0.0
      %1675 = vmatprep.subr.mxu0 0.0
      %1676 = vmatpush2.msra.mxu0 0.0
      %1677 = vmatprep.subr.mxu0 0.0
      %1678 = vmatpush2.msra.mxu0 0.0
      %1679 = vmatprep.subr.mxu0 0.0
      %1680 = vmatpush2.msra.mxu0 0.0
      %1681 = vmatprep.subr.mxu0 0.0
      %1682 = vmatpush2.msra.mxu0 0.0
      %1683 = vmatprep.subr.mxu0 0.0
      %1684 = vmatpush2.msra.mxu0 0.0
      %1685 = vmatprep.subr.mxu0 0.0
      %1686 = vmatpush2.msra.mxu0 0.0
      %1687 = vmatprep.subr.mxu0 0.0
      %1688 = vmatpush2.msra.mxu0 0.0
      %1689 = vmatprep.mubr.f32.mxu0 0.0
      %1690 = vmatmul.mubr.f32.gmra.mxu0 %v1599
      %v1691 = vpop.f32.mrf.mxu0
      %v1692 = vadd.f32 0.0, %v1691
      %v1693 = vpop.f32.mrf.mxu0
      %1694 = vmatprep.mubr.f32.mxu0 0.0
      %1695 = vmatmul.mubr.f32.gmra.mxu0 %v1602
      %v1696 = vpop.f32.mrf.mxu0
      %v1697 = vadd.f32 0.0, %v1696
      %v1698 = vpop.f32.mrf.mxu0
      %1699 = vmatprep.mubr.f32.mxu0 0.0
      %1700 = vmatmul.mubr.f32.gmra.mxu0 %v1605
      %v1701 = vpop.f32.mrf.mxu0
      %v1702 = vadd.f32 0.0, %v1701
      %v1703 = vpop.f32.mrf.mxu0
      %1704 = vmatprep.mubr.f32.mxu0 0.0
      %1705 = vmatmul.mubr.f32.gmra.mxu0 %v1608
      %v1706 = vpop.f32.mrf.mxu0
      %v1707 = vadd.f32 0.0, %v1706
      %v1708 = vpop.f32.mrf.mxu0
      %1709 = vmatprep.mubr.f32.mxu0 0.0
      %1710 = vmatmul.mubr.f32.gmra.mxu0 %v1611
      %v1711 = vpop.f32.mrf.mxu0
      %v1712 = vadd.f32 0.0, %v1711
      %v1713 = vpop.f32.mrf.mxu0
      %1714 = vmatprep.mubr.f32.mxu0 0.0
      %1715 = vmatmul.mubr.f32.gmra.mxu0 %v1614
      %v1716 = vpop.f32.mrf.mxu0
      %v1717 = vadd.f32 0.0, %v1716
      %v1718 = vpop.f32.mrf.mxu0
      %1719 = vmatprep.mubr.f32.mxu0 0.0
      %1720 = vmatmul.mubr.f32.gmra.mxu0 %v1617
      %v1721 = vpop.f32.mrf.mxu0
      %v1722 = vadd.f32 0.0, %v1721
      %v1723 = vpop.f32.mrf.mxu0
      %1724 = vmatprep.mubr.f32.mxu0 0.0
      %1725 = vmatmul.mubr.f32.gmra.mxu0 %v1620
      %v1726 = vpop.f32.mrf.mxu0
      %v1727 = vadd.f32 0.0, %v1726
      %v1728 = vpop.f32.mrf.mxu0
      %1729 = vdwg.mxu0
      %v1731 = vlaneseq
      %v1732 = vshrl.u32 %v1731, 7
      %v1733 = vsub.s32 0, %v1732
      %v1734 = vrot.slane %v1183, %v1733
      %v1736 = vmul.f32 %v1692, %v1734
      %v1737 = vmul.f32 %v1697, %v1734
      %v1738 = vmul.f32 %v1702, %v1734
      %v1739 = vmul.f32 %v1707, %v1734
      %v1740 = vmul.f32 %v1712, %v1734
      %v1741 = vmul.f32 %v1717, %v1734
      %v1742 = vmul.f32 %v1722, %v1734
      %v1743 = vmul.f32 %v1727, %v1734
      %v1745 = vlaneseq
      %v1746 = vshrl.u32 %v1745, 7
      %v1747 = vsub.s32 0, %v1746
      %v1748 = vrot.slane %v1184, %v1747
      %v1750 = vadd.f32 %v1736, %v1748
      %v1751 = vadd.f32 %v1737, %v1748
      %v1752 = vadd.f32 %v1738, %v1748
      %v1753 = vadd.f32 %v1739, %v1748
      %v1754 = vadd.f32 %v1740, %v1748
      %v1755 = vadd.f32 %v1741, %v1748
      %v1756 = vadd.f32 %v1742, %v1748
      %v1757 = vadd.f32 %v1743, %v1748
      %v1758 = vadd.f32 %v1750, %v564
      %v1759 = vadd.f32 %v1751, %v565
      %v1760 = vadd.f32 %v1752, %v566
      %v1761 = vadd.f32 %v1753, %v567
      %v1762 = vadd.f32 %v1754, %v568
      %v1763 = vadd.f32 %v1755, %v569
      %v1764 = vadd.f32 %v1756, %v570
      %v1765 = vadd.f32 %v1757, %v571
      %v1766 = vmax.f32 %v1758, 0.0
      %v1767 = vmax.f32 %v1759, 0.0
      %v1768 = vmax.f32 %v1760, 0.0
      %v1769 = vmax.f32 %v1761, 0.0
      %v1770 = vmax.f32 %v1762, 0.0
      %v1771 = vmax.f32 %v1763, 0.0
      %v1772 = vmax.f32 %v1764, 0.0
      %v1773 = vmax.f32 %v1765, 0.0
      %1774 = vst.msk [vmem:[%s572 + $0x1] sm:$0xff] %vm522, %v1766
      %1775 = vst.msk [vmem:[%s572 + $0x11] sm:$0xff] %vm522, %v1767
      %1776 = vst.msk [vmem:[%s572 + $0x21] sm:$0xff] %vm522, %v1768
      %1777 = vst.msk [vmem:[%s572 + $0x31] sm:$0xff] %vm522, %v1769
      %1778 = vst.msk [vmem:[%s572 + $0x41] sm:$0xff] %vm522, %v1770
      %1779 = vst.msk [vmem:[%s572 + $0x51] sm:$0xff] %vm522, %v1771
      %1780 = vst.msk [vmem:[%s572 + $0x61] sm:$0xff] %vm522, %v1772
      %1781 = vst.msk [vmem:[%s572 + $0x71] sm:$0xff] %vm522, %v1773
      %v1782 = vld [vmem:[%s8] sm:$0x1]
      %v1783 = vld [vmem:[%s9] sm:$0x1]
      %v1784 = vld [vmem:[#allocation2] sm:$0xff]
      %v1785 = vld [vmem:[#allocation2 + $0x10] sm:$0xff]
      %v1786 = vld [vmem:[#allocation2 + $0x20] sm:$0xff]
      %v1787 = vld [vmem:[#allocation2 + $0x30] sm:$0xff]
      %v1788 = vld [vmem:[#allocation2 + $0x40] sm:$0xff]
      %v1789 = vld [vmem:[#allocation2 + $0x50] sm:$0xff]
      %v1790 = vld [vmem:[#allocation2 + $0x60] sm:$0xff]
      %v1791 = vld [vmem:[#allocation2 + $0x70] sm:$0xff]
      %1792 = vst.msk [vmem:[#allocation3] sm:$0xff] %vm522, %v1784
      %1793 = vst.msk [vmem:[#allocation3 + $0x8] sm:$0xff] %vm522, %v1785
      %1794 = vst.msk [vmem:[#allocation3 + $0x10] sm:$0xff] %vm522, %v1786
      %1795 = vst.msk [vmem:[#allocation3 + $0x18] sm:$0xff] %vm522, %v1787
      %1796 = vst.msk [vmem:[#allocation3 + $0x20] sm:$0xff] %vm522, %v1788
      %1797 = vst.msk [vmem:[#allocation3 + $0x28] sm:$0xff] %vm522, %v1789
      %1798 = vst.msk [vmem:[#allocation3 + $0x30] sm:$0xff] %vm522, %v1790
      %1799 = vst.msk [vmem:[#allocation3 + $0x38] sm:$0xff] %vm522, %v1791
      %v1800 = vld [vmem:[#allocation2 + $0x1] sm:$0xff]
      %v1801 = vld [vmem:[#allocation2 + $0x11] sm:$0xff]
      %v1802 = vld [vmem:[#allocation2 + $0x21] sm:$0xff]
      %v1803 = vld [vmem:[#allocation2 + $0x31] sm:$0xff]
      %v1804 = vld [vmem:[#allocation2 + $0x41] sm:$0xff]
      %v1805 = vld [vmem:[#allocation2 + $0x51] sm:$0xff]
      %v1806 = vld [vmem:[#allocation2 + $0x61] sm:$0xff]
      %v1807 = vld [vmem:[#allocation2 + $0x71] sm:$0xff]
      %1816 = vrot.lane.b32.xlu0 %v1800, 4
      %v1817 = vpop.permute.xlu0 %1816
      %1818 = vrot.lane.b32.xlu0 %v1801, 4
      %v1819 = vpop.permute.xlu0 %1818
      %1820 = vrot.lane.b32.xlu0 %v1802, 4
      %v1821 = vpop.permute.xlu0 %1820
      %1822 = vrot.lane.b32.xlu0 %v1803, 4
      %v1823 = vpop.permute.xlu0 %1822
      %1824 = vrot.lane.b32.xlu0 %v1804, 4
      %v1825 = vpop.permute.xlu0 %1824
      %1826 = vrot.lane.b32.xlu0 %v1805, 4
      %v1827 = vpop.permute.xlu0 %1826
      %1828 = vrot.lane.b32.xlu0 %v1806, 4
      %v1829 = vpop.permute.xlu0 %1828
      %1830 = vrot.lane.b32.xlu0 %v1807, 4
      %v1831 = vpop.permute.xlu0 %1830
      %1840 = vst.msk [vmem:[#allocation3] sm:$0xff] %vm639, %v1817
      %1841 = vst.msk [vmem:[#allocation3 + $0x8] sm:$0xff] %vm639, %v1819
      %1842 = vst.msk [vmem:[#allocation3 + $0x10] sm:$0xff] %vm639, %v1821
      %1843 = vst.msk [vmem:[#allocation3 + $0x18] sm:$0xff] %vm639, %v1823
      %1844 = vst.msk [vmem:[#allocation3 + $0x20] sm:$0xff] %vm639, %v1825
      %1845 = vst.msk [vmem:[#allocation3 + $0x28] sm:$0xff] %vm639, %v1827
      %1846 = vst.msk [vmem:[#allocation3 + $0x30] sm:$0xff] %vm639, %v1829
      %1847 = vst.msk [vmem:[#allocation3 + $0x38] sm:$0xff] %vm639, %v1831
      %v1848 = vld [vmem:[#allocation2 + $0x2] sm:$0xff]
      %v1849 = vld [vmem:[#allocation2 + $0x12] sm:$0xff]
      %v1850 = vld [vmem:[#allocation2 + $0x22] sm:$0xff]
      %v1851 = vld [vmem:[#allocation2 + $0x32] sm:$0xff]
      %v1852 = vld [vmem:[#allocation2 + $0x42] sm:$0xff]
      %v1853 = vld [vmem:[#allocation2 + $0x52] sm:$0xff]
      %v1854 = vld [vmem:[#allocation2 + $0x62] sm:$0xff]
      %v1855 = vld [vmem:[#allocation2 + $0x72] sm:$0xff]
      %1864 = vrot.lane.b32.xlu0 %v1848, 8
      %v1865 = vpop.permute.xlu0 %1864
      %1866 = vrot.lane.b32.xlu0 %v1849, 8
      %v1867 = vpop.permute.xlu0 %1866
      %1868 = vrot.lane.b32.xlu0 %v1850, 8
      %v1869 = vpop.permute.xlu0 %1868
      %1870 = vrot.lane.b32.xlu0 %v1851, 8
      %v1871 = vpop.permute.xlu0 %1870
      %1872 = vrot.lane.b32.xlu0 %v1852, 8
      %v1873 = vpop.permute.xlu0 %1872
      %1874 = vrot.lane.b32.xlu0 %v1853, 8
      %v1875 = vpop.permute.xlu0 %1874
      %1876 = vrot.lane.b32.xlu0 %v1854, 8
      %v1877 = vpop.permute.xlu0 %1876
      %1878 = vrot.lane.b32.xlu0 %v1855, 8
      %v1879 = vpop.permute.xlu0 %1878
      %1888 = vst.msk [vmem:[#allocation3] sm:$0xff] %vm688, %v1865
      %1889 = vst.msk [vmem:[#allocation3 + $0x8] sm:$0xff] %vm688, %v1867
      %1890 = vst.msk [vmem:[#allocation3 + $0x10] sm:$0xff] %vm688, %v1869
      %1891 = vst.msk [vmem:[#allocation3 + $0x18] sm:$0xff] %vm688, %v1871
      %1892 = vst.msk [vmem:[#allocation3 + $0x20] sm:$0xff] %vm688, %v1873
      %1893 = vst.msk [vmem:[#allocation3 + $0x28] sm:$0xff] %vm688, %v1875
      %1894 = vst.msk [vmem:[#allocation3 + $0x30] sm:$0xff] %vm688, %v1877
      %1895 = vst.msk [vmem:[#allocation3 + $0x38] sm:$0xff] %vm688, %v1879
      %v1896 = vld [vmem:[%s572] sm:$0xff]
      %v1897 = vld [vmem:[%s572 + $0x10] sm:$0xff]
      %v1898 = vld [vmem:[%s572 + $0x20] sm:$0xff]
      %v1899 = vld [vmem:[%s572 + $0x30] sm:$0xff]
      %v1900 = vld [vmem:[%s572 + $0x40] sm:$0xff]
      %v1901 = vld [vmem:[%s572 + $0x50] sm:$0xff]
      %v1902 = vld [vmem:[%s572 + $0x60] sm:$0xff]
      %v1903 = vld [vmem:[%s572 + $0x70] sm:$0xff]
      %1912 = vrot.lane.b32.xlu0 %v1896, 12
      %v1913 = vpop.permute.xlu0 %1912
      %1914 = vrot.lane.b32.xlu0 %v1897, 12
      %v1915 = vpop.permute.xlu0 %1914
      %1916 = vrot.lane.b32.xlu0 %v1898, 12
      %v1917 = vpop.permute.xlu0 %1916
      %1918 = vrot.lane.b32.xlu0 %v1899, 12
      %v1919 = vpop.permute.xlu0 %1918
      %1920 = vrot.lane.b32.xlu0 %v1900, 12
      %v1921 = vpop.permute.xlu0 %1920
      %1922 = vrot.lane.b32.xlu0 %v1901, 12
      %v1923 = vpop.permute.xlu0 %1922
      %1924 = vrot.lane.b32.xlu0 %v1902, 12
      %v1925 = vpop.permute.xlu0 %1924
      %1926 = vrot.lane.b32.xlu0 %v1903, 12
      %v1927 = vpop.permute.xlu0 %1926
      %1936 = vst.msk [vmem:[#allocation3] sm:$0xff] %vm737, %v1913
      %1937 = vst.msk [vmem:[#allocation3 + $0x8] sm:$0xff] %vm737, %v1915
      %1938 = vst.msk [vmem:[#allocation3 + $0x10] sm:$0xff] %vm737, %v1917
      %1939 = vst.msk [vmem:[#allocation3 + $0x18] sm:$0xff] %vm737, %v1919
      %1940 = vst.msk [vmem:[#allocation3 + $0x20] sm:$0xff] %vm737, %v1921
      %1941 = vst.msk [vmem:[#allocation3 + $0x28] sm:$0xff] %vm737, %v1923
      %1942 = vst.msk [vmem:[#allocation3 + $0x30] sm:$0xff] %vm737, %v1925
      %1943 = vst.msk [vmem:[#allocation3 + $0x38] sm:$0xff] %vm737, %v1927
      %v1944 = vld [vmem:[%s572 + $0x1] sm:$0xff]
      %v1945 = vld [vmem:[%s572 + $0x11] sm:$0xff]
      %v1946 = vld [vmem:[%s572 + $0x21] sm:$0xff]
      %v1947 = vld [vmem:[%s572 + $0x31] sm:$0xff]
      %v1948 = vld [vmem:[%s572 + $0x41] sm:$0xff]
      %v1949 = vld [vmem:[%s572 + $0x51] sm:$0xff]
      %v1950 = vld [vmem:[%s572 + $0x61] sm:$0xff]
      %v1951 = vld [vmem:[%s572 + $0x71] sm:$0xff]
      %1960 = vrot.lane.b32.xlu0 %v1944, 16
      %v1961 = vpop.permute.xlu0 %1960
      %1962 = vrot.lane.b32.xlu0 %v1945, 16
      %v1963 = vpop.permute.xlu0 %1962
      %1964 = vrot.lane.b32.xlu0 %v1946, 16
      %v1965 = vpop.permute.xlu0 %1964
      %1966 = vrot.lane.b32.xlu0 %v1947, 16
      %v1967 = vpop.permute.xlu0 %1966
      %1968 = vrot.lane.b32.xlu0 %v1948, 16
      %v1969 = vpop.permute.xlu0 %1968
      %1970 = vrot.lane.b32.xlu0 %v1949, 16
      %v1971 = vpop.permute.xlu0 %1970
      %1972 = vrot.lane.b32.xlu0 %v1950, 16
      %v1973 = vpop.permute.xlu0 %1972
      %1974 = vrot.lane.b32.xlu0 %v1951, 16
      %v1975 = vpop.permute.xlu0 %1974
      %1984 = vst.msk [vmem:[#allocation3] sm:$0xff] %vm786, %v1961
      %1985 = vst.msk [vmem:[#allocation3 + $0x8] sm:$0xff] %vm786, %v1963
      %1986 = vst.msk [vmem:[#allocation3 + $0x10] sm:$0xff] %vm786, %v1965
      %1987 = vst.msk [vmem:[#allocation3 + $0x18] sm:$0xff] %vm786, %v1967
      %1988 = vst.msk [vmem:[#allocation3 + $0x20] sm:$0xff] %vm786, %v1969
      %1989 = vst.msk [vmem:[#allocation3 + $0x28] sm:$0xff] %vm786, %v1971
      %1990 = vst.msk [vmem:[#allocation3 + $0x30] sm:$0xff] %vm786, %v1973
      %1991 = vst.msk [vmem:[#allocation3 + $0x38] sm:$0xff] %vm786, %v1975
      %v1992 = vld [vmem:[%s572 + $0x2] sm:$0xff]
      %v1993 = vld [vmem:[%s572 + $0x12] sm:$0xff]
      %v1994 = vld [vmem:[%s572 + $0x22] sm:$0xff]
      %v1995 = vld [vmem:[%s572 + $0x32] sm:$0xff]
      %v1996 = vld [vmem:[%s572 + $0x42] sm:$0xff]
      %v1997 = vld [vmem:[%s572 + $0x52] sm:$0xff]
      %v1998 = vld [vmem:[%s572 + $0x62] sm:$0xff]
      %v1999 = vld [vmem:[%s572 + $0x72] sm:$0xff]
      %2008 = vrot.lane.b32.xlu0 %v1992, 20
      %v2009 = vpop.permute.xlu0 %2008
      %2010 = vrot.lane.b32.xlu0 %v1993, 20
      %v2011 = vpop.permute.xlu0 %2010
      %2012 = vrot.lane.b32.xlu0 %v1994, 20
      %v2013 = vpop.permute.xlu0 %2012
      %2014 = vrot.lane.b32.xlu0 %v1995, 20
      %v2015 = vpop.permute.xlu0 %2014
      %2016 = vrot.lane.b32.xlu0 %v1996, 20
      %v2017 = vpop.permute.xlu0 %2016
      %2018 = vrot.lane.b32.xlu0 %v1997, 20
      %v2019 = vpop.permute.xlu0 %2018
      %2020 = vrot.lane.b32.xlu0 %v1998, 20
      %v2021 = vpop.permute.xlu0 %2020
      %2022 = vrot.lane.b32.xlu0 %v1999, 20
      %v2023 = vpop.permute.xlu0 %2022
      %2032 = vst.msk [vmem:[#allocation3] sm:$0xff] %vm835, %v2009
      %2033 = vst.msk [vmem:[#allocation3 + $0x8] sm:$0xff] %vm835, %v2011
      %2034 = vst.msk [vmem:[#allocation3 + $0x10] sm:$0xff] %vm835, %v2013
      %2035 = vst.msk [vmem:[#allocation3 + $0x18] sm:$0xff] %vm835, %v2015
      %2036 = vst.msk [vmem:[#allocation3 + $0x20] sm:$0xff] %vm835, %v2017
      %2037 = vst.msk [vmem:[#allocation3 + $0x28] sm:$0xff] %vm835, %v2019
      %2038 = vst.msk [vmem:[#allocation3 + $0x30] sm:$0xff] %vm835, %v2021
      %2039 = vst.msk [vmem:[#allocation3 + $0x38] sm:$0xff] %vm835, %v2023
      %v2040 = vld [vmem:[%s844] sm:$0xff]
      %v2041 = vld [vmem:[%s844 + $0x10] sm:$0xff]
      %v2042 = vld [vmem:[%s844 + $0x20] sm:$0xff]
      %v2043 = vld [vmem:[%s844 + $0x30] sm:$0xff]
      %v2044 = vld [vmem:[%s844 + $0x40] sm:$0xff]
      %v2045 = vld [vmem:[%s844 + $0x50] sm:$0xff]
      %v2046 = vld [vmem:[%s844 + $0x60] sm:$0xff]
      %v2047 = vld [vmem:[%s844 + $0x70] sm:$0xff]
      %2056 = vrot.lane.b32.xlu0 %v2040, 24
      %v2057 = vpop.permute.xlu0 %2056
      %2058 = vrot.lane.b32.xlu0 %v2041, 24
      %v2059 = vpop.permute.xlu0 %2058
      %2060 = vrot.lane.b32.xlu0 %v2042, 24
      %v2061 = vpop.permute.xlu0 %2060
      %2062 = vrot.lane.b32.xlu0 %v2043, 24
      %v2063 = vpop.permute.xlu0 %2062
      %2064 = vrot.lane.b32.xlu0 %v2044, 24
      %v2065 = vpop.permute.xlu0 %2064
      %2066 = vrot.lane.b32.xlu0 %v2045, 24
      %v2067 = vpop.permute.xlu0 %2066
      %2068 = vrot.lane.b32.xlu0 %v2046, 24
      %v2069 = vpop.permute.xlu0 %2068
      %2070 = vrot.lane.b32.xlu0 %v2047, 24
      %v2071 = vpop.permute.xlu0 %2070
      %2080 = vst.msk [vmem:[#allocation3] sm:$0xff] %vm885, %v2057
      %2081 = vst.msk [vmem:[#allocation3 + $0x8] sm:$0xff] %vm885, %v2059
      %2082 = vst.msk [vmem:[#allocation3 + $0x10] sm:$0xff] %vm885, %v2061
      %2083 = vst.msk [vmem:[#allocation3 + $0x18] sm:$0xff] %vm885, %v2063
      %2084 = vst.msk [vmem:[#allocation3 + $0x20] sm:$0xff] %vm885, %v2065
      %2085 = vst.msk [vmem:[#allocation3 + $0x28] sm:$0xff] %vm885, %v2067
      %2086 = vst.msk [vmem:[#allocation3 + $0x30] sm:$0xff] %vm885, %v2069
      %2087 = vst.msk [vmem:[#allocation3 + $0x38] sm:$0xff] %vm885, %v2071
      %v2088 = vld [vmem:[%s844 + $0x1] sm:$0xff]
      %v2089 = vld [vmem:[%s844 + $0x11] sm:$0xff]
      %v2090 = vld [vmem:[%s844 + $0x21] sm:$0xff]
      %v2091 = vld [vmem:[%s844 + $0x31] sm:$0xff]
      %v2092 = vld [vmem:[%s844 + $0x41] sm:$0xff]
      %v2093 = vld [vmem:[%s844 + $0x51] sm:$0xff]
      %v2094 = vld [vmem:[%s844 + $0x61] sm:$0xff]
      %v2095 = vld [vmem:[%s844 + $0x71] sm:$0xff]
      %2104 = vrot.lane.b32.xlu0 %v2088, 28
      %v2105 = vpop.permute.xlu0 %2104
      %2106 = vrot.lane.b32.xlu0 %v2089, 28
      %v2107 = vpop.permute.xlu0 %2106
      %2108 = vrot.lane.b32.xlu0 %v2090, 28
      %v2109 = vpop.permute.xlu0 %2108
      %2110 = vrot.lane.b32.xlu0 %v2091, 28
      %v2111 = vpop.permute.xlu0 %2110
      %2112 = vrot.lane.b32.xlu0 %v2092, 28
      %v2113 = vpop.permute.xlu0 %2112
      %2114 = vrot.lane.b32.xlu0 %v2093, 28
      %v2115 = vpop.permute.xlu0 %2114
      %2116 = vrot.lane.b32.xlu0 %v2094, 28
      %v2117 = vpop.permute.xlu0 %2116
      %2118 = vrot.lane.b32.xlu0 %v2095, 28
      %v2119 = vpop.permute.xlu0 %2118
      %2128 = vst.msk [vmem:[#allocation3] sm:$0xff] %vm934, %v2105
      %2129 = vst.msk [vmem:[#allocation3 + $0x8] sm:$0xff] %vm934, %v2107
      %2130 = vst.msk [vmem:[#allocation3 + $0x10] sm:$0xff] %vm934, %v2109
      %2131 = vst.msk [vmem:[#allocation3 + $0x18] sm:$0xff] %vm934, %v2111
      %2132 = vst.msk [vmem:[#allocation3 + $0x20] sm:$0xff] %vm934, %v2113
      %2133 = vst.msk [vmem:[#allocation3 + $0x28] sm:$0xff] %vm934, %v2115
      %2134 = vst.msk [vmem:[#allocation3 + $0x30] sm:$0xff] %vm934, %v2117
      %2135 = vst.msk [vmem:[#allocation3 + $0x38] sm:$0xff] %vm934, %v2119
      %v2136 = vld [vmem:[%s844 + $0x2] sm:$0xff]
      %v2137 = vld [vmem:[%s844 + $0x12] sm:$0xff]
      %v2138 = vld [vmem:[%s844 + $0x22] sm:$0xff]
      %v2139 = vld [vmem:[%s844 + $0x32] sm:$0xff]
      %v2140 = vld [vmem:[%s844 + $0x42] sm:$0xff]
      %v2141 = vld [vmem:[%s844 + $0x52] sm:$0xff]
      %v2142 = vld [vmem:[%s844 + $0x62] sm:$0xff]
      %v2143 = vld [vmem:[%s844 + $0x72] sm:$0xff]
      %2152 = vrot.lane.b32.xlu0 %v2136, 32
      %v2153 = vpop.permute.xlu0 %2152
      %2154 = vrot.lane.b32.xlu0 %v2137, 32
      %v2155 = vpop.permute.xlu0 %2154
      %2156 = vrot.lane.b32.xlu0 %v2138, 32
      %v2157 = vpop.permute.xlu0 %2156
      %2158 = vrot.lane.b32.xlu0 %v2139, 32
      %v2159 = vpop.permute.xlu0 %2158
      %2160 = vrot.lane.b32.xlu0 %v2140, 32
      %v2161 = vpop.permute.xlu0 %2160
      %2162 = vrot.lane.b32.xlu0 %v2141, 32
      %v2163 = vpop.permute.xlu0 %2162
      %2164 = vrot.lane.b32.xlu0 %v2142, 32
      %v2165 = vpop.permute.xlu0 %2164
      %2166 = vrot.lane.b32.xlu0 %v2143, 32
      %v2167 = vpop.permute.xlu0 %2166
      %2176 = vst.msk [vmem:[#allocation3] sm:$0xff] %vm983, %v2153
      %2177 = vst.msk [vmem:[#allocation3 + $0x8] sm:$0xff] %vm983, %v2155
      %2178 = vst.msk [vmem:[#allocation3 + $0x10] sm:$0xff] %vm983, %v2157
      %2179 = vst.msk [vmem:[#allocation3 + $0x18] sm:$0xff] %vm983, %v2159
      %2180 = vst.msk [vmem:[#allocation3 + $0x20] sm:$0xff] %vm983, %v2161
      %2181 = vst.msk [vmem:[#allocation3 + $0x28] sm:$0xff] %vm983, %v2163
      %2182 = vst.msk [vmem:[#allocation3 + $0x30] sm:$0xff] %vm983, %v2165
      %2183 = vst.msk [vmem:[#allocation3 + $0x38] sm:$0xff] %vm983, %v2167
      %v2184 = vld [vmem:[#allocation3] sm:$0xff]
      %v2185 = vld [vmem:[#allocation3 + $0x8] sm:$0xff]
      %v2186 = vld [vmem:[#allocation3 + $0x10] sm:$0xff]
      %v2187 = vld [vmem:[#allocation3 + $0x18] sm:$0xff]
      %v2188 = vld [vmem:[#allocation3 + $0x20] sm:$0xff]
      %v2189 = vld [vmem:[#allocation3 + $0x28] sm:$0xff]
      %v2190 = vld [vmem:[#allocation3 + $0x30] sm:$0xff]
      %v2191 = vld [vmem:[#allocation3 + $0x38] sm:$0xff]
      %v2192 = vld [vmem:[%s7] sm:$0xff]
      %v2193 = vld [vmem:[%s7 + $0x8] sm:$0xff]
      %v2194 = vld [vmem:[%s7 + $0x10] sm:$0xff]
      %v2195 = vld [vmem:[%s7 + $0x18] sm:$0xff]
      %v2196 = vld [vmem:[%s7 + $0x20] sm:$0xf]
      %v2198 = vsel %vm1005, %v2184, 0
      %v2201 = vsel %vm1005, %v2185, 0
      %v2204 = vsel %vm1005, %v2186, 0
      %v2207 = vsel %vm1005, %v2187, 0
      %v2210 = vsel %vm1005, %v2188, 0
      %v2213 = vsel %vm1005, %v2189, 0
      %v2216 = vsel %vm1005, %v2190, 0
      %v2219 = vsel %vm1005, %v2191, 0
      %v2222 = vsel %vm1030, %v2196, 0
      %2224 = vmatprep.subr.mxu0 0.0
      %2225 = vmatpush1.msra.mxu0 0.0
      %2226 = vmatprep.subr.mxu0 0.0
      %2227 = vmatpush1.msra.mxu0 0.0
      %2228 = vmatprep.subr.mxu0 0.0
      %2229 = vmatpush1.msra.mxu0 0.0
      %2230 = vmatprep.subr.mxu0 0.0
      %2231 = vmatpush1.msra.mxu0 0.0
      %2232 = vmatprep.subr.mxu0 0.0
      %2233 = vmatpush1.msra.mxu0 0.0
      %2234 = vmatprep.subr.mxu0 0.0
      %2235 = vmatpush1.msra.mxu0 0.0
      %2236 = vmatprep.subr.mxu0 0.0
      %2237 = vmatpush1.msra.mxu0 0.0
      %2238 = vmatprep.subr.mxu0 0.0
      %2239 = vmatpush1.msra.mxu0 0.0
      %2240 = vmatprep.subr.mxu0 0.0
      %2241 = vmatpush1.msra.mxu0 0.0
      %2242 = vmatprep.subr.mxu0 0.0
      %2243 = vmatpush1.msra.mxu0 0.0
      %2244 = vmatprep.subr.mxu0 0.0
      %2245 = vmatpush1.msra.mxu0 0.0
      %2246 = vmatprep.subr.mxu0 0.0
      %2247 = vmatpush1.msra.mxu0 %v2222
      %2248 = vmatprep.subr.mxu0 0.0
      %2249 = vmatpush1.msra.mxu0 %v2195
      %2250 = vmatprep.subr.mxu0 0.0
      %2251 = vmatpush1.msra.mxu0 %v2194
      %2252 = vmatprep.subr.mxu0 0.0
      %2253 = vmatpush1.msra.mxu0 %v2193
      %2254 = vmatprep.subr.mxu0 0.0
      %2255 = vmatpush1.msra.mxu0 %v2192
      %2256 = vmatprep.subr.mxu0 0.0
      %2257 = vmatpush2.msra.mxu0 0.0
      %2258 = vmatprep.subr.mxu0 0.0
      %2259 = vmatpush2.msra.mxu0 0.0
      %2260 = vmatprep.subr.mxu0 0.0
      %2261 = vmatpush2.msra.mxu0 0.0
      %2262 = vmatprep.subr.mxu0 0.0
      %2263 = vmatpush2.msra.mxu0 0.0
      %2264 = vmatprep.subr.mxu0 0.0
      %2265 = vmatpush2.msra.mxu0 0.0
      %2266 = vmatprep.subr.mxu0 0.0
      %2267 = vmatpush2.msra.mxu0 0.0
      %2268 = vmatprep.subr.mxu0 0.0
      %2269 = vmatpush2.msra.mxu0 0.0
      %2270 = vmatprep.subr.mxu0 0.0
      %2271 = vmatpush2.msra.mxu0 0.0
      %2272 = vmatprep.subr.mxu0 0.0
      %2273 = vmatpush2.msra.mxu0 0.0
      %2274 = vmatprep.subr.mxu0 0.0
      %2275 = vmatpush2.msra.mxu0 0.0
      %2276 = vmatprep.subr.mxu0 0.0
      %2277 = vmatpush2.msra.mxu0 0.0
      %2278 = vmatprep.subr.mxu0 0.0
      %2279 = vmatpush2.msra.mxu0 0.0
      %2280 = vmatprep.subr.mxu0 0.0
      %2281 = vmatpush2.msra.mxu0 0.0
      %2282 = vmatprep.subr.mxu0 0.0
      %2283 = vmatpush2.msra.mxu0 0.0
      %2284 = vmatprep.subr.mxu0 0.0
      %2285 = vmatpush2.msra.mxu0 0.0
      %2286 = vmatprep.subr.mxu0 0.0
      %2287 = vmatpush2.msra.mxu0 0.0
      %2288 = vmatprep.mubr.f32.mxu0 0.0
      %2289 = vmatmul.mubr.f32.gmra.mxu0 %v2198
      %v2290 = vpop.f32.mrf.mxu0
      %v2291 = vadd.f32 0.0, %v2290
      %v2292 = vpop.f32.mrf.mxu0
      %2293 = vmatprep.mubr.f32.mxu0 0.0
      %2294 = vmatmul.mubr.f32.gmra.mxu0 %v2201
      %v2295 = vpop.f32.mrf.mxu0
      %v2296 = vadd.f32 0.0, %v2295
      %v2297 = vpop.f32.mrf.mxu0
      %2298 = vmatprep.mubr.f32.mxu0 0.0
      %2299 = vmatmul.mubr.f32.gmra.mxu0 %v2204
      %v2300 = vpop.f32.mrf.mxu0
      %v2301 = vadd.f32 0.0, %v2300
      %v2302 = vpop.f32.mrf.mxu0
      %2303 = vmatprep.mubr.f32.mxu0 0.0
      %2304 = vmatmul.mubr.f32.gmra.mxu0 %v2207
      %v2305 = vpop.f32.mrf.mxu0
      %v2306 = vadd.f32 0.0, %v2305
      %v2307 = vpop.f32.mrf.mxu0
      %2308 = vmatprep.mubr.f32.mxu0 0.0
      %2309 = vmatmul.mubr.f32.gmra.mxu0 %v2210
      %v2310 = vpop.f32.mrf.mxu0
      %v2311 = vadd.f32 0.0, %v2310
      %v2312 = vpop.f32.mrf.mxu0
      %2313 = vmatprep.mubr.f32.mxu0 0.0
      %2314 = vmatmul.mubr.f32.gmra.mxu0 %v2213
      %v2315 = vpop.f32.mrf.mxu0
      %v2316 = vadd.f32 0.0, %v2315
      %v2317 = vpop.f32.mrf.mxu0
      %2318 = vmatprep.mubr.f32.mxu0 0.0
      %2319 = vmatmul.mubr.f32.gmra.mxu0 %v2216
      %v2320 = vpop.f32.mrf.mxu0
      %v2321 = vadd.f32 0.0, %v2320
      %v2322 = vpop.f32.mrf.mxu0
      %2323 = vmatprep.mubr.f32.mxu0 0.0
      %2324 = vmatmul.mubr.f32.gmra.mxu0 %v2219
      %v2325 = vpop.f32.mrf.mxu0
      %v2326 = vadd.f32 0.0, %v2325
      %v2327 = vpop.f32.mrf.mxu0
      %2328 = vdwg.mxu0
      %v2330 = vlaneseq
      %v2331 = vshrl.u32 %v2330, 7
      %v2332 = vsub.s32 0, %v2331
      %v2333 = vrot.slane %v1782, %v2332
      %v2335 = vmul.f32 %v2291, %v2333
      %v2336 = vmul.f32 %v2296, %v2333
      %v2337 = vmul.f32 %v2301, %v2333
      %v2338 = vmul.f32 %v2306, %v2333
      %v2339 = vmul.f32 %v2311, %v2333
      %v2340 = vmul.f32 %v2316, %v2333
      %v2341 = vmul.f32 %v2321, %v2333
      %v2342 = vmul.f32 %v2326, %v2333
      %v2344 = vlaneseq
      %v2345 = vshrl.u32 %v2344, 7
      %v2346 = vsub.s32 0, %v2345
      %v2347 = vrot.slane %v1783, %v2346
      %v2349 = vadd.f32 %v2335, %v2347
      %v2350 = vadd.f32 %v2336, %v2347
      %v2351 = vadd.f32 %v2337, %v2347
      %v2352 = vadd.f32 %v2338, %v2347
      %v2353 = vadd.f32 %v2339, %v2347
      %v2354 = vadd.f32 %v2340, %v2347
      %v2355 = vadd.f32 %v2341, %v2347
      %v2356 = vadd.f32 %v2342, %v2347
      %v2357 = vmax.f32 %v2349, 0.0
      %v2358 = vmax.f32 %v2350, 0.0
      %v2359 = vmax.f32 %v2351, 0.0
      %v2360 = vmax.f32 %v2352, 0.0
      %v2361 = vmax.f32 %v2353, 0.0
      %v2362 = vmax.f32 %v2354, 0.0
      %v2363 = vmax.f32 %v2355, 0.0
      %v2364 = vmax.f32 %v2356, 0.0
      %v2365 = vld [vmem:[%s10] sm:$0xf]
      %v2367 = vsel %vm522, %v2357, 0
      %v2370 = vsel %vm522, %v2358, 0
      %v2373 = vsel %vm522, %v2359, 0
      %v2376 = vsel %vm522, %v2360, 0
      %v2379 = vsel %vm522, %v2361, 0
      %v2382 = vsel %vm522, %v2362, 0
      %v2385 = vsel %vm522, %v2363, 0
      %v2388 = vsel %vm522, %v2364, 0
      %v2391 = vsel %vm1030, %v2365, 0
      %2393 = vmatprep.subr.mxu0 0.0
      %2394 = vmatpush1.msra.mxu0 0.0
      %2395 = vmatprep.subr.mxu0 0.0
      %2396 = vmatpush1.msra.mxu0 0.0
      %2397 = vmatprep.subr.mxu0 0.0
      %2398 = vmatpush1.msra.mxu0 0.0
      %2399 = vmatprep.subr.mxu0 0.0
      %2400 = vmatpush1.msra.mxu0 0.0
      %2401 = vmatprep.subr.mxu0 0.0
      %2402 = vmatpush1.msra.mxu0 0.0
      %2403 = vmatprep.subr.mxu0 0.0
      %2404 = vmatpush1.msra.mxu0 0.0
      %2405 = vmatprep.subr.mxu0 0.0
      %2406 = vmatpush1.msra.mxu0 0.0
      %2407 = vmatprep.subr.mxu0 0.0
      %2408 = vmatpush1.msra.mxu0 0.0
      %2409 = vmatprep.subr.mxu0 0.0
      %2410 = vmatpush1.msra.mxu0 0.0
      %2411 = vmatprep.subr.mxu0 0.0
      %2412 = vmatpush1.msra.mxu0 0.0
      %2413 = vmatprep.subr.mxu0 0.0
      %2414 = vmatpush1.msra.mxu0 0.0
      %2415 = vmatprep.subr.mxu0 0.0
      %2416 = vmatpush1.msra.mxu0 0.0
      %2417 = vmatprep.subr.mxu0 0.0
      %2418 = vmatpush1.msra.mxu0 0.0
      %2419 = vmatprep.subr.mxu0 0.0
      %2420 = vmatpush1.msra.mxu0 0.0
      %2421 = vmatprep.subr.mxu0 0.0
      %2422 = vmatpush1.msra.mxu0 0.0
      %2423 = vmatprep.subr.mxu0 0.0
      %2424 = vmatpush1.msra.mxu0 %v2391
      %2425 = vmatprep.subr.mxu0 0.0
      %2426 = vmatpush2.msra.mxu0 0.0
      %2427 = vmatprep.subr.mxu0 0.0
      %2428 = vmatpush2.msra.mxu0 0.0
      %2429 = vmatprep.subr.mxu0 0.0
      %2430 = vmatpush2.msra.mxu0 0.0
      %2431 = vmatprep.subr.mxu0 0.0
      %2432 = vmatpush2.msra.mxu0 0.0
      %2433 = vmatprep.subr.mxu0 0.0
      %2434 = vmatpush2.msra.mxu0 0.0
      %2435 = vmatprep.subr.mxu0 0.0
      %2436 = vmatpush2.msra.mxu0 0.0
      %2437 = vmatprep.subr.mxu0 0.0
      %2438 = vmatpush2.msra.mxu0 0.0
      %2439 = vmatprep.subr.mxu0 0.0
      %2440 = vmatpush2.msra.mxu0 0.0
      %2441 = vmatprep.subr.mxu0 0.0
      %2442 = vmatpush2.msra.mxu0 0.0
      %2443 = vmatprep.subr.mxu0 0.0
      %2444 = vmatpush2.msra.mxu0 0.0
      %2445 = vmatprep.subr.mxu0 0.0
      %2446 = vmatpush2.msra.mxu0 0.0
      %2447 = vmatprep.subr.mxu0 0.0
      %2448 = vmatpush2.msra.mxu0 0.0
      %2449 = vmatprep.subr.mxu0 0.0
      %2450 = vmatpush2.msra.mxu0 0.0
      %2451 = vmatprep.subr.mxu0 0.0
      %2452 = vmatpush2.msra.mxu0 0.0
      %2453 = vmatprep.subr.mxu0 0.0
      %2454 = vmatpush2.msra.mxu0 0.0
      %2455 = vmatprep.subr.mxu0 0.0
      %2456 = vmatpush2.msra.mxu0 0.0
      %2457 = vmatprep.mubr.f32.mxu0 0.0
      %2458 = vmatmul.mubr.f32.gmra.mxu0 %v2367
      %v2459 = vpop.f32.mrf.mxu0
      %v2460 = vadd.f32 0.0, %v2459
      %v2461 = vpop.f32.mrf.mxu0
      %2462 = vmatprep.mubr.f32.mxu0 0.0
      %2463 = vmatmul.mubr.f32.gmra.mxu0 %v2370
      %v2464 = vpop.f32.mrf.mxu0
      %v2465 = vadd.f32 0.0, %v2464
      %v2466 = vpop.f32.mrf.mxu0
      %2467 = vmatprep.mubr.f32.mxu0 0.0
      %2468 = vmatmul.mubr.f32.gmra.mxu0 %v2373
      %v2469 = vpop.f32.mrf.mxu0
      %v2470 = vadd.f32 0.0, %v2469
      %v2471 = vpop.f32.mrf.mxu0
      %2472 = vmatprep.mubr.f32.mxu0 0.0
      %2473 = vmatmul.mubr.f32.gmra.mxu0 %v2376
      %v2474 = vpop.f32.mrf.mxu0
      %v2475 = vadd.f32 0.0, %v2474
      %v2476 = vpop.f32.mrf.mxu0
      %2477 = vmatprep.mubr.f32.mxu0 0.0
      %2478 = vmatmul.mubr.f32.gmra.mxu0 %v2379
      %v2479 = vpop.f32.mrf.mxu0
      %v2480 = vadd.f32 0.0, %v2479
      %v2481 = vpop.f32.mrf.mxu0
      %2482 = vmatprep.mubr.f32.mxu0 0.0
      %2483 = vmatmul.mubr.f32.gmra.mxu0 %v2382
      %v2484 = vpop.f32.mrf.mxu0
      %v2485 = vadd.f32 0.0, %v2484
      %v2486 = vpop.f32.mrf.mxu0
      %2487 = vmatprep.mubr.f32.mxu0 0.0
      %2488 = vmatmul.mubr.f32.gmra.mxu0 %v2385
      %v2489 = vpop.f32.mrf.mxu0
      %v2490 = vadd.f32 0.0, %v2489
      %v2491 = vpop.f32.mrf.mxu0
      %2492 = vmatprep.mubr.f32.mxu0 0.0
      %2493 = vmatmul.mubr.f32.gmra.mxu0 %v2388
      %v2494 = vpop.f32.mrf.mxu0
      %v2495 = vadd.f32 0.0, %v2494
      %v2496 = vpop.f32.mrf.mxu0
      %2497 = vdwg.mxu0
      %v2498 = vld [vmem:[%s11] sm:$0x1]
      %v2500 = vlaneseq
      %v2501 = vshrl.u32 %v2500, 7
      %v2502 = vsub.s32 0, %v2501
      %v2503 = vrot.slane %v2498, %v2502
      %v2505 = vmul.f32 %v2460, %v2503
      %v2506 = vmul.f32 %v2465, %v2503
      %v2507 = vmul.f32 %v2470, %v2503
      %v2508 = vmul.f32 %v2475, %v2503
      %v2509 = vmul.f32 %v2480, %v2503
      %v2510 = vmul.f32 %v2485, %v2503
      %v2511 = vmul.f32 %v2490, %v2503
      %v2512 = vmul.f32 %v2495, %v2503
      %v2513 = vld [vmem:[%s12] sm:$0x1]
      %v2515 = vlaneseq
      %v2516 = vshrl.u32 %v2515, 7
      %v2517 = vsub.s32 0, %v2516
      %v2518 = vrot.slane %v2513, %v2517
      %v2520 = vadd.f32 %v2505, %v2518
      %v2521 = vadd.f32 %v2506, %v2518
      %v2522 = vadd.f32 %v2507, %v2518
      %v2523 = vadd.f32 %v2508, %v2518
      %v2524 = vadd.f32 %v2509, %v2518
      %v2525 = vadd.f32 %v2510, %v2518
      %v2526 = vadd.f32 %v2511, %v2518
      %v2527 = vadd.f32 %v2512, %v2518
      %2536 = vrot.lane.b32.xlu0 %v2520, 12
      %v2537 = vpop.permute.xlu0 %2536
      %2538 = vrot.lane.b32.xlu0 %v2521, 12
      %v2539 = vpop.permute.xlu0 %2538
      %2540 = vrot.lane.b32.xlu0 %v2522, 12
      %v2541 = vpop.permute.xlu0 %2540
      %2542 = vrot.lane.b32.xlu0 %v2523, 12
      %v2543 = vpop.permute.xlu0 %2542
      %2544 = vrot.lane.b32.xlu0 %v2524, 12
      %v2545 = vpop.permute.xlu0 %2544
      %2546 = vrot.lane.b32.xlu0 %v2525, 12
      %v2547 = vpop.permute.xlu0 %2546
      %2548 = vrot.lane.b32.xlu0 %v2526, 12
      %v2549 = vpop.permute.xlu0 %2548
      %2550 = vrot.lane.b32.xlu0 %v2527, 12
      %v2551 = vpop.permute.xlu0 %2550
      %2560 = vst.msk [vmem:[#allocation4] sm:$0xff] %vm737, %v2537
      %2561 = vst.msk [vmem:[#allocation4 + $0x10] sm:$0xff] %vm737, %v2539
      %2562 = vst.msk [vmem:[#allocation4 + $0x20] sm:$0xff] %vm737, %v2541
      %2563 = vst.msk [vmem:[#allocation4 + $0x30] sm:$0xff] %vm737, %v2543
      %2564 = vst.msk [vmem:[#allocation4 + $0x40] sm:$0xff] %vm737, %v2545
      %2565 = vst.msk [vmem:[#allocation4 + $0x50] sm:$0xff] %vm737, %v2547
      %2566 = vst.msk [vmem:[#allocation4 + $0x60] sm:$0xff] %vm737, %v2549
      %2567 = vst.msk [vmem:[#allocation4 + $0x70] sm:$0xff] %vm737, %v2551
      %v2568 = vld [vmem:[%s10] sm:$0xf]
      %2570 = vrot.lane.b32.xlu0 %v2568, 124
      %v2571 = vpop.permute.xlu0 %2570
      %v2572 = vsel %vm1030, %v2571, 0
      %2574 = vmatprep.subr.mxu0 0.0
      %2575 = vmatpush1.msra.mxu0 0.0
      %2576 = vmatprep.subr.mxu0 0.0
      %2577 = vmatpush1.msra.mxu0 0.0
      %2578 = vmatprep.subr.mxu0 0.0
      %2579 = vmatpush1.msra.mxu0 0.0
      %2580 = vmatprep.subr.mxu0 0.0
      %2581 = vmatpush1.msra.mxu0 0.0
      %2582 = vmatprep.subr.mxu0 0.0
      %2583 = vmatpush1.msra.mxu0 0.0
      %2584 = vmatprep.subr.mxu0 0.0
      %2585 = vmatpush1.msra.mxu0 0.0
      %2586 = vmatprep.subr.mxu0 0.0
      %2587 = vmatpush1.msra.mxu0 0.0
      %2588 = vmatprep.subr.mxu0 0.0
      %2589 = vmatpush1.msra.mxu0 0.0
      %2590 = vmatprep.subr.mxu0 0.0
      %2591 = vmatpush1.msra.mxu0 0.0
      %2592 = vmatprep.subr.mxu0 0.0
      %2593 = vmatpush1.msra.mxu0 0.0
      %2594 = vmatprep.subr.mxu0 0.0
      %2595 = vmatpush1.msra.mxu0 0.0
      %2596 = vmatprep.subr.mxu0 0.0
      %2597 = vmatpush1.msra.mxu0 0.0
      %2598 = vmatprep.subr.mxu0 0.0
      %2599 = vmatpush1.msra.mxu0 0.0
      %2600 = vmatprep.subr.mxu0 0.0
      %2601 = vmatpush1.msra.mxu0 0.0
      %2602 = vmatprep.subr.mxu0 0.0
      %2603 = vmatpush1.msra.mxu0 0.0
      %2604 = vmatprep.subr.mxu0 0.0
      %2605 = vmatpush1.msra.mxu0 %v2572
      %2606 = vmatprep.subr.mxu0 0.0
      %2607 = vmatpush2.msra.mxu0 0.0
      %2608 = vmatprep.subr.mxu0 0.0
      %2609 = vmatpush2.msra.mxu0 0.0
      %2610 = vmatprep.subr.mxu0 0.0
      %2611 = vmatpush2.msra.mxu0 0.0
      %2612 = vmatprep.subr.mxu0 0.0
      %2613 = vmatpush2.msra.mxu0 0.0
      %2614 = vmatprep.subr.mxu0 0.0
      %2615 = vmatpush2.msra.mxu0 0.0
      %2616 = vmatprep.subr.mxu0 0.0
      %2617 = vmatpush2.msra.mxu0 0.0
      %2618 = vmatprep.subr.mxu0 0.0
      %2619 = vmatpush2.msra.mxu0 0.0
      %2620 = vmatprep.subr.mxu0 0.0
      %2621 = vmatpush2.msra.mxu0 0.0
      %2622 = vmatprep.subr.mxu0 0.0
      %2623 = vmatpush2.msra.mxu0 0.0
      %2624 = vmatprep.subr.mxu0 0.0
      %2625 = vmatpush2.msra.mxu0 0.0
      %2626 = vmatprep.subr.mxu0 0.0
      %2627 = vmatpush2.msra.mxu0 0.0
      %2628 = vmatprep.subr.mxu0 0.0
      %2629 = vmatpush2.msra.mxu0 0.0
      %2630 = vmatprep.subr.mxu0 0.0
      %2631 = vmatpush2.msra.mxu0 0.0
      %2632 = vmatprep.subr.mxu0 0.0
      %2633 = vmatpush2.msra.mxu0 0.0
      %2634 = vmatprep.subr.mxu0 0.0
      %2635 = vmatpush2.msra.mxu0 0.0
      %2636 = vmatprep.subr.mxu0 0.0
      %2637 = vmatpush2.msra.mxu0 0.0
      %2638 = vmatprep.mubr.f32.mxu0 0.0
      %2639 = vmatmul.mubr.f32.gmra.mxu0 %v2367
      %v2640 = vpop.f32.mrf.mxu0
      %v2641 = vadd.f32 0.0, %v2640
      %v2642 = vpop.f32.mrf.mxu0
      %2643 = vmatprep.mubr.f32.mxu0 0.0
      %2644 = vmatmul.mubr.f32.gmra.mxu0 %v2370
      %v2645 = vpop.f32.mrf.mxu0
      %v2646 = vadd.f32 0.0, %v2645
      %v2647 = vpop.f32.mrf.mxu0
      %2648 = vmatprep.mubr.f32.mxu0 0.0
      %2649 = vmatmul.mubr.f32.gmra.mxu0 %v2373
      %v2650 = vpop.f32.mrf.mxu0
      %v2651 = vadd.f32 0.0, %v2650
      %v2652 = vpop.f32.mrf.mxu0
      %2653 = vmatprep.mubr.f32.mxu0 0.0
      %2654 = vmatmul.mubr.f32.gmra.mxu0 %v2376
      %v2655 = vpop.f32.mrf.mxu0
      %v2656 = vadd.f32 0.0, %v2655
      %v2657 = vpop.f32.mrf.mxu0
      %2658 = vmatprep.mubr.f32.mxu0 0.0
      %2659 = vmatmul.mubr.f32.gmra.mxu0 %v2379
      %v2660 = vpop.f32.mrf.mxu0
      %v2661 = vadd.f32 0.0, %v2660
      %v2662 = vpop.f32.mrf.mxu0
      %2663 = vmatprep.mubr.f32.mxu0 0.0
      %2664 = vmatmul.mubr.f32.gmra.mxu0 %v2382
      %v2665 = vpop.f32.mrf.mxu0
      %v2666 = vadd.f32 0.0, %v2665
      %v2667 = vpop.f32.mrf.mxu0
      %2668 = vmatprep.mubr.f32.mxu0 0.0
      %2669 = vmatmul.mubr.f32.gmra.mxu0 %v2385
      %v2670 = vpop.f32.mrf.mxu0
      %v2671 = vadd.f32 0.0, %v2670
      %v2672 = vpop.f32.mrf.mxu0
      %2673 = vmatprep.mubr.f32.mxu0 0.0
      %2674 = vmatmul.mubr.f32.gmra.mxu0 %v2388
      %v2675 = vpop.f32.mrf.mxu0
      %v2676 = vadd.f32 0.0, %v2675
      %v2677 = vpop.f32.mrf.mxu0
      %2678 = vdwg.mxu0
      %v2679 = vld [vmem:[%s11] sm:$0x1]
      %v2681 = vlaneseq
      %v2682 = vshrl.u32 %v2681, 7
      %v2683 = vsub.s32 0, %v2682
      %v2684 = vrot.slane %v2679, %v2683
      %2685 = vrot.lane.b32.xlu0 %v2684, 124
      %v2686 = vpop.permute.xlu0 %2685
      %v2688 = vmul.f32 %v2641, %v2686
      %v2689 = vmul.f32 %v2646, %v2686
      %v2690 = vmul.f32 %v2651, %v2686
      %v2691 = vmul.f32 %v2656, %v2686
      %v2692 = vmul.f32 %v2661, %v2686
      %v2693 = vmul.f32 %v2666, %v2686
      %v2694 = vmul.f32 %v2671, %v2686
      %v2695 = vmul.f32 %v2676, %v2686
      %v2696 = vld [vmem:[%s12] sm:$0x1]
      %v2698 = vlaneseq
      %v2699 = vshrl.u32 %v2698, 7
      %v2700 = vsub.s32 0, %v2699
      %v2701 = vrot.slane %v2696, %v2700
      %2702 = vrot.lane.b32.xlu0 %v2701, 124
      %v2703 = vpop.permute.xlu0 %2702
      %v2705 = vadd.f32 %v2688, %v2703
      %v2706 = vadd.f32 %v2689, %v2703
      %v2707 = vadd.f32 %v2690, %v2703
      %v2708 = vadd.f32 %v2691, %v2703
      %v2709 = vadd.f32 %v2692, %v2703
      %v2710 = vadd.f32 %v2693, %v2703
      %v2711 = vadd.f32 %v2694, %v2703
      %v2712 = vadd.f32 %v2695, %v2703
      %2721 = vrot.lane.b32.xlu0 %v2705, 8
      %v2722 = vpop.permute.xlu0 %2721
      %2723 = vrot.lane.b32.xlu0 %v2706, 8
      %v2724 = vpop.permute.xlu0 %2723
      %2725 = vrot.lane.b32.xlu0 %v2707, 8
      %v2726 = vpop.permute.xlu0 %2725
      %2727 = vrot.lane.b32.xlu0 %v2708, 8
      %v2728 = vpop.permute.xlu0 %2727
      %2729 = vrot.lane.b32.xlu0 %v2709, 8
      %v2730 = vpop.permute.xlu0 %2729
      %2731 = vrot.lane.b32.xlu0 %v2710, 8
      %v2732 = vpop.permute.xlu0 %2731
      %2733 = vrot.lane.b32.xlu0 %v2711, 8
      %v2734 = vpop.permute.xlu0 %2733
      %2735 = vrot.lane.b32.xlu0 %v2712, 8
      %v2736 = vpop.permute.xlu0 %2735
      %2745 = vst.msk [vmem:[#allocation4 + $0x1] sm:$0xff] %vm688, %v2722
      %2746 = vst.msk [vmem:[#allocation4 + $0x11] sm:$0xff] %vm688, %v2724
      %2747 = vst.msk [vmem:[#allocation4 + $0x21] sm:$0xff] %vm688, %v2726
      %2748 = vst.msk [vmem:[#allocation4 + $0x31] sm:$0xff] %vm688, %v2728
      %2749 = vst.msk [vmem:[#allocation4 + $0x41] sm:$0xff] %vm688, %v2730
      %2750 = vst.msk [vmem:[#allocation4 + $0x51] sm:$0xff] %vm688, %v2732
      %2751 = vst.msk [vmem:[#allocation4 + $0x61] sm:$0xff] %vm688, %v2734
      %2752 = vst.msk [vmem:[#allocation4 + $0x71] sm:$0xff] %vm688, %v2736
      %v2753 = vld [vmem:[%s10] sm:$0xf]
      %2755 = vrot.lane.b32.xlu0 %v2753, 120
      %v2756 = vpop.permute.xlu0 %2755
      %v2757 = vsel %vm1030, %v2756, 0
      %2759 = vmatprep.subr.mxu0 0.0
      %2760 = vmatpush1.msra.mxu0 0.0
      %2761 = vmatprep.subr.mxu0 0.0
      %2762 = vmatpush1.msra.mxu0 0.0
      %2763 = vmatprep.subr.mxu0 0.0
      %2764 = vmatpush1.msra.mxu0 0.0
      %2765 = vmatprep.subr.mxu0 0.0
      %2766 = vmatpush1.msra.mxu0 0.0
      %2767 = vmatprep.subr.mxu0 0.0
      %2768 = vmatpush1.msra.mxu0 0.0
      %2769 = vmatprep.subr.mxu0 0.0
      %2770 = vmatpush1.msra.mxu0 0.0
      %2771 = vmatprep.subr.mxu0 0.0
      %2772 = vmatpush1.msra.mxu0 0.0
      %2773 = vmatprep.subr.mxu0 0.0
      %2774 = vmatpush1.msra.mxu0 0.0
      %2775 = vmatprep.subr.mxu0 0.0
      %2776 = vmatpush1.msra.mxu0 0.0
      %2777 = vmatprep.subr.mxu0 0.0
      %2778 = vmatpush1.msra.mxu0 0.0
      %2779 = vmatprep.subr.mxu0 0.0
      %2780 = vmatpush1.msra.mxu0 0.0
      %2781 = vmatprep.subr.mxu0 0.0
      %2782 = vmatpush1.msra.mxu0 0.0
      %2783 = vmatprep.subr.mxu0 0.0
      %2784 = vmatpush1.msra.mxu0 0.0
      %2785 = vmatprep.subr.mxu0 0.0
      %2786 = vmatpush1.msra.mxu0 0.0
      %2787 = vmatprep.subr.mxu0 0.0
      %2788 = vmatpush1.msra.mxu0 0.0
      %2789 = vmatprep.subr.mxu0 0.0
      %2790 = vmatpush1.msra.mxu0 %v2757
      %2791 = vmatprep.subr.mxu0 0.0
      %2792 = vmatpush2.msra.mxu0 0.0
      %2793 = vmatprep.subr.mxu0 0.0
      %2794 = vmatpush2.msra.mxu0 0.0
      %2795 = vmatprep.subr.mxu0 0.0
      %2796 = vmatpush2.msra.mxu0 0.0
      %2797 = vmatprep.subr.mxu0 0.0
      %2798 = vmatpush2.msra.mxu0 0.0
      %2799 = vmatprep.subr.mxu0 0.0
      %2800 = vmatpush2.msra.mxu0 0.0
      %2801 = vmatprep.subr.mxu0 0.0
      %2802 = vmatpush2.msra.mxu0 0.0
      %2803 = vmatprep.subr.mxu0 0.0
      %2804 = vmatpush2.msra.mxu0 0.0
      %2805 = vmatprep.subr.mxu0 0.0
      %2806 = vmatpush2.msra.mxu0 0.0
      %2807 = vmatprep.subr.mxu0 0.0
      %2808 = vmatpush2.msra.mxu0 0.0
      %2809 = vmatprep.subr.mxu0 0.0
      %2810 = vmatpush2.msra.mxu0 0.0
      %2811 = vmatprep.subr.mxu0 0.0
      %2812 = vmatpush2.msra.mxu0 0.0
      %2813 = vmatprep.subr.mxu0 0.0
      %2814 = vmatpush2.msra.mxu0 0.0
      %2815 = vmatprep.subr.mxu0 0.0
      %2816 = vmatpush2.msra.mxu0 0.0
      %2817 = vmatprep.subr.mxu0 0.0
      %2818 = vmatpush2.msra.mxu0 0.0
      %2819 = vmatprep.subr.mxu0 0.0
      %2820 = vmatpush2.msra.mxu0 0.0
      %2821 = vmatprep.subr.mxu0 0.0
      %2822 = vmatpush2.msra.mxu0 0.0
      %2823 = vmatprep.mubr.f32.mxu0 0.0
      %2824 = vmatmul.mubr.f32.gmra.mxu0 %v2367
      %v2825 = vpop.f32.mrf.mxu0
      %v2826 = vadd.f32 0.0, %v2825
      %v2827 = vpop.f32.mrf.mxu0
      %2828 = vmatprep.mubr.f32.mxu0 0.0
      %2829 = vmatmul.mubr.f32.gmra.mxu0 %v2370
      %v2830 = vpop.f32.mrf.mxu0
      %v2831 = vadd.f32 0.0, %v2830
      %v2832 = vpop.f32.mrf.mxu0
      %2833 = vmatprep.mubr.f32.mxu0 0.0
      %2834 = vmatmul.mubr.f32.gmra.mxu0 %v2373
      %v2835 = vpop.f32.mrf.mxu0
      %v2836 = vadd.f32 0.0, %v2835
      %v2837 = vpop.f32.mrf.mxu0
      %2838 = vmatprep.mubr.f32.mxu0 0.0
      %2839 = vmatmul.mubr.f32.gmra.mxu0 %v2376
      %v2840 = vpop.f32.mrf.mxu0
      %v2841 = vadd.f32 0.0, %v2840
      %v2842 = vpop.f32.mrf.mxu0
      %2843 = vmatprep.mubr.f32.mxu0 0.0
      %2844 = vmatmul.mubr.f32.gmra.mxu0 %v2379
      %v2845 = vpop.f32.mrf.mxu0
      %v2846 = vadd.f32 0.0, %v2845
      %v2847 = vpop.f32.mrf.mxu0
      %2848 = vmatprep.mubr.f32.mxu0 0.0
      %2849 = vmatmul.mubr.f32.gmra.mxu0 %v2382
      %v2850 = vpop.f32.mrf.mxu0
      %v2851 = vadd.f32 0.0, %v2850
      %v2852 = vpop.f32.mrf.mxu0
      %2853 = vmatprep.mubr.f32.mxu0 0.0
      %2854 = vmatmul.mubr.f32.gmra.mxu0 %v2385
      %v2855 = vpop.f32.mrf.mxu0
      %v2856 = vadd.f32 0.0, %v2855
      %v2857 = vpop.f32.mrf.mxu0
      %2858 = vmatprep.mubr.f32.mxu0 0.0
      %2859 = vmatmul.mubr.f32.gmra.mxu0 %v2388
      %v2860 = vpop.f32.mrf.mxu0
      %v2861 = vadd.f32 0.0, %v2860
      %v2862 = vpop.f32.mrf.mxu0
      %2863 = vdwg.mxu0
      %v2864 = vld [vmem:[%s11] sm:$0x1]
      %v2866 = vlaneseq
      %v2867 = vshrl.u32 %v2866, 7
      %v2868 = vsub.s32 0, %v2867
      %v2869 = vrot.slane %v2864, %v2868
      %2870 = vrot.lane.b32.xlu0 %v2869, 120
      %v2871 = vpop.permute.xlu0 %2870
      %v2873 = vmul.f32 %v2826, %v2871
      %v2874 = vmul.f32 %v2831, %v2871
      %v2875 = vmul.f32 %v2836, %v2871
      %v2876 = vmul.f32 %v2841, %v2871
      %v2877 = vmul.f32 %v2846, %v2871
      %v2878 = vmul.f32 %v2851, %v2871
      %v2879 = vmul.f32 %v2856, %v2871
      %v2880 = vmul.f32 %v2861, %v2871
      %v2881 = vld [vmem:[%s12] sm:$0x1]
      %v2883 = vlaneseq
      %v2884 = vshrl.u32 %v2883, 7
      %v2885 = vsub.s32 0, %v2884
      %v2886 = vrot.slane %v2881, %v2885
      %2887 = vrot.lane.b32.xlu0 %v2886, 120
      %v2888 = vpop.permute.xlu0 %2887
      %v2890 = vadd.f32 %v2873, %v2888
      %v2891 = vadd.f32 %v2874, %v2888
      %v2892 = vadd.f32 %v2875, %v2888
      %v2893 = vadd.f32 %v2876, %v2888
      %v2894 = vadd.f32 %v2877, %v2888
      %v2895 = vadd.f32 %v2878, %v2888
      %v2896 = vadd.f32 %v2879, %v2888
      %v2897 = vadd.f32 %v2880, %v2888
      %2906 = vrot.lane.b32.xlu0 %v2890, 4
      %v2907 = vpop.permute.xlu0 %2906
      %2908 = vrot.lane.b32.xlu0 %v2891, 4
      %v2909 = vpop.permute.xlu0 %2908
      %2910 = vrot.lane.b32.xlu0 %v2892, 4
      %v2911 = vpop.permute.xlu0 %2910
      %2912 = vrot.lane.b32.xlu0 %v2893, 4
      %v2913 = vpop.permute.xlu0 %2912
      %2914 = vrot.lane.b32.xlu0 %v2894, 4
      %v2915 = vpop.permute.xlu0 %2914
      %2916 = vrot.lane.b32.xlu0 %v2895, 4
      %v2917 = vpop.permute.xlu0 %2916
      %2918 = vrot.lane.b32.xlu0 %v2896, 4
      %v2919 = vpop.permute.xlu0 %2918
      %2920 = vrot.lane.b32.xlu0 %v2897, 4
      %v2921 = vpop.permute.xlu0 %2920
      %s2930 = scalar_lea.vmem [#allocation4], 16
      %2931 = vst.msk [vmem:[%s2930] sm:$0xff] %vm639, %v2907
      %2932 = vst.msk [vmem:[%s2930 + $0x10] sm:$0xff] %vm639, %v2909
      %2933 = vst.msk [vmem:[%s2930 + $0x20] sm:$0xff] %vm639, %v2911
      %2934 = vst.msk [vmem:[%s2930 + $0x30] sm:$0xff] %vm639, %v2913
      %2935 = vst.msk [vmem:[%s2930 + $0x40] sm:$0xff] %vm639, %v2915
      %2936 = vst.msk [vmem:[%s2930 + $0x50] sm:$0xff] %vm639, %v2917
      %2937 = vst.msk [vmem:[%s2930 + $0x60] sm:$0xff] %vm639, %v2919
      %2938 = vst.msk [vmem:[%s2930 + $0x70] sm:$0xff] %vm639, %v2921
      %v2939 = vld [vmem:[%s10] sm:$0xf]
      %2941 = vrot.lane.b32.xlu0 %v2939, 116
      %v2942 = vpop.permute.xlu0 %2941
      %v2943 = vsel %vm1030, %v2942, 0
      %2945 = vmatprep.subr.mxu0 0.0
      %2946 = vmatpush1.msra.mxu0 0.0
      %2947 = vmatprep.subr.mxu0 0.0
      %2948 = vmatpush1.msra.mxu0 0.0
      %2949 = vmatprep.subr.mxu0 0.0
      %2950 = vmatpush1.msra.mxu0 0.0
      %2951 = vmatprep.subr.mxu0 0.0
      %2952 = vmatpush1.msra.mxu0 0.0
      %2953 = vmatprep.subr.mxu0 0.0
      %2954 = vmatpush1.msra.mxu0 0.0
      %2955 = vmatprep.subr.mxu0 0.0
      %2956 = vmatpush1.msra.mxu0 0.0
      %2957 = vmatprep.subr.mxu0 0.0
      %2958 = vmatpush1.msra.mxu0 0.0
      %2959 = vmatprep.subr.mxu0 0.0
      %2960 = vmatpush1.msra.mxu0 0.0
      %2961 = vmatprep.subr.mxu0 0.0
      %2962 = vmatpush1.msra.mxu0 0.0
      %2963 = vmatprep.subr.mxu0 0.0
      %2964 = vmatpush1.msra.mxu0 0.0
      %2965 = vmatprep.subr.mxu0 0.0
      %2966 = vmatpush1.msra.mxu0 0.0
      %2967 = vmatprep.subr.mxu0 0.0
      %2968 = vmatpush1.msra.mxu0 0.0
      %2969 = vmatprep.subr.mxu0 0.0
      %2970 = vmatpush1.msra.mxu0 0.0
      %2971 = vmatprep.subr.mxu0 0.0
      %2972 = vmatpush1.msra.mxu0 0.0
      %2973 = vmatprep.subr.mxu0 0.0
      %2974 = vmatpush1.msra.mxu0 0.0
      %2975 = vmatprep.subr.mxu0 0.0
      %2976 = vmatpush1.msra.mxu0 %v2943
      %2977 = vmatprep.subr.mxu0 0.0
      %2978 = vmatpush2.msra.mxu0 0.0
      %2979 = vmatprep.subr.mxu0 0.0
      %2980 = vmatpush2.msra.mxu0 0.0
      %2981 = vmatprep.subr.mxu0 0.0
      %2982 = vmatpush2.msra.mxu0 0.0
      %2983 = vmatprep.subr.mxu0 0.0
      %2984 = vmatpush2.msra.mxu0 0.0
      %2985 = vmatprep.subr.mxu0 0.0
      %2986 = vmatpush2.msra.mxu0 0.0
      %2987 = vmatprep.subr.mxu0 0.0
      %2988 = vmatpush2.msra.mxu0 0.0
      %2989 = vmatprep.subr.mxu0 0.0
      %2990 = vmatpush2.msra.mxu0 0.0
      %2991 = vmatprep.subr.mxu0 0.0
      %2992 = vmatpush2.msra.mxu0 0.0
      %2993 = vmatprep.subr.mxu0 0.0
      %2994 = vmatpush2.msra.mxu0 0.0
      %2995 = vmatprep.subr.mxu0 0.0
      %2996 = vmatpush2.msra.mxu0 0.0
      %2997 = vmatprep.subr.mxu0 0.0
      %2998 = vmatpush2.msra.mxu0 0.0
      %2999 = vmatprep.subr.mxu0 0.0
      %3000 = vmatpush2.msra.mxu0 0.0
      %3001 = vmatprep.subr.mxu0 0.0
      %3002 = vmatpush2.msra.mxu0 0.0
      %3003 = vmatprep.subr.mxu0 0.0
      %3004 = vmatpush2.msra.mxu0 0.0
      %3005 = vmatprep.subr.mxu0 0.0
      %3006 = vmatpush2.msra.mxu0 0.0
      %3007 = vmatprep.subr.mxu0 0.0
      %3008 = vmatpush2.msra.mxu0 0.0
      %3009 = vmatprep.mubr.f32.mxu0 0.0
      %3010 = vmatmul.mubr.f32.gmra.mxu0 %v2367
      %v3011 = vpop.f32.mrf.mxu0
      %v3012 = vadd.f32 0.0, %v3011
      %v3013 = vpop.f32.mrf.mxu0
      %3014 = vmatprep.mubr.f32.mxu0 0.0
      %3015 = vmatmul.mubr.f32.gmra.mxu0 %v2370
      %v3016 = vpop.f32.mrf.mxu0
      %v3017 = vadd.f32 0.0, %v3016
      %v3018 = vpop.f32.mrf.mxu0
      %3019 = vmatprep.mubr.f32.mxu0 0.0
      %3020 = vmatmul.mubr.f32.gmra.mxu0 %v2373
      %v3021 = vpop.f32.mrf.mxu0
      %v3022 = vadd.f32 0.0, %v3021
      %v3023 = vpop.f32.mrf.mxu0
      %3024 = vmatprep.mubr.f32.mxu0 0.0
      %3025 = vmatmul.mubr.f32.gmra.mxu0 %v2376
      %v3026 = vpop.f32.mrf.mxu0
      %v3027 = vadd.f32 0.0, %v3026
      %v3028 = vpop.f32.mrf.mxu0
      %3029 = vmatprep.mubr.f32.mxu0 0.0
      %3030 = vmatmul.mubr.f32.gmra.mxu0 %v2379
      %v3031 = vpop.f32.mrf.mxu0
      %v3032 = vadd.f32 0.0, %v3031
      %v3033 = vpop.f32.mrf.mxu0
      %3034 = vmatprep.mubr.f32.mxu0 0.0
      %3035 = vmatmul.mubr.f32.gmra.mxu0 %v2382
      %v3036 = vpop.f32.mrf.mxu0
      %v3037 = vadd.f32 0.0, %v3036
      %v3038 = vpop.f32.mrf.mxu0
      %3039 = vmatprep.mubr.f32.mxu0 0.0
      %3040 = vmatmul.mubr.f32.gmra.mxu0 %v2385
      %v3041 = vpop.f32.mrf.mxu0
      %v3042 = vadd.f32 0.0, %v3041
      %v3043 = vpop.f32.mrf.mxu0
      %3044 = vmatprep.mubr.f32.mxu0 0.0
      %3045 = vmatmul.mubr.f32.gmra.mxu0 %v2388
      %v3046 = vpop.f32.mrf.mxu0
      %v3047 = vadd.f32 0.0, %v3046
      %v3048 = vpop.f32.mrf.mxu0
      %3049 = vdwg.mxu0
      %v3050 = vld [vmem:[%s11] sm:$0x1]
      %v3052 = vlaneseq
      %v3053 = vshrl.u32 %v3052, 7
      %v3054 = vsub.s32 0, %v3053
      %v3055 = vrot.slane %v3050, %v3054
      %3056 = vrot.lane.b32.xlu0 %v3055, 116
      %v3057 = vpop.permute.xlu0 %3056
      %v3059 = vmul.f32 %v3012, %v3057
      %v3060 = vmul.f32 %v3017, %v3057
      %v3061 = vmul.f32 %v3022, %v3057
      %v3062 = vmul.f32 %v3027, %v3057
      %v3063 = vmul.f32 %v3032, %v3057
      %v3064 = vmul.f32 %v3037, %v3057
      %v3065 = vmul.f32 %v3042, %v3057
      %v3066 = vmul.f32 %v3047, %v3057
      %v3067 = vld [vmem:[%s12] sm:$0x1]
      %v3069 = vlaneseq
      %v3070 = vshrl.u32 %v3069, 7
      %v3071 = vsub.s32 0, %v3070
      %v3072 = vrot.slane %v3067, %v3071
      %3073 = vrot.lane.b32.xlu0 %v3072, 116
      %v3074 = vpop.permute.xlu0 %3073
      %v3076 = vadd.f32 %v3059, %v3074
      %v3077 = vadd.f32 %v3060, %v3074
      %v3078 = vadd.f32 %v3061, %v3074
      %v3079 = vadd.f32 %v3062, %v3074
      %v3080 = vadd.f32 %v3063, %v3074
      %v3081 = vadd.f32 %v3064, %v3074
      %v3082 = vadd.f32 %v3065, %v3074
      %v3083 = vadd.f32 %v3066, %v3074
      %3084 = vst.msk [vmem:[%s2930 + $0x1] sm:$0xff] %vm522, %v3076
      %3085 = vst.msk [vmem:[%s2930 + $0x11] sm:$0xff] %vm522, %v3077
      %3086 = vst.msk [vmem:[%s2930 + $0x21] sm:$0xff] %vm522, %v3078
      %3087 = vst.msk [vmem:[%s2930 + $0x31] sm:$0xff] %vm522, %v3079
      %3088 = vst.msk [vmem:[%s2930 + $0x41] sm:$0xff] %vm522, %v3080
      %3089 = vst.msk [vmem:[%s2930 + $0x51] sm:$0xff] %vm522, %v3081
      %3090 = vst.msk [vmem:[%s2930 + $0x61] sm:$0xff] %vm522, %v3082
      %3091 = vst.msk [vmem:[%s2930 + $0x71] sm:$0xff] %vm522, %v3083
      %v3092 = vld [vmem:[#allocation4] sm:$0xff]
      %v3093 = vld [vmem:[#allocation4 + $0x10] sm:$0xff]
      %v3094 = vld [vmem:[#allocation4 + $0x20] sm:$0xff]
      %v3095 = vld [vmem:[#allocation4 + $0x30] sm:$0xff]
      %v3096 = vld [vmem:[#allocation4 + $0x40] sm:$0xff]
      %v3097 = vld [vmem:[#allocation4 + $0x50] sm:$0xff]
      %v3098 = vld [vmem:[#allocation4 + $0x60] sm:$0xff]
      %v3099 = vld [vmem:[#allocation4 + $0x70] sm:$0xff]
      %3100 = vst.msk [vmem:[#allocation5] sm:$0xff] %vm544, %v3092
      %3101 = vst.msk [vmem:[#allocation5 + $0x8] sm:$0xff] %vm544, %v3093
      %3102 = vst.msk [vmem:[#allocation5 + $0x10] sm:$0xff] %vm544, %v3094
      %3103 = vst.msk [vmem:[#allocation5 + $0x18] sm:$0xff] %vm544, %v3095
      %3104 = vst.msk [vmem:[#allocation5 + $0x20] sm:$0xff] %vm544, %v3096
      %3105 = vst.msk [vmem:[#allocation5 + $0x28] sm:$0xff] %vm544, %v3097
      %3106 = vst.msk [vmem:[#allocation5 + $0x30] sm:$0xff] %vm544, %v3098
      %3107 = vst.msk [vmem:[#allocation5 + $0x38] sm:$0xff] %vm544, %v3099
      %v3108 = vld [vmem:[#allocation4 + $0x1] sm:$0xff]
      %v3109 = vld [vmem:[#allocation4 + $0x11] sm:$0xff]
      %v3110 = vld [vmem:[#allocation4 + $0x21] sm:$0xff]
      %v3111 = vld [vmem:[#allocation4 + $0x31] sm:$0xff]
      %v3112 = vld [vmem:[#allocation4 + $0x41] sm:$0xff]
      %v3113 = vld [vmem:[#allocation4 + $0x51] sm:$0xff]
      %v3114 = vld [vmem:[#allocation4 + $0x61] sm:$0xff]
      %v3115 = vld [vmem:[#allocation4 + $0x71] sm:$0xff]
      %3124 = vrot.lane.b32.xlu0 %v3108, 16
      %v3125 = vpop.permute.xlu0 %3124
      %3126 = vrot.lane.b32.xlu0 %v3109, 16
      %v3127 = vpop.permute.xlu0 %3126
      %3128 = vrot.lane.b32.xlu0 %v3110, 16
      %v3129 = vpop.permute.xlu0 %3128
      %3130 = vrot.lane.b32.xlu0 %v3111, 16
      %v3131 = vpop.permute.xlu0 %3130
      %3132 = vrot.lane.b32.xlu0 %v3112, 16
      %v3133 = vpop.permute.xlu0 %3132
      %3134 = vrot.lane.b32.xlu0 %v3113, 16
      %v3135 = vpop.permute.xlu0 %3134
      %3136 = vrot.lane.b32.xlu0 %v3114, 16
      %v3137 = vpop.permute.xlu0 %3136
      %3138 = vrot.lane.b32.xlu0 %v3115, 16
      %v3139 = vpop.permute.xlu0 %3138
      %vm3148 = vcmask 261248
      %3149 = vst.msk [vmem:[#allocation5] sm:$0xff] %vm3148, %v3125
      %3150 = vst.msk [vmem:[#allocation5 + $0x8] sm:$0xff] %vm3148, %v3127
      %3151 = vst.msk [vmem:[#allocation5 + $0x10] sm:$0xff] %vm3148, %v3129
      %3152 = vst.msk [vmem:[#allocation5 + $0x18] sm:$0xff] %vm3148, %v3131
      %3153 = vst.msk [vmem:[#allocation5 + $0x20] sm:$0xff] %vm3148, %v3133
      %3154 = vst.msk [vmem:[#allocation5 + $0x28] sm:$0xff] %vm3148, %v3135
      %3155 = vst.msk [vmem:[#allocation5 + $0x30] sm:$0xff] %vm3148, %v3137
      %3156 = vst.msk [vmem:[#allocation5 + $0x38] sm:$0xff] %vm3148, %v3139
      %v3157 = vld [vmem:[%s2930] sm:$0xff]
      %v3158 = vld [vmem:[%s2930 + $0x10] sm:$0xff]
      %v3159 = vld [vmem:[%s2930 + $0x20] sm:$0xff]
      %v3160 = vld [vmem:[%s2930 + $0x30] sm:$0xff]
      %v3161 = vld [vmem:[%s2930 + $0x40] sm:$0xff]
      %v3162 = vld [vmem:[%s2930 + $0x50] sm:$0xff]
      %v3163 = vld [vmem:[%s2930 + $0x60] sm:$0xff]
      %v3164 = vld [vmem:[%s2930 + $0x70] sm:$0xff]
      %3173 = vrot.lane.b32.xlu0 %v3157, 32
      %v3174 = vpop.permute.xlu0 %3173
      %3175 = vrot.lane.b32.xlu0 %v3158, 32
      %v3176 = vpop.permute.xlu0 %3175
      %3177 = vrot.lane.b32.xlu0 %v3159, 32
      %v3178 = vpop.permute.xlu0 %3177
      %3179 = vrot.lane.b32.xlu0 %v3160, 32
      %v3180 = vpop.permute.xlu0 %3179
      %3181 = vrot.lane.b32.xlu0 %v3161, 32
      %v3182 = vpop.permute.xlu0 %3181
      %3183 = vrot.lane.b32.xlu0 %v3162, 32
      %v3184 = vpop.permute.xlu0 %3183
      %3185 = vrot.lane.b32.xlu0 %v3163, 32
      %v3186 = vpop.permute.xlu0 %3185
      %3187 = vrot.lane.b32.xlu0 %v3164, 32
      %v3188 = vpop.permute.xlu0 %3187
      %vm3197 = vcmask 392448
      %3198 = vst.msk [vmem:[#allocation5] sm:$0xff] %vm3197, %v3174
      %3199 = vst.msk [vmem:[#allocation5 + $0x8] sm:$0xff] %vm3197, %v3176
      %3200 = vst.msk [vmem:[#allocation5 + $0x10] sm:$0xff] %vm3197, %v3178
      %3201 = vst.msk [vmem:[#allocation5 + $0x18] sm:$0xff] %vm3197, %v3180
      %3202 = vst.msk [vmem:[#allocation5 + $0x20] sm:$0xff] %vm3197, %v3182
      %3203 = vst.msk [vmem:[#allocation5 + $0x28] sm:$0xff] %vm3197, %v3184
      %3204 = vst.msk [vmem:[#allocation5 + $0x30] sm:$0xff] %vm3197, %v3186
      %3205 = vst.msk [vmem:[#allocation5 + $0x38] sm:$0xff] %vm3197, %v3188
      %v3206 = vld [vmem:[%s2930 + $0x1] sm:$0xff]
      %v3207 = vld [vmem:[%s2930 + $0x11] sm:$0xff]
      %v3208 = vld [vmem:[%s2930 + $0x21] sm:$0xff]
      %v3209 = vld [vmem:[%s2930 + $0x31] sm:$0xff]
      %v3210 = vld [vmem:[%s2930 + $0x41] sm:$0xff]
      %v3211 = vld [vmem:[%s2930 + $0x51] sm:$0xff]
      %v3212 = vld [vmem:[%s2930 + $0x61] sm:$0xff]
      %v3213 = vld [vmem:[%s2930 + $0x71] sm:$0xff]
      %3222 = vrot.lane.b32.xlu0 %v3206, 48
      %v3223 = vpop.permute.xlu0 %3222
      %3224 = vrot.lane.b32.xlu0 %v3207, 48
      %v3225 = vpop.permute.xlu0 %3224
      %3226 = vrot.lane.b32.xlu0 %v3208, 48
      %v3227 = vpop.permute.xlu0 %3226
      %3228 = vrot.lane.b32.xlu0 %v3209, 48
      %v3229 = vpop.permute.xlu0 %3228
      %3230 = vrot.lane.b32.xlu0 %v3210, 48
      %v3231 = vpop.permute.xlu0 %3230
      %3232 = vrot.lane.b32.xlu0 %v3211, 48
      %v3233 = vpop.permute.xlu0 %3232
      %3234 = vrot.lane.b32.xlu0 %v3212, 48
      %v3235 = vpop.permute.xlu0 %3234
      %3236 = vrot.lane.b32.xlu0 %v3213, 48
      %v3237 = vpop.permute.xlu0 %3236
      %vm3246 = vcmask 523648
      %3247 = vst.msk [vmem:[#allocation5] sm:$0xff] %vm3246, %v3223
      %3248 = vst.msk [vmem:[#allocation5 + $0x8] sm:$0xff] %vm3246, %v3225
      %3249 = vst.msk [vmem:[#allocation5 + $0x10] sm:$0xff] %vm3246, %v3227
      %3250 = vst.msk [vmem:[#allocation5 + $0x18] sm:$0xff] %vm3246, %v3229
      %3251 = vst.msk [vmem:[#allocation5 + $0x20] sm:$0xff] %vm3246, %v3231
      %3252 = vst.msk [vmem:[#allocation5 + $0x28] sm:$0xff] %vm3246, %v3233
      %3253 = vst.msk [vmem:[#allocation5 + $0x30] sm:$0xff] %vm3246, %v3235
      %3254 = vst.msk [vmem:[#allocation5 + $0x38] sm:$0xff] %vm3246, %v3237
      %v3255 = vld [vmem:[#allocation5] sm:$0xff]
      %v3256 = vld [vmem:[#allocation5 + $0x8] sm:$0xff]
      %v3257 = vld [vmem:[#allocation5 + $0x10] sm:$0xff]
      %v3258 = vld [vmem:[#allocation5 + $0x18] sm:$0xff]
      %v3259 = vld [vmem:[#allocation5 + $0x20] sm:$0xff]
      %v3260 = vld [vmem:[#allocation5 + $0x28] sm:$0xff]
      %v3261 = vld [vmem:[#allocation5 + $0x30] sm:$0xff]
      %v3262 = vld [vmem:[#allocation5 + $0x38] sm:$0xff]
      %v3263 = vld [vmem:[%s13] sm:$0xff]
      %v3264 = vld [vmem:[%s13 + $0x8] sm:$0xff]
      %v3265 = vld [vmem:[%s13 + $0x10] sm:$0xff]
      %v3266 = vld [vmem:[%s13 + $0x18] sm:$0xff]
      %v3267 = vld [vmem:[%s13 + $0x20] sm:$0xff]
      %v3268 = vld [vmem:[%s13 + $0x28] sm:$0xff]
      %v3269 = vld [vmem:[%s13 + $0x30] sm:$0xff]
      %v3270 = vld [vmem:[%s13 + $0x38] sm:$0xff]
      %vm3271 = vcmask 523264
      %v3273 = vsel %vm3271, %v3255, 0
      %v3276 = vsel %vm3271, %v3256, 0
      %v3279 = vsel %vm3271, %v3257, 0
      %v3282 = vsel %vm3271, %v3258, 0
      %v3285 = vsel %vm3271, %v3259, 0
      %v3288 = vsel %vm3271, %v3260, 0
      %v3291 = vsel %vm3271, %v3261, 0
      %v3294 = vsel %vm3271, %v3262, 0
      %3296 = vmatprep.subr.mxu0 0.0
      %3297 = vmatpush1.msra.mxu0 0.0
      %3298 = vmatprep.subr.mxu0 0.0
      %3299 = vmatpush1.msra.mxu0 0.0
      %3300 = vmatprep.subr.mxu0 0.0
      %3301 = vmatpush1.msra.mxu0 0.0
      %3302 = vmatprep.subr.mxu0 0.0
      %3303 = vmatpush1.msra.mxu0 0.0
      %3304 = vmatprep.subr.mxu0 0.0
      %3305 = vmatpush1.msra.mxu0 0.0
      %3306 = vmatprep.subr.mxu0 0.0
      %3307 = vmatpush1.msra.mxu0 0.0
      %3308 = vmatprep.subr.mxu0 0.0
      %3309 = vmatpush1.msra.mxu0 0.0
      %3310 = vmatprep.subr.mxu0 0.0
      %3311 = vmatpush1.msra.mxu0 0.0
      %3312 = vmatprep.subr.mxu0 0.0
      %3313 = vmatpush1.msra.mxu0 %v3270
      %3314 = vmatprep.subr.mxu0 0.0
      %3315 = vmatpush1.msra.mxu0 %v3269
      %3316 = vmatprep.subr.mxu0 0.0
      %3317 = vmatpush1.msra.mxu0 %v3268
      %3318 = vmatprep.subr.mxu0 0.0
      %3319 = vmatpush1.msra.mxu0 %v3267
      %3320 = vmatprep.subr.mxu0 0.0
      %3321 = vmatpush1.msra.mxu0 %v3266
      %3322 = vmatprep.subr.mxu0 0.0
      %3323 = vmatpush1.msra.mxu0 %v3265
      %3324 = vmatprep.subr.mxu0 0.0
      %3325 = vmatpush1.msra.mxu0 %v3264
      %3326 = vmatprep.subr.mxu0 0.0
      %3327 = vmatpush1.msra.mxu0 %v3263
      %3328 = vmatprep.subr.mxu0 0.0
      %3329 = vmatpush2.msra.mxu0 0.0
      %3330 = vmatprep.subr.mxu0 0.0
      %3331 = vmatpush2.msra.mxu0 0.0
      %3332 = vmatprep.subr.mxu0 0.0
      %3333 = vmatpush2.msra.mxu0 0.0
      %3334 = vmatprep.subr.mxu0 0.0
      %3335 = vmatpush2.msra.mxu0 0.0
      %3336 = vmatprep.subr.mxu0 0.0
      %3337 = vmatpush2.msra.mxu0 0.0
      %3338 = vmatprep.subr.mxu0 0.0
      %3339 = vmatpush2.msra.mxu0 0.0
      %3340 = vmatprep.subr.mxu0 0.0
      %3341 = vmatpush2.msra.mxu0 0.0
      %3342 = vmatprep.subr.mxu0 0.0
      %3343 = vmatpush2.msra.mxu0 0.0
      %3344 = vmatprep.subr.mxu0 0.0
      %3345 = vmatpush2.msra.mxu0 0.0
      %3346 = vmatprep.subr.mxu0 0.0
      %3347 = vmatpush2.msra.mxu0 0.0
      %3348 = vmatprep.subr.mxu0 0.0
      %3349 = vmatpush2.msra.mxu0 0.0
      %3350 = vmatprep.subr.mxu0 0.0
      %3351 = vmatpush2.msra.mxu0 0.0
      %3352 = vmatprep.subr.mxu0 0.0
      %3353 = vmatpush2.msra.mxu0 0.0
      %3354 = vmatprep.subr.mxu0 0.0
      %3355 = vmatpush2.msra.mxu0 0.0
      %3356 = vmatprep.subr.mxu0 0.0
      %3357 = vmatpush2.msra.mxu0 0.0
      %3358 = vmatprep.subr.mxu0 0.0
      %3359 = vmatpush2.msra.mxu0 0.0
      %3360 = vmatprep.mubr.f32.mxu0 0.0
      %3361 = vmatmul.mubr.f32.gmra.mxu0 %v3273
      %v3362 = vpop.f32.mrf.mxu0
      %v3363 = vadd.f32 0.0, %v3362
      %v3364 = vpop.f32.mrf.mxu0
      %3365 = vmatprep.mubr.f32.mxu0 0.0
      %3366 = vmatmul.mubr.f32.gmra.mxu0 %v3276
      %v3367 = vpop.f32.mrf.mxu0
      %v3368 = vadd.f32 0.0, %v3367
      %v3369 = vpop.f32.mrf.mxu0
      %3370 = vmatprep.mubr.f32.mxu0 0.0
      %3371 = vmatmul.mubr.f32.gmra.mxu0 %v3279
      %v3372 = vpop.f32.mrf.mxu0
      %v3373 = vadd.f32 0.0, %v3372
      %v3374 = vpop.f32.mrf.mxu0
      %3375 = vmatprep.mubr.f32.mxu0 0.0
      %3376 = vmatmul.mubr.f32.gmra.mxu0 %v3282
      %v3377 = vpop.f32.mrf.mxu0
      %v3378 = vadd.f32 0.0, %v3377
      %v3379 = vpop.f32.mrf.mxu0
      %3380 = vmatprep.mubr.f32.mxu0 0.0
      %3381 = vmatmul.mubr.f32.gmra.mxu0 %v3285
      %v3382 = vpop.f32.mrf.mxu0
      %v3383 = vadd.f32 0.0, %v3382
      %v3384 = vpop.f32.mrf.mxu0
      %3385 = vmatprep.mubr.f32.mxu0 0.0
      %3386 = vmatmul.mubr.f32.gmra.mxu0 %v3288
      %v3387 = vpop.f32.mrf.mxu0
      %v3388 = vadd.f32 0.0, %v3387
      %v3389 = vpop.f32.mrf.mxu0
      %3390 = vmatprep.mubr.f32.mxu0 0.0
      %3391 = vmatmul.mubr.f32.gmra.mxu0 %v3291
      %v3392 = vpop.f32.mrf.mxu0
      %v3393 = vadd.f32 0.0, %v3392
      %v3394 = vpop.f32.mrf.mxu0
      %3395 = vmatprep.mubr.f32.mxu0 0.0
      %3396 = vmatmul.mubr.f32.gmra.mxu0 %v3294
      %v3397 = vpop.f32.mrf.mxu0
      %v3398 = vadd.f32 0.0, %v3397
      %v3399 = vpop.f32.mrf.mxu0
      %3400 = vdwg.mxu0
      %v3401 = vld [vmem:[%s14] sm:$0x1]
      %v3403 = vlaneseq
      %v3404 = vshrl.u32 %v3403, 7
      %v3405 = vsub.s32 0, %v3404
      %v3406 = vrot.slane %v3401, %v3405
      %v3408 = vmul.f32 %v3363, %v3406
      %v3409 = vmul.f32 %v3368, %v3406
      %v3410 = vmul.f32 %v3373, %v3406
      %v3411 = vmul.f32 %v3378, %v3406
      %v3412 = vmul.f32 %v3383, %v3406
      %v3413 = vmul.f32 %v3388, %v3406
      %v3414 = vmul.f32 %v3393, %v3406
      %v3415 = vmul.f32 %v3398, %v3406
      %v3416 = vld [vmem:[%s15] sm:$0x1]
      %v3418 = vlaneseq
      %v3419 = vshrl.u32 %v3418, 7
      %v3420 = vsub.s32 0, %v3419
      %v3421 = vrot.slane %v3416, %v3420
      %v3423 = vadd.f32 %v3408, %v3421
      %v3424 = vadd.f32 %v3409, %v3421
      %v3425 = vadd.f32 %v3410, %v3421
      %v3426 = vadd.f32 %v3411, %v3421
      %v3427 = vadd.f32 %v3412, %v3421
      %v3428 = vadd.f32 %v3413, %v3421
      %v3429 = vadd.f32 %v3414, %v3421
      %v3430 = vadd.f32 %v3415, %v3421
      %vm3431 = vcmask 261120
      %3432 = vst.msk [vmem:[%s521] sm:$0xff] %vm3431, %v3423
      %3433 = vst.msk [vmem:[%s521 + $0x8] sm:$0xff] %vm3431, %v3424
      %3434 = vst.msk [vmem:[%s521 + $0x10] sm:$0xff] %vm3431, %v3425
      %3435 = vst.msk [vmem:[%s521 + $0x18] sm:$0xff] %vm3431, %v3426
      %3436 = vst.msk [vmem:[%s521 + $0x20] sm:$0xff] %vm3431, %v3427
      %3437 = vst.msk [vmem:[%s521 + $0x28] sm:$0xff] %vm3431, %v3428
      %3438 = vst.msk [vmem:[%s521 + $0x30] sm:$0xff] %vm3431, %v3429
      %3439 = vst.msk [vmem:[%s521 + $0x38] sm:$0xff] %vm3431, %v3430
      %p3440 = scmp.lt.s32.totalorder %s27, 1
      %s3441 = scalar_select %p3440, %s27, 1
      %s3442 = smul.addr %s3441, 8
      %s3443 = smul.addr %s3442, 8
      %s3444 = scalar_lea.vmem %s16, %s3443
      // Predicated region
      $region85: #{resdiv_forward.1} parent=83 // pred_check
        %p3445 = pneg %p386
      $region86: #{resdiv_forward.1} parent=83 // pred_check_branch
        %3447 = sbr.rel (%p3445) target = $region88
      $region87: #{resdiv_forward.1} parent=83 // pred_region
        _
      $region88: #{resdiv_forward.1} parent=83 // pred_fallthru
        _
    $region84: #{resdiv_forward.1} parent=5 // pred_fallthru
      _
    %p3448 = scmp.le.s32.totalorder 2, %s22
    // Predicated region
    $region89: #{resdiv_forward.1} parent=5 // pred_check
      %p3449 = pneg %p3448
    $region90: #{resdiv_forward.1} parent=5 // pred_check_branch
      %3451 = sbr.rel (%p3449) target = $region92
    $region91: #{resdiv_forward.1} parent=5 // pred_region
      %s3452 = ssub.s32 %s22, 2
      // Predicated region
      $region93: #{resdiv_forward.1} parent=91 // pred_check
        %p3453 = pneg %p392
      $region94: #{resdiv_forward.1} parent=91 // pred_check_branch
        %3455 = sbr.rel (%p3453) target = $region96
      $region95: #{resdiv_forward.1} parent=91 // pred_region
        %p3456 = scmp.lt.s32.totalorder %s28, 1
        %s3457 = scalar_select %p3456, %s28, 1
        %s3458 = smul.addr %s3457, 8
        %s3459 = smul.addr %s3458, 8
        %s3460 = scalar_lea.vmem %s16, %s3459
      $region96: #{resdiv_forward.1} parent=91 // pred_fallthru
        _
    $region92: #{resdiv_forward.1} parent=5 // pred_fallthru
      _
  $region6: #{resdiv_forward.1} parent=0 // loop_footer
    %s26 = sadd.s32 1, %s22
  $region7: #{resdiv_forward.1} parent=0 // loop_footer_branch
    %21 = sbr.rel target = $region3
  $region8: #{resdiv_forward.1} parent=0 // loop_exit
    _

</llo_original>
